<compile_context>
chip_gen: v7x
topology: tpu7x:2x2x1
jax: 0.10.0
libtpu: 0.0.40
codegen_flags: <defaults>
</compile_context>

<pallas_src>
import jax
import jax.numpy as jnp
from jax.experimental import pallas as pl
from jax.experimental.pallas import tpu as pltpu


def _pick_vmem_limit():
    # v7x has 64 MiB of VMEM per TensorCore, v5e/v6e have 128 MiB.  Cap the
    # kernels at half of physical so double-buffered tiles never hit the
    # VMEM cliff on v7x while still getting extra headroom on v5e/v6e.
    try:
        cap = pltpu.get_tpu_info().vmem_capacity_bytes
        return int(min(96 * 1024 * 1024, cap // 2))
    except Exception:
        return 32 * 1024 * 1024


_VMEM_LIMIT = _pick_vmem_limit()


# ---------------------------------------------------------------------------
# Kernel 1: cv1 = 1x1 conv (BN scale pre-folded) + bias + SiLU.
# Reads (C1, pixel-tile) blocks from the NCHW input (transpose folded into a
# trans_a matmul) and writes an NHWC-flattened bf16 activation.
# ---------------------------------------------------------------------------
def _cv1_kernel(x_ref, w_ref, b_ref, o_ref):
    # x_ref: (1, C1, T)  f32   pixel tile of the NCHW input (pixels on lanes)
    # w_ref: (C1, TN)    bf16  BN-scale-folded cv1 weights
    # b_ref: (1, TN)     f32   BN bias
    # o_ref: (1, T, TN)  bf16  NHWC-flattened activation tile
    x = x_ref[0].astype(jnp.bfloat16)
    # Contract dim 0 of both operands ("trans_a" matmul on the MXU): the
    # NCHW -> NHWC transpose of the activation never round-trips HBM.
    z = jax.lax.dot_general(
        x, w_ref[...],
        dimension_numbers=(((0,), (0,)), ((), ())),
        preferred_element_type=jnp.float32)              # (T, TN) f32
    z = z + b_ref[...]
    o_ref[0] = (z * jax.nn.sigmoid(z)).astype(o_ref.dtype)   # SiLU


def conv1x1_bn_silu_nchw_in(x_nchw_flat, w_folded, bias,
                            *, block_pixels=1024, block_cout=256):
    """1x1 conv + folded BN + SiLU.  Input (N, C1, H*W) NCHW-flattened,
    output (N, H*W, Cout) NHWC-flattened bf16."""
    N, C1, HW = x_nchw_flat.shape
    Cout = w_folded.shape[1]
    # Pixel tile: 512-1024 amortizes per-grid-step overhead (sweep per gen).
    t_hw = HW if HW <= block_pixels else block_pixels     # multiple of 128 when tiled
    # Cout tile: 256 matches v6e/v7x MXU width (use 128 on v5e); lane-dense vst.
    t_n = Cout if Cout <= block_cout else block_cout
    grid = (N, pl.cdiv(HW, t_hw), pl.cdiv(Cout, t_n))
    return pl.pallas_call(
        _cv1_kernel,
        out_shape=jax.ShapeDtypeStruct((N, HW, Cout), jnp.bfloat16),
        grid=grid,
        in_specs=[
            pl.BlockSpec((1, C1, t_hw), lambda n, p, q: (n, 0, p)),
            pl.BlockSpec((C1, t_n), lambda n, p, q: (0, q)),
            pl.BlockSpec((1, t_n), lambda n, p, q: (0, q)),
        ],
        out_specs=pl.BlockSpec((1, t_hw, t_n), lambda n, p, q: (n, p, q)),
        compiler_params=pltpu.CompilerParams(
            dimension_semantics=("parallel", "parallel", "parallel"),
            vmem_limit_bytes=_VMEM_LIMIT),
    )(x_nchw_flat, w_folded, bias)


# ---------------------------------------------------------------------------
# Kernel 2: fused SPPF tail — three chained 5x5/s1/p2 max pools + cv2.
# The concat([x, y1, y2, y3]) tensor never exists in HBM: each group is
# matmul'ed against its slice of the cv2 weights and accumulated in VMEM.
# ---------------------------------------------------------------------------
_PH = 6   # H halo: 3 pools * radius 2
_PW = 8   # W halo: >= 6, kept at 8 so the interior store stays sublane-aligned


def _max5(x, axis, start, size):
    # max over the 5 taps x[start+t : start+t+size] (t = 0..4) along `axis`.
    # Axis 0 (H) is the untiled major dim -> slices are cheap; axis 1 (W) is
    # the sublane dim.
    # TODO(synk): the axis-1 taps could use pltpu.roll (XLU slot) instead of
    # sublane-crossing slices once verified for rank-3 operands.
    if axis == 0:
        r = x[start:start + size]
        for t in range(1, 5):
            r = jnp.maximum(r, x[start + t:start + t + size])
    else:
        r = x[:, start:start + size]
        for t in range(1, 5):
            r = jnp.maximum(r, x[:, start + t:start + t + size])
    return r


def _sppf_pool_cv2_kernel(y_ref, w2_ref, b2_ref, o_ref, xp_ref):
    # y_ref:  (1, H, W, C)            bf16  cv1 output for one image
    # w2_ref: (4*C, C2)               bf16  BN-scale-folded cv2 weights
    # b2_ref: (1, C2)                 f32   cv2 BN bias
    # o_ref:  (1, H, W, C2)           f32   SPPF output (NHWC)
    # xp_ref: (H+2*PH, W+2*PW, C)     f32   -inf-extended field (VMEM scratch)
    H, W, C = y_ref.shape[1], y_ref.shape[2], y_ref.shape[3]
    C2 = o_ref.shape[3]
    PH, PW = _PH, _PW

    y_bf = y_ref[0]                          # (H, W, C) bf16
    yv = y_bf.astype(jnp.float32)

    # Fill only the -inf halo; the interior is fully overwritten every step,
    # so there is no full-field fill (and no stale-data hazard when the N axis
    # is megacore-sharded).
    ninf_rows = jnp.full((PH, W + 2 * PW, C), -jnp.inf, jnp.float32)
    ninf_cols = jnp.full((H, PW, C), -jnp.inf, jnp.float32)
    xp_ref[0:PH, :, :] = ninf_rows
    xp_ref[PH + H:2 * PH + H, :, :] = ninf_rows
    xp_ref[PH:PH + H, 0:PW, :] = ninf_cols
    xp_ref[PH:PH + H, PW + W:2 * PW + W, :] = ninf_cols
    xp_ref[PH:PH + H, PW:PW + W, :] = yv
    a = xp_ref[...]                          # (H+12, W+16, C)

    # Chained pools on the -inf-extended field are exactly equivalent to three
    # padded MaxPool2d(5, 1, 2) applications.  Each stage only computes the
    # extent the next stage needs (stage1: +/-4 halo, stage2: +/-2, stage3: 0).
    t1 = _max5(a, 0, 0, H + 8)
    p1 = _max5(t1, 1, 0, W + 12)             # p1[m, q] = y1_ext(m-4, q-6)
    t2 = _max5(p1, 0, 0, H + 4)
    p2 = _max5(t2, 1, 0, W + 8)              # p2[m, q] = y2_ext(m-2, q-4)
    t3 = _max5(p2, 0, 0, H)
    y3 = _max5(t3, 1, 2, W)                  # (H, W, C)
    y1 = p1[4:4 + H, 6:6 + W]
    y2 = p2[2:2 + H, 4:4 + W]

    # cv2 fused in VMEM: accumulate the four channel groups of the virtual
    # concat([x, y1, y2, y3]) straight into the f32 accumulator.
    def gemm(g, yg_bf16):
        return jnp.dot(yg_bf16.reshape(H * W, C),
                       w2_ref[g * C:(g + 1) * C, :],
                       preferred_element_type=jnp.float32)

    acc = gemm(0, y_bf)
    acc = acc + gemm(1, y1.astype(jnp.bfloat16))   # pooled values are exact in bf16
    acc = acc + gemm(2, y2.astype(jnp.bfloat16))
    acc = acc + gemm(3, y3.astype(jnp.bfloat16))

    z = acc + b2_ref[...]
    z = z * jax.nn.sigmoid(z)                # SiLU
    o_ref[0] = z.reshape(H, W, C2).astype(o_ref.dtype)


def sppf_pool_cv2(y_nhwc, w2_folded, b2):
    N, H, W, C = y_nhwc.shape
    C2 = w2_folded.shape[1]
    # TODO(synk): for v7x (2 TCs) at batch 1, band the image over H (6-row
    # halo) to add a second parallel grid axis for megacore sharding.
    return pl.pallas_call(
        _sppf_pool_cv2_kernel,
        out_shape=jax.ShapeDtypeStruct((N, H, W, C2), jnp.float32),
        grid=(N,),
        in_specs=[
            pl.BlockSpec((1, H, W, C), lambda n: (n, 0, 0, 0)),
            pl.BlockSpec((4 * C, C2), lambda n: (0, 0)),
            pl.BlockSpec((1, C2), lambda n: (0, 0)),
        ],
        out_specs=pl.BlockSpec((1, H, W, C2), lambda n: (n, 0, 0, 0)),
        scratch_shapes=[
            pltpu.VMEM((H + 2 * _PH, W + 2 * _PW, C), jnp.float32)],
        compiler_params=pltpu.CompilerParams(
            dimension_semantics=("parallel",),
            vmem_limit_bytes=_VMEM_LIMIT),
    )(y_nhwc, w2_folded, b2)


# ---------------------------------------------------------------------------
# SPPF forward (NCHW in / NCHW out, like the torch module)
# ---------------------------------------------------------------------------
def bn_fold(gamma, beta, mean, var, eps=1e-5):
    scale = gamma / jnp.sqrt(var + eps)
    bias = beta - mean * scale
    return scale.astype(jnp.float32), bias.astype(jnp.float32)


@jax.jit
def sppf_forward(x_nchw, params):
    N, C1, H, W = x_nchw.shape
    w1, w2 = params["w1"], params["w2"]
    s1, b1 = params["s1"], params["b1"]
    s2, b2 = params["s2"], params["b2"]
    c_ = w1.shape[1]
    C2 = w2.shape[1]

    # Fold BN scale into the pointwise weights; bf16 weights feed the MXU.
    w1f = (w1 * s1[None, :]).astype(jnp.bfloat16)
    w2f = (w2 * s2[None, :]).astype(jnp.bfloat16)

    # cv1 reads the NCHW input directly (activation transpose folded into the
    # matmul) and produces an NHWC-flattened bf16 activation.
    x_flat = x_nchw.reshape(N, C1, H * W).astype(jnp.float32)
    y_flat = conv1x1_bn_silu_nchw_in(x_flat, w1f, b1.reshape(1, c_))
    y = y_flat.reshape(N, H, W, c_)                      # (N, H, W, c_) bf16

    # fused triple max-pool + cv2 (+BN+SiLU) -> (N, H, W, C2), no concat HBM.
    out_nhwc = sppf_pool_cv2(y, w2f, b2.reshape(1, C2))

    # Final NHWC -> NCHW to match the torch module's layout.
    # TODO(synk): drop this transpose when the surrounding graph is NHWC.
    return jnp.transpose(out_nhwc, (0, 3, 1, 2))


# ---------------------------------------------------------------------------
# Pure-JAX f32 reference for sanity check
# ---------------------------------------------------------------------------
def sppf_reference(x_nchw, params):
    w1, w2 = params["w1"], params["w2"]
    s1, b1, s2, b2 = params["s1"], params["b1"], params["s2"], params["b2"]

    z1 = jnp.einsum("nchw,co->nohw", x_nchw, w1, precision="highest")
    z1 = z1 * s1[None, :, None, None] + b1[None, :, None, None]
    y = z1 * jax.nn.sigmoid(z1)

    def mp(a):  # MaxPool2d(5, stride=1, padding=2) with -inf padding
        return jax.lax.reduce_window(
            a, -jnp.inf, jax.lax.max,
            window_dimensions=(1, 1, 5, 5), window_strides=(1, 1, 1, 1),
            padding=((0, 0), (0, 0), (2, 2), (2, 2)))

    y1 = mp(y)
    y2 = mp(y1)
    y3 = mp(y2)
    cat = jnp.concatenate([y, y1, y2, y3], axis=1)

    z2 = jnp.einsum("nchw,co->nohw", cat, w2, precision="highest")
    z2 = z2 * s2[None, :, None, None] + b2[None, :, None, None]
    return z2 * jax.nn.sigmoid(z2)


if __name__ == "__main__":
    # Small shapes: N=2, c1=4 (c_=2), c2=8, H=W=16
    N, C1, C2, H, W = 2, 4, 8, 16, 16
    c_ = C1 // 2

    key = jax.random.PRNGKey(0)
    k = jax.random.split(key, 12)

    x = jax.random.normal(k[0], (N, C1, H, W), dtype=jnp.float32)

    # cv1 weights: torch (c_, C1, 1, 1) -> matmul layout (C1, c_)
    w1 = 0.1 * jax.random.normal(k[1], (C1, c_), dtype=jnp.float32)
    # cv2 weights: torch (C2, 4*c_, 1, 1) -> matmul layout (4*c_, C2)
    w2 = 0.1 * jax.random.normal(k[2], (4 * c_, C2), dtype=jnp.float32)

    # BN params (deterministic, inference-mode fold)
    g1 = 1.0 + 0.1 * jax.random.normal(k[3], (c_,), dtype=jnp.float32)
    be1 = 0.1 * jax.random.normal(k[4], (c_,), dtype=jnp.float32)
    m1 = 0.05 * jax.random.normal(k[5], (c_,), dtype=jnp.float32)
    v1 = jnp.abs(1.0 + 0.1 * jax.random.normal(k[6], (c_,), dtype=jnp.float32))
    g2 = 1.0 + 0.1 * jax.random.normal(k[7], (C2,), dtype=jnp.float32)
    be2 = 0.1 * jax.random.normal(k[8], (C2,), dtype=jnp.float32)
    m2 = 0.05 * jax.random.normal(k[9], (C2,), dtype=jnp.float32)
    v2 = jnp.abs(1.0 + 0.1 * jax.random.normal(k[10], (C2,), dtype=jnp.float32))

    s1, b1 = bn_fold(g1, be1, m1, v1)
    s2, b2 = bn_fold(g2, be2, m2, v2)

    params = {"w1": w1, "w2": w2, "s1": s1, "b1": b1, "s2": s2, "b2": b2}

    out = sppf_forward(x, params)
    out = jax.block_until_ready(out)
    assert out.shape == (N, C2, H, W), out.shape

    ref = sppf_reference(x, params)
    # bf16 MXU inputs / bf16 intermediate activation -> bf16-level tolerance
    # against the f32 reference.
    max_err = float(jnp.max(jnp.abs(out - ref)))
    assert jnp.allclose(out, ref, rtol=2e-2, atol=2e-3), max_err

    print("KERNEL_OK")
</pallas_src>

<mosaic_0001>
module attributes {stable_mosaic.version = 11 : i64} {
  func.func @_sppf_pool_cv2_kernel(%arg0: i32, %arg1: memref<1x16x16x2xbf16, #tpu.memory_space<vmem>>, %arg2: memref<8x8xbf16, #tpu.memory_space<vmem>>, %arg3: memref<1x8xf32, #tpu.memory_space<vmem>>, %arg4: memref<1x16x16x8xf32, #tpu.memory_space<vmem>>, %arg5: memref<28x32x2xf32, #tpu.memory_space<vmem>>) attributes {dimension_semantics = [#tpu.dimension_semantics<parallel>], iteration_bounds = array<i64: 2>, scalar_prefetch = 0 : i64, scratch_operands = 1 : i64, tpu.core_type = #tpu.core_type<tc>, window_params = [{transform_indices = @transform_0, window_bounds = array<i64: 1, 16, 16, 2>}, {pipeline_mode = #tpu.pipeline_mode<synchronous>, transform_indices = @transform_1, window_bounds = array<i64: 8, 8>}, {pipeline_mode = #tpu.pipeline_mode<synchronous>, transform_indices = @transform_2, window_bounds = array<i64: 1, 8>}, {transform_indices = @transform_3, window_bounds = array<i64: 1, 16, 16, 8>}]} {
    %c0 = arith.constant 0 : index
    %c0_0 = arith.constant 0 : index
    %c0_1 = arith.constant 0 : index
    %c0_2 = arith.constant 0 : index
    %0 = vector.load %arg1[%c0, %c0_0, %c0_1, %c0_2] : memref<1x16x16x2xbf16, #tpu.memory_space<vmem>>, vector<1x16x16x2xbf16>
    %1 = vector.shape_cast %0 : vector<1x16x16x2xbf16> to vector<16x16x2xbf16>
    %2 = arith.extf %1 : vector<16x16x2xbf16> to vector<16x16x2xf32>
    %cst = arith.constant 0xFF800000 : f32
    %3 = vector.broadcast %cst : f32 to vector<6x32x2xf32>
    %cst_3 = arith.constant 0xFF800000 : f32
    %4 = vector.broadcast %cst_3 : f32 to vector<16x8x2xf32>
    %c0_4 = arith.constant 0 : index
    %c0_5 = arith.constant 0 : index
    %c0_6 = arith.constant 0 : index
    %5 = vector.load %arg5[%c0_4, %c0_5, %c0_6] : memref<28x32x2xf32, #tpu.memory_space<vmem>>, vector<6x32x2xf32>
    tpu.vector_store %arg5[%c0_4, %c0_5, %c0_6], %3 {strides = array<i32>} : memref<28x32x2xf32, #tpu.memory_space<vmem>>, vector<6x32x2xf32>,
    %c22 = arith.constant 22 : index
    %c0_7 = arith.constant 0 : index
    %c0_8 = arith.constant 0 : index
    %6 = vector.load %arg5[%c22, %c0_7, %c0_8] : memref<28x32x2xf32, #tpu.memory_space<vmem>>, vector<6x32x2xf32>
    tpu.vector_store %arg5[%c22, %c0_7, %c0_8], %3 {strides = array<i32>} : memref<28x32x2xf32, #tpu.memory_space<vmem>>, vector<6x32x2xf32>,
    %c6 = arith.constant 6 : index
    %c0_9 = arith.constant 0 : index
    %c0_10 = arith.constant 0 : index
    %7 = vector.load %arg5[%c6, %c0_9, %c0_10] : memref<28x32x2xf32, #tpu.memory_space<vmem>>, vector<16x8x2xf32>
    tpu.vector_store %arg5[%c6, %c0_9, %c0_10], %4 {strides = array<i32>} : memref<28x32x2xf32, #tpu.memory_space<vmem>>, vector<16x8x2xf32>,
    %c6_11 = arith.constant 6 : index
    %c24 = arith.constant 24 : index
    %c0_12 = arith.constant 0 : index
    %8 = vector.load %arg5[%c6_11, %c24, %c0_12] : memref<28x32x2xf32, #tpu.memory_space<vmem>>, vector<16x8x2xf32>
    tpu.vector_store %arg5[%c6_11, %c24, %c0_12], %4 {strides = array<i32>} : memref<28x32x2xf32, #tpu.memory_space<vmem>>, vector<16x8x2xf32>,
    %c6_13 = arith.constant 6 : index
    %c8 = arith.constant 8 : index
    %c0_14 = arith.constant 0 : index
    %9 = vector.load %arg5[%c6_13, %c8, %c0_14] : memref<28x32x2xf32, #tpu.memory_space<vmem>>, vector<16x16x2xf32>
    tpu.vector_store %arg5[%c6_13, %c8, %c0_14], %2 {strides = array<i32>} : memref<28x32x2xf32, #tpu.memory_space<vmem>>, vector<16x16x2xf32>,
    %c0_15 = arith.constant 0 : index
    %c0_16 = arith.constant 0 : index
    %c0_17 = arith.constant 0 : index
    %10 = vector.load %arg5[%c0_15, %c0_16, %c0_17] : memref<28x32x2xf32, #tpu.memory_space<vmem>>, vector<28x32x2xf32>
    %11 = vector.extract_strided_slice %10 {offsets = [0, 0, 0], sizes = [24, 32, 2], strides = [1, 1, 1]} : vector<28x32x2xf32> to vector<24x32x2xf32>
    %12 = vector.extract_strided_slice %10 {offsets = [1, 0, 0], sizes = [24, 32, 2], strides = [1, 1, 1]} : vector<28x32x2xf32> to vector<24x32x2xf32>
    %13 = arith.maximumf %11, %12 : vector<24x32x2xf32>
    %14 = vector.extract_strided_slice %10 {offsets = [2, 0, 0], sizes = [24, 32, 2], strides = [1, 1, 1]} : vector<28x32x2xf32> to vector<24x32x2xf32>
    %15 = arith.maximumf %13, %14 : vector<24x32x2xf32>
    %16 = vector.extract_strided_slice %10 {offsets = [3, 0, 0], sizes = [24, 32, 2], strides = [1, 1, 1]} : vector<28x32x2xf32> to vector<24x32x2xf32>
    %17 = arith.maximumf %15, %16 : vector<24x32x2xf32>
    %18 = vector.extract_strided_slice %10 {offsets = [4, 0, 0], sizes = [24, 32, 2], strides = [1, 1, 1]} : vector<28x32x2xf32> to vector<24x32x2xf32>
    %19 = arith.maximumf %17, %18 : vector<24x32x2xf32>
    %20 = vector.extract_strided_slice %19 {offsets = [0, 0, 0], sizes = [24, 28, 2], strides = [1, 1, 1]} : vector<24x32x2xf32> to vector<24x28x2xf32>
    %21 = vector.extract_strided_slice %19 {offsets = [0, 1, 0], sizes = [24, 28, 2], strides = [1, 1, 1]} : vector<24x32x2xf32> to vector<24x28x2xf32>
    %22 = arith.maximumf %20, %21 : vector<24x28x2xf32>
    %23 = vector.extract_strided_slice %19 {offsets = [0, 2, 0], sizes = [24, 28, 2], strides = [1, 1, 1]} : vector<24x32x2xf32> to vector<24x28x2xf32>
    %24 = arith.maximumf %22, %23 : vector<24x28x2xf32>
    %25 = vector.extract_strided_slice %19 {offsets = [0, 3, 0], sizes = [24, 28, 2], strides = [1, 1, 1]} : vector<24x32x2xf32> to vector<24x28x2xf32>
    %26 = arith.maximumf %24, %25 : vector<24x28x2xf32>
    %27 = vector.extract_strided_slice %19 {offsets = [0, 4, 0], sizes = [24, 28, 2], strides = [1, 1, 1]} : vector<24x32x2xf32> to vector<24x28x2xf32>
    %28 = arith.maximumf %26, %27 : vector<24x28x2xf32>
    %29 = vector.extract_strided_slice %28 {offsets = [0, 0, 0], sizes = [20, 28, 2], strides = [1, 1, 1]} : vector<24x28x2xf32> to vector<20x28x2xf32>
    %30 = vector.extract_strided_slice %28 {offsets = [1, 0, 0], sizes = [20, 28, 2], strides = [1, 1, 1]} : vector<24x28x2xf32> to vector<20x28x2xf32>
    %31 = arith.maximumf %29, %30 : vector<20x28x2xf32>
    %32 = vector.extract_strided_slice %28 {offsets = [2, 0, 0], sizes = [20, 28, 2], strides = [1, 1, 1]} : vector<24x28x2xf32> to vector<20x28x2xf32>
    %33 = arith.maximumf %31, %32 : vector<20x28x2xf32>
    %34 = vector.extract_strided_slice %28 {offsets = [3, 0, 0], sizes = [20, 28, 2], strides = [1, 1, 1]} : vector<24x28x2xf32> to vector<20x28x2xf32>
    %35 = arith.maximumf %33, %34 : vector<20x28x2xf32>
    %36 = vector.extract_strided_slice %28 {offsets = [4, 0, 0], sizes = [20, 28, 2], strides = [1, 1, 1]} : vector<24x28x2xf32> to vector<20x28x2xf32>
    %37 = arith.maximumf %35, %36 : vector<20x28x2xf32>
    %38 = vector.extract_strided_slice %37 {offsets = [0, 0, 0], sizes = [20, 24, 2], strides = [1, 1, 1]} : vector<20x28x2xf32> to vector<20x24x2xf32>
    %39 = vector.extract_strided_slice %37 {offsets = [0, 1, 0], sizes = [20, 24, 2], strides = [1, 1, 1]} : vector<20x28x2xf32> to vector<20x24x2xf32>
    %40 = arith.maximumf %38, %39 : vector<20x24x2xf32>
    %41 = vector.extract_strided_slice %37 {offsets = [0, 2, 0], sizes = [20, 24, 2], strides = [1, 1, 1]} : vector<20x28x2xf32> to vector<20x24x2xf32>
    %42 = arith.maximumf %40, %41 : vector<20x24x2xf32>
    %43 = vector.extract_strided_slice %37 {offsets = [0, 3, 0], sizes = [20, 24, 2], strides = [1, 1, 1]} : vector<20x28x2xf32> to vector<20x24x2xf32>
    %44 = arith.maximumf %42, %43 : vector<20x24x2xf32>
    %45 = vector.extract_strided_slice %37 {offsets = [0, 4, 0], sizes = [20, 24, 2], strides = [1, 1, 1]} : vector<20x28x2xf32> to vector<20x24x2xf32>
    %46 = arith.maximumf %44, %45 : vector<20x24x2xf32>
    %47 = vector.extract_strided_slice %46 {offsets = [0, 0, 0], sizes = [16, 24, 2], strides = [1, 1, 1]} : vector<20x24x2xf32> to vector<16x24x2xf32>
    %48 = vector.extract_strided_slice %46 {offsets = [1, 0, 0], sizes = [16, 24, 2], strides = [1, 1, 1]} : vector<20x24x2xf32> to vector<16x24x2xf32>
    %49 = arith.maximumf %47, %48 : vector<16x24x2xf32>
    %50 = vector.extract_strided_slice %46 {offsets = [2, 0, 0], sizes = [16, 24, 2], strides = [1, 1, 1]} : vector<20x24x2xf32> to vector<16x24x2xf32>
    %51 = arith.maximumf %49, %50 : vector<16x24x2xf32>
    %52 = vector.extract_strided_slice %46 {offsets = [3, 0, 0], sizes = [16, 24, 2], strides = [1, 1, 1]} : vector<20x24x2xf32> to vector<16x24x2xf32>
    %53 = arith.maximumf %51, %52 : vector<16x24x2xf32>
    %54 = vector.extract_strided_slice %46 {offsets = [4, 0, 0], sizes = [16, 24, 2], strides = [1, 1, 1]} : vector<20x24x2xf32> to vector<16x24x2xf32>
    %55 = arith.maximumf %53, %54 : vector<16x24x2xf32>
    %56 = vector.extract_strided_slice %55 {offsets = [0, 2, 0], sizes = [16, 16, 2], strides = [1, 1, 1]} : vector<16x24x2xf32> to vector<16x16x2xf32>
    %57 = vector.extract_strided_slice %55 {offsets = [0, 3, 0], sizes = [16, 16, 2], strides = [1, 1, 1]} : vector<16x24x2xf32> to vector<16x16x2xf32>
    %58 = arith.maximumf %56, %57 : vector<16x16x2xf32>
    %59 = vector.extract_strided_slice %55 {offsets = [0, 4, 0], sizes = [16, 16, 2], strides = [1, 1, 1]} : vector<16x24x2xf32> to vector<16x16x2xf32>
    %60 = arith.maximumf %58, %59 : vector<16x16x2xf32>
    %61 = vector.extract_strided_slice %55 {offsets = [0, 5, 0], sizes = [16, 16, 2], strides = [1, 1, 1]} : vector<16x24x2xf32> to vector<16x16x2xf32>
    %62 = arith.maximumf %60, %61 : vector<16x16x2xf32>
    %63 = vector.extract_strided_slice %55 {offsets = [0, 6, 0], sizes = [16, 16, 2], strides = [1, 1, 1]} : vector<16x24x2xf32> to vector<16x16x2xf32>
    %64 = arith.maximumf %62, %63 : vector<16x16x2xf32>
    %65 = vector.extract_strided_slice %28 {offsets = [4, 6, 0], sizes = [16, 16, 2], strides = [1, 1, 1]} : vector<24x28x2xf32> to vector<16x16x2xf32>
    %66 = vector.extract_strided_slice %46 {offsets = [2, 4, 0], sizes = [16, 16, 2], strides = [1, 1, 1]} : vector<20x24x2xf32> to vector<16x16x2xf32>
    %67 = vector.shape_cast %1 : vector<16x16x2xbf16> to vector<256x2xbf16>
    %c0_18 = arith.constant 0 : index
    %c0_19 = arith.constant 0 : index
    %68 = vector.load %arg2[%c0_18, %c0_19] : memref<8x8xbf16, #tpu.memory_space<vmem>>, vector<2x8xbf16>
    %cst_20 = arith.constant dense<0.000000e+00> : vector<256x8xf32>
    %69 = tpu.matmul %67, %68, %cst_20 {dimension_numbers = #tpu.dot_dimension_numbers<[1], [0], [0], [1], [0, 0, 1, 1], [], []>} : vector<256x2xbf16>, vector<2x8xbf16>, vector<256x8xf32> -> vector<256x8xf32>
    %70 = arith.truncf %65 : vector<16x16x2xf32> to vector<16x16x2xbf16>
    %71 = vector.shape_cast %70 : vector<16x16x2xbf16> to vector<256x2xbf16>
    %c2 = arith.constant 2 : index
    %c0_21 = arith.constant 0 : index
    %72 = vector.load %arg2[%c2, %c0_21] : memref<8x8xbf16, #tpu.memory_space<vmem>>, vector<2x8xbf16>
    %cst_22 = arith.constant dense<0.000000e+00> : vector<256x8xf32>
    %73 = tpu.matmul %71, %72, %cst_22 {dimension_numbers = #tpu.dot_dimension_numbers<[1], [0], [0], [1], [0, 0, 1, 1], [], []>} : vector<256x2xbf16>, vector<2x8xbf16>, vector<256x8xf32> -> vector<256x8xf32>
    %74 = arith.addf %69, %73 : vector<256x8xf32>
    %75 = arith.truncf %66 : vector<16x16x2xf32> to vector<16x16x2xbf16>
    %76 = vector.shape_cast %75 : vector<16x16x2xbf16> to vector<256x2xbf16>
    %c4 = arith.constant 4 : index
    %c0_23 = arith.constant 0 : index
    %77 = vector.load %arg2[%c4, %c0_23] : memref<8x8xbf16, #tpu.memory_space<vmem>>, vector<2x8xbf16>
    %cst_24 = arith.constant dense<0.000000e+00> : vector<256x8xf32>
    %78 = tpu.matmul %76, %77, %cst_24 {dimension_numbers = #tpu.dot_dimension_numbers<[1], [0], [0], [1], [0, 0, 1, 1], [], []>} : vector<256x2xbf16>, vector<2x8xbf16>, vector<256x8xf32> -> vector<256x8xf32>
    %79 = arith.addf %74, %78 : vector<256x8xf32>
    %80 = arith.truncf %64 : vector<16x16x2xf32> to vector<16x16x2xbf16>
    %81 = vector.shape_cast %80 : vector<16x16x2xbf16> to vector<256x2xbf16>
    %c6_25 = arith.constant 6 : index
    %c0_26 = arith.constant 0 : index
    %82 = vector.load %arg2[%c6_25, %c0_26] : memref<8x8xbf16, #tpu.memory_space<vmem>>, vector<2x8xbf16>
    %cst_27 = arith.constant dense<0.000000e+00> : vector<256x8xf32>
    %83 = tpu.matmul %81, %82, %cst_27 {dimension_numbers = #tpu.dot_dimension_numbers<[1], [0], [0], [1], [0, 0, 1, 1], [], []>} : vector<256x2xbf16>, vector<2x8xbf16>, vector<256x8xf32> -> vector<256x8xf32>
    %84 = arith.addf %79, %83 : vector<256x8xf32>
    %c0_28 = arith.constant 0 : index
    %c0_29 = arith.constant 0 : index
    %85 = vector.load %arg3[%c0_28, %c0_29] : memref<1x8xf32, #tpu.memory_space<vmem>>, vector<1x8xf32>
    %86 = vector.broadcast %85 : vector<1x8xf32> to vector<256x8xf32>
    %87 = arith.addf %84, %86 : vector<256x8xf32>
    %88 = arith.negf %87 : vector<256x8xf32>
    %89 = math.exp %88 : vector<256x8xf32>
    %cst_30 = arith.constant 1.000000e+00 : f32
    %90 = vector.broadcast %cst_30 : f32 to vector<256x8xf32>
    %91 = arith.addf %90, %89 : vector<256x8xf32>
    %92 = arith.divf %90, %91 : vector<256x8xf32>
    %93 = arith.mulf %87, %92 : vector<256x8xf32>
    %94 = vector.shape_cast %93 : vector<256x8xf32> to vector<16x16x8xf32>
    %c0_31 = arith.constant 0 : index
    %c0_32 = arith.constant 0 : index
    %c0_33 = arith.constant 0 : index
    %c0_34 = arith.constant 0 : index
    %95 = vector.load %arg4[%c0_31, %c0_32, %c0_33, %c0_34] : memref<1x16x16x8xf32, #tpu.memory_space<vmem>>, vector<1x16x16x8xf32>
    %96 = vector.shape_cast %95 : vector<1x16x16x8xf32> to vector<16x16x8xf32>
    %97 = vector.shape_cast %94 : vector<16x16x8xf32> to vector<1x16x16x8xf32>
    tpu.vector_store %arg4[%c0_31, %c0_32, %c0_33, %c0_34], %97 {strides = array<i32>} : memref<1x16x16x8xf32, #tpu.memory_space<vmem>>, vector<1x16x16x8xf32>,
    return
  }
  func.func @transform_0(%arg0: i32) -> (i32, i32, i32, i32) {
    %c0_i32 = arith.constant 0 : i32
    %c0_i32_0 = arith.constant 0 : i32
    %c0_i32_1 = arith.constant 0 : i32
    %c0_i32_2 = arith.constant 0 : i32
    return %arg0, %c0_i32, %c0_i32_0, %c0_i32_1 : i32, i32, i32, i32
  }
  func.func @transform_1(%arg0: i32) -> (i32, i32) {
    %c0_i32 = arith.constant 0 : i32
    %c0_i32_0 = arith.constant 0 : i32
    %c0_i32_1 = arith.constant 0 : i32
    return %c0_i32, %c0_i32_0 : i32, i32
  }
  func.func @transform_2(%arg0: i32) -> (i32, i32) {
    %c0_i32 = arith.constant 0 : i32
    %c0_i32_0 = arith.constant 0 : i32
    %c0_i32_1 = arith.constant 0 : i32
    return %c0_i32, %c0_i32_0 : i32, i32
  }
  func.func @transform_3(%arg0: i32) -> (i32, i32, i32, i32) {
    %c0_i32 = arith.constant 0 : i32
    %c0_i32_0 = arith.constant 0 : i32
    %c0_i32_1 = arith.constant 0 : i32
    %c0_i32_2 = arith.constant 0 : i32
    return %arg0, %c0_i32, %c0_i32_0, %c0_i32_1 : i32, i32, i32, i32
  }
}

module attributes {stable_mosaic.version = 11 : i64} {
  func.func @_cv1_kernel(%arg0: i32, %arg1: i32, %arg2: i32, %arg3: memref<1x4x256xf32, #tpu.memory_space<vmem>>, %arg4: memref<4x2xbf16, #tpu.memory_space<vmem>>, %arg5: memref<1x2xf32, #tpu.memory_space<vmem>>, %arg6: memref<1x256x2xbf16, #tpu.memory_space<vmem>>) attributes {dimension_semantics = [#tpu.dimension_semantics<parallel>, #tpu.dimension_semantics<parallel>, #tpu.dimension_semantics<parallel>], iteration_bounds = array<i64: 2, 1, 1>, scalar_prefetch = 0 : i64, scratch_operands = 0 : i64, tpu.core_type = #tpu.core_type<tc>, window_params = [{transform_indices = @transform_0, window_bounds = array<i64: 1, 4, 256>}, {transform_indices = @transform_1, window_bounds = array<i64: 4, 2>}, {transform_indices = @transform_2, window_bounds = array<i64: 1, 2>}, {transform_indices = @transform_3, window_bounds = array<i64: 1, 256, 2>}]} {
    %c0 = arith.constant 0 : index
    %c0_0 = arith.constant 0 : index
    %c0_1 = arith.constant 0 : index
    %0 = vector.load %arg3[%c0, %c0_0, %c0_1] : memref<1x4x256xf32, #tpu.memory_space<vmem>>, vector<1x4x256xf32>
    %1 = vector.shape_cast %0 : vector<1x4x256xf32> to vector<4x256xf32>
    %2 = arith.truncf %1 : vector<4x256xf32> to vector<4x256xbf16>
    %c0_2 = arith.constant 0 : index
    %c0_3 = arith.constant 0 : index
    %3 = vector.load %arg4[%c0_2, %c0_3] : memref<4x2xbf16, #tpu.memory_space<vmem>>, vector<4x2xbf16>
    %cst = arith.constant dense<0.000000e+00> : vector<256x2xf32>
    %4 = tpu.matmul %2, %3, %cst {dimension_numbers = #tpu.dot_dimension_numbers<[0], [0], [1], [1], [0, 1, 1, 1], [], []>} : vector<4x256xbf16>, vector<4x2xbf16>, vector<256x2xf32> -> vector<256x2xf32>
    %c0_4 = arith.constant 0 : index
    %c0_5 = arith.constant 0 : index
    %5 = vector.load %arg5[%c0_4, %c0_5] : memref<1x2xf32, #tpu.memory_space<vmem>>, vector<1x2xf32>
    %6 = vector.broadcast %5 : vector<1x2xf32> to vector<256x2xf32>
    %7 = arith.addf %4, %6 : vector<256x2xf32>
    %8 = arith.negf %7 : vector<256x2xf32>
    %9 = math.exp %8 : vector<256x2xf32>
    %cst_6 = arith.constant 1.000000e+00 : f32
    %10 = vector.broadcast %cst_6 : f32 to vector<256x2xf32>
    %11 = arith.addf %10, %9 : vector<256x2xf32>
    %12 = arith.divf %10, %11 : vector<256x2xf32>
    %13 = arith.mulf %7, %12 : vector<256x2xf32>
    %14 = arith.truncf %13 : vector<256x2xf32> to vector<256x2xbf16>
    %c0_7 = arith.constant 0 : index
    %c0_8 = arith.constant 0 : index
    %c0_9 = arith.constant 0 : index
    %15 = vector.load %arg6[%c0_7, %c0_8, %c0_9] : memref<1x256x2xbf16, #tpu.memory_space<vmem>>, vector<1x256x2xbf16>
    %16 = vector.shape_cast %15 : vector<1x256x2xbf16> to vector<256x2xbf16>
    %17 = vector.shape_cast %14 : vector<256x2xbf16> to vector<1x256x2xbf16>
    tpu.vector_store %arg6[%c0_7, %c0_8, %c0_9], %17 {strides = array<i32>} : memref<1x256x2xbf16, #tpu.memory_space<vmem>>, vector<1x256x2xbf16>,
    return
  }
  func.func @transform_0(%arg0: i32, %arg1: i32, %arg2: i32) -> (i32, i32, i32) {
    %c0_i32 = arith.constant 0 : i32
    %c0_i32_0 = arith.constant 0 : i32
    return %arg0, %c0_i32, %arg1 : i32, i32, i32
  }
  func.func @transform_1(%arg0: i32, %arg1: i32, %arg2: i32) -> (i32, i32) {
    %c0_i32 = arith.constant 0 : i32
    %c0_i32_0 = arith.constant 0 : i32
    return %c0_i32, %arg2 : i32, i32
  }
  func.func @transform_2(%arg0: i32, %arg1: i32, %arg2: i32) -> (i32, i32) {
    %c0_i32 = arith.constant 0 : i32
    %c0_i32_0 = arith.constant 0 : i32
    return %c0_i32, %arg2 : i32, i32
  }
  func.func @transform_3(%arg0: i32, %arg1: i32, %arg2: i32) -> (i32, i32, i32) {
    %c0_i32 = arith.constant 0 : i32
    return %arg0, %arg1, %arg2 : i32, i32, i32
  }
}

</mosaic_0001>

<llo_original>
// kernel: sppf_forward.2
$region0: #{sppf_forward.2}
  #allocation0 [shape = 'u32[]', space=smem, size = 0x4, offset = 0x4, fixed_abs, tag = 'smem constant byte address 0x4 - core index']
  #allocation1 [shape = 'u32[144,128]{1,0:T(1,128)}', space=vmem, size = 0x12000, scoped, tag = 'internal scratch']
  %s0 = inlined_call_operand.vmem [shape: f32[2,4,256], index: 0, kind: input, shape index: {}]
  %s1 = inlined_call_operand.vmem [shape: bf16[4,2], index: 1, kind: input, shape index: {}]
  %s2 = inlined_call_operand.vmem [shape: f32[1,2], index: 2, kind: input, shape index: {}]
  %s3 = inlined_call_operand.vmem [shape: bf16[2,256,2], index: 3, kind: output, shape index: {}]
  %s4 = sld [smem:[#allocation0]]
  $region45: #{sppf_forward.2} parent=0
    _
  %s6 = ssub.s32 1, %s4
  %s7 = scalar_select 0, %s6, %s4
  loop: start=0, step=1, limit=4
  $region2: #{sppf_forward.2} parent=0 // loop_pre_header
    _
  $region3: #{sppf_forward.2} parent=0 // loop_header
    %s9 = sphi 0, %s13
    %p10 = scmp.ge.s32.totalorder %s9, 4
    %s16 = sphi 0, %s35
    %s17 = sphi 0, %s31
    %s18 = sphi 0, %s27
    %s19 = sphi 0, %s16
    %s20 = sphi 0, %s17
    %s21 = sphi 0, %s18
    %s22 = sphi 0, %s19
    %s23 = sphi 0, %s20
    %s24 = sphi 0, %s21
    %s40 = sphi 0, %s42
    %s43 = sphi 0, %s40
    %s44 = sphi 0, %s43
    %s60 = sphi 0, %s44
    %s66 = sphi 0, %s68
    %s69 = sphi 0, %s66
    %s70 = sphi 0, %s69
    %s86 = sphi 0, %s70
    %s92 = sphi 0, %s94
    %s95 = sphi 0, %s92
    %s96 = sphi 0, %s95
    %s112 = sphi 0, %s96
    %s122 = sphi 0, %s124
    %s125 = sphi 0, %s122
    %s126 = sphi 0, %s125
    %s142 = sphi 0, %s126
  $region4: #{sppf_forward.2} parent=0 // loop_header_branch
    %12 = sbr.rel (%p10) target = $region8
  $region5: #{sppf_forward.2} parent=0 // loop_body
    %s14 = ssub.s32 %s9, 1
    %s15 = ssub.s32 %s9, 2
    %s25 = sadd.s32 1, %s18
    %p26 = scmp.ge.s32.totalorder %s25, 1
    %s27 = scalar_select %p26, 0, %s25
    %s28 = sadd.s32 1, %s17
    %s29 = scalar_select %p26, %s28, %s17
    %p30 = scmp.ge.s32.totalorder %s29, 1
    %s31 = scalar_select %p30, 0, %s29
    %s32 = sadd.s32 1, %s16
    %s33 = scalar_select %p30, %s32, %s16
    %p34 = scmp.ge.s32.totalorder %s33, 2
    %s35 = scalar_select %p34, 0, %s33
    %s36 = ssub.s32 %s16, %s35
    %s37 = ssub.s32 %s17, %s31
    %s38 = sor.u32 %s36, %s37
    %p39 = scmp.eq.s32.totalorder %s38, 0
    %s41 = sadd.s32 %s40, 1
    %s42 = scalar_select %p39, %s40, %s41
    %p45 = pneg %p39
    %p46 = scmp.eq.s32.totalorder %s9, 1
    %p47 = por %p45, %p46
    %p48 = scmp.ne.s32.totalorder %s40, %s43
    %p49 = scmp.eq.s32.totalorder %s9, 0
    %p50 = por %p48, %p49
    %p51 = scmp.ne.s32.totalorder %s40, %s43
    %p52 = scmp.eq.s32.totalorder %s14, 1
    %p53 = por %p51, %p52
    %p54 = scmp.ne.s32.totalorder %s43, %s44
    %p55 = scmp.eq.s32.totalorder %s14, 0
    %p56 = por %p54, %p55
    %p57 = scmp.ne.s32.totalorder %s43, %s44
    %p58 = scmp.eq.s32.totalorder %s15, 1
    %p59 = por %p57, %p58
    %p61 = scmp.ne.s32.totalorder %s44, %s60
    %p62 = scmp.eq.s32.totalorder %s15, 0
    %p63 = por %p61, %p62
    %s64 = ssub.s32 %s18, %s27
    %p65 = scmp.eq.s32.totalorder %s64, 0
    %s67 = sadd.s32 %s66, 1
    %s68 = scalar_select %p65, %s66, %s67
    %p71 = pneg %p65
    %p72 = scmp.eq.s32.totalorder %s9, 1
    %p73 = por %p71, %p72
    %p74 = scmp.ne.s32.totalorder %s66, %s69
    %p75 = scmp.eq.s32.totalorder %s9, 0
    %p76 = por %p74, %p75
    %p77 = scmp.ne.s32.totalorder %s66, %s69
    %p78 = scmp.eq.s32.totalorder %s14, 1
    %p79 = por %p77, %p78
    %p80 = scmp.ne.s32.totalorder %s69, %s70
    %p81 = scmp.eq.s32.totalorder %s14, 0
    %p82 = por %p80, %p81
    %p83 = scmp.ne.s32.totalorder %s69, %s70
    %p84 = scmp.eq.s32.totalorder %s15, 1
    %p85 = por %p83, %p84
    %p87 = scmp.ne.s32.totalorder %s70, %s86
    %p88 = scmp.eq.s32.totalorder %s15, 0
    %p89 = por %p87, %p88
    %s90 = ssub.s32 %s18, %s27
    %p91 = scmp.eq.s32.totalorder %s90, 0
    %s93 = sadd.s32 %s92, 1
    %s94 = scalar_select %p91, %s92, %s93
    %p97 = pneg %p91
    %p98 = scmp.eq.s32.totalorder %s9, 1
    %p99 = por %p97, %p98
    %p100 = scmp.ne.s32.totalorder %s92, %s95
    %p101 = scmp.eq.s32.totalorder %s9, 0
    %p102 = por %p100, %p101
    %p103 = scmp.ne.s32.totalorder %s92, %s95
    %p104 = scmp.eq.s32.totalorder %s14, 1
    %p105 = por %p103, %p104
    %p106 = scmp.ne.s32.totalorder %s95, %s96
    %p107 = scmp.eq.s32.totalorder %s14, 0
    %p108 = por %p106, %p107
    %p109 = scmp.ne.s32.totalorder %s95, %s96
    %p110 = scmp.eq.s32.totalorder %s15, 1
    %p111 = por %p109, %p110
    %p113 = scmp.ne.s32.totalorder %s96, %s112
    %p114 = scmp.eq.s32.totalorder %s15, 0
    %p115 = por %p113, %p114
    %s116 = ssub.s32 %s16, %s35
    %s117 = ssub.s32 %s17, %s31
    %s118 = sor.u32 %s116, %s117
    %s119 = ssub.s32 %s18, %s27
    %s120 = sor.u32 %s118, %s119
    %p121 = scmp.eq.s32.totalorder %s120, 0
    %s123 = sadd.s32 %s122, 1
    %s124 = scalar_select %p121, %s122, %s123
    %p127 = pneg %p121
    %p128 = scmp.eq.s32.totalorder %s9, 1
    %p129 = por %p127, %p128
    %p130 = scmp.ne.s32.totalorder %s122, %s125
    %p131 = scmp.eq.s32.totalorder %s9, 0
    %p132 = por %p130, %p131
    %p133 = scmp.ne.s32.totalorder %s122, %s125
    %p134 = scmp.eq.s32.totalorder %s14, 1
    %p135 = por %p133, %p134
    %p136 = scmp.ne.s32.totalorder %s125, %s126
    %p137 = scmp.eq.s32.totalorder %s14, 0
    %p138 = por %p136, %p137
    %p139 = scmp.ne.s32.totalorder %s125, %s126
    %p140 = scmp.eq.s32.totalorder %s15, 1
    %p141 = por %p139, %p140
    %p143 = scmp.ne.s32.totalorder %s126, %s142
    %p144 = scmp.eq.s32.totalorder %s15, 0
    %p145 = por %p143, %p144
    %p146 = scmp.le.s32.totalorder 1, %s9
    %p147 = scmp.lt.s32.totalorder %s9, 3
    %p148 = pnand %p146, %p147
    %p149 = pneg %p148
    // Predicated region
    $region9: #{sppf_forward.2} parent=5 // pred_check
      _
    $region10: #{sppf_forward.2} parent=5 // pred_check_branch
      %151 = sbr.rel (%p148) target = $region12
    $region11: #{sppf_forward.2} parent=5 // pred_region
      %s152 = ssub.s32 %s9, 1
      // Predicated region
      $region13: #{sppf_forward.2} parent=11 // pred_check
        %p153 = pneg %p82
      $region14: #{sppf_forward.2} parent=11 // pred_check_branch
        %155 = sbr.rel (%p153) target = $region16
      $region15: #{sppf_forward.2} parent=11 // pred_region
        %p156 = scmp.lt.s32.totalorder %s21, 0
        %s157 = scalar_select %p156, %s21, 0
        %s158 = smul.addr %s157, 2
        %s159 = scalar_lea.vmem %s1, %s158
      $region16: #{sppf_forward.2} parent=11 // pred_fallthru
        _
      // Predicated region
      $region17: #{sppf_forward.2} parent=11 // pred_check
        %p160 = pneg %p108
      $region18: #{sppf_forward.2} parent=11 // pred_check_branch
        %162 = sbr.rel (%p160) target = $region20
      $region19: #{sppf_forward.2} parent=11 // pred_region
        %p163 = scmp.lt.s32.totalorder %s21, 0
        %s164 = scalar_select %p163, %s21, 0
        %s165 = scalar_lea.vmem %s2, %s164
      $region20: #{sppf_forward.2} parent=11 // pred_fallthru
        _
    $region12: #{sppf_forward.2} parent=5 // pred_fallthru
      _
    %p166 = scmp.lt.s32.totalorder %s9, 2
    // Predicated region
    $region21: #{sppf_forward.2} parent=5 // pred_check
      %p167 = pneg %p166
    $region22: #{sppf_forward.2} parent=5 // pred_check_branch
      %169 = sbr.rel (%p167) target = $region24
    $region23: #{sppf_forward.2} parent=5 // pred_region
      // Predicated region
      $region25: #{sppf_forward.2} parent=23 // pred_check
        %p170 = pneg %p50
      $region26: #{sppf_forward.2} parent=23 // pred_check_branch
        %172 = sbr.rel (%p170) target = $region28
      $region27: #{sppf_forward.2} parent=23 // pred_region
        %s173 = smul.u32 2, %s17
        %p174 = scmp.lt.s32.totalorder %s16, 1
        %s175 = scalar_select %p174, %s16, 1
        %p176 = scmp.lt.s32.totalorder %s173, 1
        %s177 = scalar_select %p176, %s173, 1
        %s178 = smul.addr %s175, 2
        %s179 = sadd.s32 %s177, %s178
        %s180 = smul.addr %s179, 4
        %s181 = scalar_lea.vmem %s0, %s180
        %s182 = smul.u32 2, %s17
      $region28: #{sppf_forward.2} parent=23 // pred_fallthru
        _
    $region24: #{sppf_forward.2} parent=5 // pred_fallthru
      _
    %p183 = scmp.le.s32.totalorder 1, %s9
    %p184 = scmp.lt.s32.totalorder %s9, 3
    %p185 = pnand %p183, %p184
    %p186 = pneg %p185
    // Predicated region
    $region29: #{sppf_forward.2} parent=5 // pred_check
      _
    $region30: #{sppf_forward.2} parent=5 // pred_check_branch
      %188 = sbr.rel (%p185) target = $region32
    $region31: #{sppf_forward.2} parent=5 // pred_region
      %s189 = ssub.s32 %s9, 1
      %s190 = smul.u32 2, %s20
      %p191 = scmp.lt.s32.totalorder %s19, 1
      %s192 = scalar_select %p191, %s19, 1
      %p193 = scmp.lt.s32.totalorder %s190, 1
      %s194 = scalar_select %p193, %s190, 1
      %s195 = smul.addr %s192, 2
      %s196 = sadd.s32 %s194, %s195
      %s197 = smul.addr %s196, 4
      %s198 = scalar_lea.vmem %s0, %s197
      %p199 = pneg %p56
      %p200 = pneg %p53
      %p201 = scmp.lt.s32.totalorder %s21, 0
      %s202 = scalar_select %p201, %s21, 0
      %s203 = smul.addr %s202, 2
      %s204 = scalar_lea.vmem %s1, %s203
      %p205 = pneg %p82
      %p206 = pneg %p79
      %p207 = scmp.lt.s32.totalorder %s21, 0
      %s208 = scalar_select %p207, %s21, 0
      %s209 = scalar_lea.vmem %s2, %s208
      %p210 = pneg %p108
      %p211 = pneg %p105
      %p212 = pneg %p138
      %p213 = pneg %p135
      %s214 = smul.u32 32, %s20
      %p215 = scmp.lt.s32.totalorder %s19, 1
      %s216 = scalar_select %p215, %s19, 1
      %p217 = scmp.lt.s32.totalorder %s214, 31
      %s218 = scalar_select %p217, %s214, 31
      %p219 = scmp.lt.s32.totalorder %s21, 0
      %s220 = scalar_select %p219, %s21, 0
      %s221 = sadd.s32 %s220, %s218
      %s222 = smul.addr %s216, 32
      %s223 = sadd.s32 %s221, %s222
      %s224 = smul.addr %s223, 4
      %s225 = scalar_lea.vmem %s3, %s224
      %s226 = smul.u32 2, %s20
      %p227 = scmp.lt.s32.totalorder %s19, 1
      %s228 = scalar_select %p227, %s19, 1
      %p229 = scmp.lt.s32.totalorder %s226, 1
      %s230 = scalar_select %p229, %s226, 1
      %s231 = smul.addr %s228, 2
      %s232 = sadd.s32 %s230, %s231
      %s233 = smul.addr %s232, 4
      %s234 = scalar_lea.vmem %s0, %s233
      %s235 = smul.u32 2, %s20
      %p236 = scmp.lt.s32.totalorder %s21, 0
      %s237 = scalar_select %p236, %s21, 0
      %s238 = smul.addr %s237, 2
      %s239 = scalar_lea.vmem %s1, %s238
      %p240 = scmp.lt.s32.totalorder %s21, 0
      %s241 = scalar_select %p240, %s21, 0
      %s242 = scalar_lea.vmem %s2, %s241
      %s243 = smul.u32 32, %s20
      %p244 = scmp.lt.s32.totalorder %s19, 1
      %s245 = scalar_select %p244, %s19, 1
      %p246 = scmp.lt.s32.totalorder %s243, 31
      %s247 = scalar_select %p246, %s243, 31
      %p248 = scmp.lt.s32.totalorder %s21, 0
      %s249 = scalar_select %p248, %s21, 0
      %s250 = sadd.s32 %s249, %s247
      %s251 = smul.addr %s245, 32
      %s252 = sadd.s32 %s250, %s251
      %s253 = smul.addr %s252, 4
      %s254 = scalar_lea.vmem %s3, %s253
      %s255 = smul.u32 32, %s20
      %v257 = vld [vmem:[%s234] sm:$0xff]
      %v259 = vcombine.high %v257, %v257
      %v261 = vpack.c.bf16 %v257, %v257
      %v262 = vpack.c.bf16 %v259, %v259
      %v263 = vld [vmem:[%s239] sm:$0x3]
      %v264 = vld [vmem:[%s242] sm:$0x1]
      %v266 = vlaneseq
      %v267 = vshrl.u32 %v266, 7
      %v268 = vsub.s32 0, %v267
      %v269 = vrot.slane %v264, %v268
      %271 = vxpose.xlu0.c.b16.start [1/8] %v261, 128
      %272 = vxpose.xlu0.c.b16.cont [2/8] 0, 128
      %273 = vxpose.xlu0.c.b16.cont [3/8] 0, 128
      %274 = vxpose.xlu0.c.b16.cont [4/8] 0, 128
      %275 = vxpose.xlu0.c.b16.cont [5/8] 0, 128
      %276 = vxpose.xlu0.c.b16.cont [6/8] 0, 128
      %277 = vxpose.xlu0.c.b16.cont [7/8] 0, 128
      %278 = vxpose.xlu0.c.b16.end [8/8] 0, 128
      %v279 = vpop.trf.xlu0
      %v280 = vpop.trf.xlu0
      %v281 = vpop.trf.xlu0
      %v282 = vpop.trf.xlu0
      %v283 = vpop.trf.xlu0
      %v284 = vpop.trf.xlu0
      %v285 = vpop.trf.xlu0
      %v286 = vpop.trf.xlu0
      %287 = vxpose.xlu0.c.b16.start [1/8] %v262, 128
      %288 = vxpose.xlu0.c.b16.cont [2/8] 0, 128
      %289 = vxpose.xlu0.c.b16.cont [3/8] 0, 128
      %290 = vxpose.xlu0.c.b16.cont [4/8] 0, 128
      %291 = vxpose.xlu0.c.b16.cont [5/8] 0, 128
      %292 = vxpose.xlu0.c.b16.cont [6/8] 0, 128
      %293 = vxpose.xlu0.c.b16.cont [7/8] 0, 128
      %294 = vxpose.xlu0.c.b16.end [8/8] 0, 128
      %v295 = vpop.trf.xlu0
      %v296 = vpop.trf.xlu0
      %v297 = vpop.trf.xlu0
      %v298 = vpop.trf.xlu0
      %v299 = vpop.trf.xlu0
      %v300 = vpop.trf.xlu0
      %v301 = vpop.trf.xlu0
      %v302 = vpop.trf.xlu0
      %vm303 = vcmask 31744
      %v305 = vsel %vm303, %v279, 0
      %v308 = vsel %vm303, %v280, 0
      %v311 = vsel %vm303, %v281, 0
      %v314 = vsel %vm303, %v282, 0
      %v317 = vsel %vm303, %v283, 0
      %v320 = vsel %vm303, %v284, 0
      %v323 = vsel %vm303, %v285, 0
      %v326 = vsel %vm303, %v286, 0
      %v329 = vsel %vm303, %v295, 0
      %v332 = vsel %vm303, %v296, 0
      %v335 = vsel %vm303, %v297, 0
      %v338 = vsel %vm303, %v298, 0
      %v341 = vsel %vm303, %v299, 0
      %v344 = vsel %vm303, %v300, 0
      %v347 = vsel %vm303, %v301, 0
      %v350 = vsel %vm303, %v302, 0
      %vm352 = vcmask 1041408
      %v354 = vsel %vm352, %v263, 0
      %356 = vmatprep.subr.bf16.mxu0 0
      %357 = vmatpush1.bf16.msra.mxu0 %v354
      %358 = vmatprep.subr.bf16.mxu0 0
      %359 = vmatpush1.bf16.msra.mxu0 0
      %360 = vmatprep.subr.bf16.mxu0 0
      %361 = vmatpush1.bf16.msra.mxu0 0
      %362 = vmatprep.subr.bf16.mxu0 0
      %363 = vmatpush1.bf16.msra.mxu0 0
      %364 = vmatprep.subr.bf16.mxu0 0
      %365 = vmatpush1.bf16.msra.mxu0 0
      %366 = vmatprep.subr.bf16.mxu0 0
      %367 = vmatpush1.bf16.msra.mxu0 0
      %368 = vmatprep.subr.bf16.mxu0 0
      %369 = vmatpush1.bf16.msra.mxu0 0
      %370 = vmatprep.subr.bf16.mxu0 0
      %371 = vmatpush1.bf16.msra.mxu0 0
      %372 = vmatprep.subr.bf16.mxu0 0
      %373 = vmatpush1.bf16.msra.mxu0 0
      %374 = vmatprep.subr.bf16.mxu0 0
      %375 = vmatpush1.bf16.msra.mxu0 0
      %376 = vmatprep.subr.bf16.mxu0 0
      %377 = vmatpush1.bf16.msra.mxu0 0
      %378 = vmatprep.subr.bf16.mxu0 0
      %379 = vmatpush1.bf16.msra.mxu0 0
      %380 = vmatprep.subr.bf16.mxu0 0
      %381 = vmatpush1.bf16.msra.mxu0 0
      %382 = vmatprep.subr.bf16.mxu0 0
      %383 = vmatpush1.bf16.msra.mxu0 0
      %384 = vmatprep.subr.bf16.mxu0 0
      %385 = vmatpush1.bf16.msra.mxu0 0
      %386 = vmatprep.subr.bf16.mxu0 0
      %387 = vmatpush1.bf16.msra.mxu0 0
      %388 = vmatprep.mubr.bf16.mxu0 0
      %389 = vmatmul.mubr.bf16.gmra.mrb[0].mxu0 %v305
      %v390 = vpop.f32.mrb[0].mxu0
      %v391 = vadd.f32 %v269, %v390
      %v392 = vpop.f32.mrb[0].mxu0
      %v393 = vpop.f32.mrb[0].mxu0
      %v394 = vadd.f32 %v269, %v393
      %v395 = vpop.f32.mrb[0].mxu0
      %396 = vmatprep.mubr.bf16.mxu0 0
      %397 = vmatmul.mubr.bf16.gmra.mrb[0].mxu0 %v308
      %v398 = vpop.f32.mrb[0].mxu0
      %v399 = vadd.f32 %v269, %v398
      %v400 = vpop.f32.mrb[0].mxu0
      %v401 = vpop.f32.mrb[0].mxu0
      %v402 = vadd.f32 %v269, %v401
      %v403 = vpop.f32.mrb[0].mxu0
      %404 = vmatprep.mubr.bf16.mxu0 0
      %405 = vmatmul.mubr.bf16.gmra.mrb[0].mxu0 %v311
      %v406 = vpop.f32.mrb[0].mxu0
      %v407 = vadd.f32 %v269, %v406
      %v408 = vpop.f32.mrb[0].mxu0
      %v409 = vpop.f32.mrb[0].mxu0
      %v410 = vadd.f32 %v269, %v409
      %v411 = vpop.f32.mrb[0].mxu0
      %412 = vmatprep.mubr.bf16.mxu0 0
      %413 = vmatmul.mubr.bf16.gmra.mrb[0].mxu0 %v314
      %v414 = vpop.f32.mrb[0].mxu0
      %v415 = vadd.f32 %v269, %v414
      %v416 = vpop.f32.mrb[0].mxu0
      %v417 = vpop.f32.mrb[0].mxu0
      %v418 = vadd.f32 %v269, %v417
      %v419 = vpop.f32.mrb[0].mxu0
      %420 = vmatprep.mubr.bf16.mxu0 0
      %421 = vmatmul.mubr.bf16.gmra.mrb[0].mxu0 %v317
      %v422 = vpop.f32.mrb[0].mxu0
      %v423 = vadd.f32 %v269, %v422
      %v424 = vpop.f32.mrb[0].mxu0
      %v425 = vpop.f32.mrb[0].mxu0
      %v426 = vadd.f32 %v269, %v425
      %v427 = vpop.f32.mrb[0].mxu0
      %428 = vmatprep.mubr.bf16.mxu0 0
      %429 = vmatmul.mubr.bf16.gmra.mrb[0].mxu0 %v320
      %v430 = vpop.f32.mrb[0].mxu0
      %v431 = vadd.f32 %v269, %v430
      %v432 = vpop.f32.mrb[0].mxu0
      %v433 = vpop.f32.mrb[0].mxu0
      %v434 = vadd.f32 %v269, %v433
      %v435 = vpop.f32.mrb[0].mxu0
      %436 = vmatprep.mubr.bf16.mxu0 0
      %437 = vmatmul.mubr.bf16.gmra.mrb[0].mxu0 %v323
      %v438 = vpop.f32.mrb[0].mxu0
      %v439 = vadd.f32 %v269, %v438
      %v440 = vpop.f32.mrb[0].mxu0
      %v441 = vpop.f32.mrb[0].mxu0
      %v442 = vadd.f32 %v269, %v441
      %v443 = vpop.f32.mrb[0].mxu0
      %444 = vmatprep.mubr.bf16.mxu0 0
      %445 = vmatmul.mubr.bf16.gmra.mrb[0].mxu0 %v326
      %v446 = vpop.f32.mrb[0].mxu0
      %v447 = vadd.f32 %v269, %v446
      %v448 = vpop.f32.mrb[0].mxu0
      %v449 = vpop.f32.mrb[0].mxu0
      %v450 = vadd.f32 %v269, %v449
      %v451 = vpop.f32.mrb[0].mxu0
      %452 = vmatprep.mubr.bf16.mxu0 0
      %453 = vmatmul.mubr.bf16.gmra.mrb[0].mxu0 %v329
      %v454 = vpop.f32.mrb[0].mxu0
      %v455 = vadd.f32 %v269, %v454
      %v456 = vpop.f32.mrb[0].mxu0
      %v457 = vpop.f32.mrb[0].mxu0
      %v458 = vadd.f32 %v269, %v457
      %v459 = vpop.f32.mrb[0].mxu0
      %460 = vmatprep.mubr.bf16.mxu0 0
      %461 = vmatmul.mubr.bf16.gmra.mrb[0].mxu0 %v332
      %v462 = vpop.f32.mrb[0].mxu0
      %v463 = vadd.f32 %v269, %v462
      %v464 = vpop.f32.mrb[0].mxu0
      %v465 = vpop.f32.mrb[0].mxu0
      %v466 = vadd.f32 %v269, %v465
      %v467 = vpop.f32.mrb[0].mxu0
      %468 = vmatprep.mubr.bf16.mxu0 0
      %469 = vmatmul.mubr.bf16.gmra.mrb[0].mxu0 %v335
      %v470 = vpop.f32.mrb[0].mxu0
      %v471 = vadd.f32 %v269, %v470
      %v472 = vpop.f32.mrb[0].mxu0
      %v473 = vpop.f32.mrb[0].mxu0
      %v474 = vadd.f32 %v269, %v473
      %v475 = vpop.f32.mrb[0].mxu0
      %476 = vmatprep.mubr.bf16.mxu0 0
      %477 = vmatmul.mubr.bf16.gmra.mrb[0].mxu0 %v338
      %v478 = vpop.f32.mrb[0].mxu0
      %v479 = vadd.f32 %v269, %v478
      %v480 = vpop.f32.mrb[0].mxu0
      %v481 = vpop.f32.mrb[0].mxu0
      %v482 = vadd.f32 %v269, %v481
      %v483 = vpop.f32.mrb[0].mxu0
      %484 = vmatprep.mubr.bf16.mxu0 0
      %485 = vmatmul.mubr.bf16.gmra.mrb[0].mxu0 %v341
      %v486 = vpop.f32.mrb[0].mxu0
      %v487 = vadd.f32 %v269, %v486
      %v488 = vpop.f32.mrb[0].mxu0
      %v489 = vpop.f32.mrb[0].mxu0
      %v490 = vadd.f32 %v269, %v489
      %v491 = vpop.f32.mrb[0].mxu0
      %492 = vmatprep.mubr.bf16.mxu0 0
      %493 = vmatmul.mubr.bf16.gmra.mrb[0].mxu0 %v344
      %v494 = vpop.f32.mrb[0].mxu0
      %v495 = vadd.f32 %v269, %v494
      %v496 = vpop.f32.mrb[0].mxu0
      %v497 = vpop.f32.mrb[0].mxu0
      %v498 = vadd.f32 %v269, %v497
      %v499 = vpop.f32.mrb[0].mxu0
      %500 = vmatprep.mubr.bf16.mxu0 0
      %501 = vmatmul.mubr.bf16.gmra.mrb[0].mxu0 %v347
      %v502 = vpop.f32.mrb[0].mxu0
      %v503 = vadd.f32 %v269, %v502
      %v504 = vpop.f32.mrb[0].mxu0
      %v505 = vpop.f32.mrb[0].mxu0
      %v506 = vadd.f32 %v269, %v505
      %v507 = vpop.f32.mrb[0].mxu0
      %508 = vmatprep.mubr.bf16.mxu0 0
      %509 = vmatmul.mubr.bf16.gmra.mrb[0].mxu0 %v350
      %v510 = vpop.f32.mrb[0].mxu0
      %v511 = vadd.f32 %v269, %v510
      %v512 = vpop.f32.mrb[0].mxu0
      %v513 = vpop.f32.mrb[0].mxu0
      %v514 = vadd.f32 %v269, %v513
      %v515 = vpop.f32.mrb[0].mxu0
      %516 = vdwg.mxu0
      %v517 = vxor.u32 %v391, 2147483648
      %v518 = vxor.u32 %v394, 2147483648
      %v519 = vxor.u32 %v399, 2147483648
      %v520 = vxor.u32 %v402, 2147483648
      %v521 = vxor.u32 %v407, 2147483648
      %v522 = vxor.u32 %v410, 2147483648
      %v523 = vxor.u32 %v415, 2147483648
      %v524 = vxor.u32 %v418, 2147483648
      %v525 = vxor.u32 %v423, 2147483648
      %v526 = vxor.u32 %v426, 2147483648
      %v527 = vxor.u32 %v431, 2147483648
      %v528 = vxor.u32 %v434, 2147483648
      %v529 = vxor.u32 %v439, 2147483648
      %v530 = vxor.u32 %v442, 2147483648
      %v531 = vxor.u32 %v447, 2147483648
      %v532 = vxor.u32 %v450, 2147483648
      %v533 = vxor.u32 %v455, 2147483648
      %v534 = vxor.u32 %v458, 2147483648
      %v535 = vxor.u32 %v463, 2147483648
      %v536 = vxor.u32 %v466, 2147483648
      %v537 = vxor.u32 %v471, 2147483648
      %v538 = vxor.u32 %v474, 2147483648
      %v539 = vxor.u32 %v479, 2147483648
      %v540 = vxor.u32 %v482, 2147483648
      %v541 = vxor.u32 %v487, 2147483648
      %v542 = vxor.u32 %v490, 2147483648
      %v543 = vxor.u32 %v495, 2147483648
      %v544 = vxor.u32 %v498, 2147483648
      %v545 = vxor.u32 %v503, 2147483648
      %v546 = vxor.u32 %v506, 2147483648
      %v547 = vxor.u32 %v511, 2147483648
      %v548 = vxor.u32 %v514, 2147483648
      %v549 = vmul.f32 %v517, 1.442695
      %v550 = vpow.pop %v549
      %v551 = vmul.f32 %v518, 1.442695
      %v552 = vpow.pop %v551
      %v553 = vmul.f32 %v519, 1.442695
      %v554 = vpow.pop %v553
      %v555 = vmul.f32 %v520, 1.442695
      %v556 = vpow.pop %v555
      %v557 = vmul.f32 %v521, 1.442695
      %v558 = vpow.pop %v557
      %v559 = vmul.f32 %v522, 1.442695
      %v560 = vpow.pop %v559
      %v561 = vmul.f32 %v523, 1.442695
      %v562 = vpow.pop %v561
      %v563 = vmul.f32 %v524, 1.442695
      %v564 = vpow.pop %v563
      %v565 = vmul.f32 %v525, 1.442695
      %v566 = vpow.pop %v565
      %v567 = vmul.f32 %v526, 1.442695
      %v568 = vpow.pop %v567
      %v569 = vmul.f32 %v527, 1.442695
      %v570 = vpow.pop %v569
      %v571 = vmul.f32 %v528, 1.442695
      %v572 = vpow.pop %v571
      %v573 = vmul.f32 %v529, 1.442695
      %v574 = vpow.pop %v573
      %v575 = vmul.f32 %v530, 1.442695
      %v576 = vpow.pop %v575
      %v577 = vmul.f32 %v531, 1.442695
      %v578 = vpow.pop %v577
      %v579 = vmul.f32 %v532, 1.442695
      %v580 = vpow.pop %v579
      %v581 = vmul.f32 %v533, 1.442695
      %v582 = vpow.pop %v581
      %v583 = vmul.f32 %v534, 1.442695
      %v584 = vpow.pop %v583
      %v585 = vmul.f32 %v535, 1.442695
      %v586 = vpow.pop %v585
      %v587 = vmul.f32 %v536, 1.442695
      %v588 = vpow.pop %v587
      %v589 = vmul.f32 %v537, 1.442695
      %v590 = vpow.pop %v589
      %v591 = vmul.f32 %v538, 1.442695
      %v592 = vpow.pop %v591
      %v593 = vmul.f32 %v539, 1.442695
      %v594 = vpow.pop %v593
      %v595 = vmul.f32 %v540, 1.442695
      %v596 = vpow.pop %v595
      %v597 = vmul.f32 %v541, 1.442695
      %v598 = vpow.pop %v597
      %v599 = vmul.f32 %v542, 1.442695
      %v600 = vpow.pop %v599
      %v601 = vmul.f32 %v543, 1.442695
      %v602 = vpow.pop %v601
      %v603 = vmul.f32 %v544, 1.442695
      %v604 = vpow.pop %v603
      %v605 = vmul.f32 %v545, 1.442695
      %v606 = vpow.pop %v605
      %v607 = vmul.f32 %v546, 1.442695
      %v608 = vpow.pop %v607
      %v609 = vmul.f32 %v547, 1.442695
      %v610 = vpow.pop %v609
      %v611 = vmul.f32 %v548, 1.442695
      %v612 = vpow.pop %v611
      %v613 = vadd.f32 %v550, 1.0
      %v614 = vadd.f32 %v552, 1.0
      %v615 = vadd.f32 %v554, 1.0
      %v616 = vadd.f32 %v556, 1.0
      %v617 = vadd.f32 %v558, 1.0
      %v618 = vadd.f32 %v560, 1.0
      %v619 = vadd.f32 %v562, 1.0
      %v620 = vadd.f32 %v564, 1.0
      %v621 = vadd.f32 %v566, 1.0
      %v622 = vadd.f32 %v568, 1.0
      %v623 = vadd.f32 %v570, 1.0
      %v624 = vadd.f32 %v572, 1.0
      %v625 = vadd.f32 %v574, 1.0
      %v626 = vadd.f32 %v576, 1.0
      %v627 = vadd.f32 %v578, 1.0
      %v628 = vadd.f32 %v580, 1.0
      %v629 = vadd.f32 %v582, 1.0
      %v630 = vadd.f32 %v584, 1.0
      %v631 = vadd.f32 %v586, 1.0
      %v632 = vadd.f32 %v588, 1.0
      %v633 = vadd.f32 %v590, 1.0
      %v634 = vadd.f32 %v592, 1.0
      %v635 = vadd.f32 %v594, 1.0
      %v636 = vadd.f32 %v596, 1.0
      %v637 = vadd.f32 %v598, 1.0
      %v638 = vadd.f32 %v600, 1.0
      %v639 = vadd.f32 %v602, 1.0
      %v640 = vadd.f32 %v604, 1.0
      %v641 = vadd.f32 %v606, 1.0
      %v642 = vadd.f32 %v608, 1.0
      %v643 = vadd.f32 %v610, 1.0
      %v644 = vadd.f32 %v612, 1.0
      %v645 = vrcp.pop %v613
      %v646 = vmul.f32 1.0, %v645
      %v647 = vrcp.pop %v614
      %v648 = vmul.f32 1.0, %v647
      %v649 = vrcp.pop %v615
      %v650 = vmul.f32 1.0, %v649
      %v651 = vrcp.pop %v616
      %v652 = vmul.f32 1.0, %v651
      %v653 = vrcp.pop %v617
      %v654 = vmul.f32 1.0, %v653
      %v655 = vrcp.pop %v618
      %v656 = vmul.f32 1.0, %v655
      %v657 = vrcp.pop %v619
      %v658 = vmul.f32 1.0, %v657
      %v659 = vrcp.pop %v620
      %v660 = vmul.f32 1.0, %v659
      %v661 = vrcp.pop %v621
      %v662 = vmul.f32 1.0, %v661
      %v663 = vrcp.pop %v622
      %v664 = vmul.f32 1.0, %v663
      %v665 = vrcp.pop %v623
      %v666 = vmul.f32 1.0, %v665
      %v667 = vrcp.pop %v624
      %v668 = vmul.f32 1.0, %v667
      %v669 = vrcp.pop %v625
      %v670 = vmul.f32 1.0, %v669
      %v671 = vrcp.pop %v626
      %v672 = vmul.f32 1.0, %v671
      %v673 = vrcp.pop %v627
      %v674 = vmul.f32 1.0, %v673
      %v675 = vrcp.pop %v628
      %v676 = vmul.f32 1.0, %v675
      %v677 = vrcp.pop %v629
      %v678 = vmul.f32 1.0, %v677
      %v679 = vrcp.pop %v630
      %v680 = vmul.f32 1.0, %v679
      %v681 = vrcp.pop %v631
      %v682 = vmul.f32 1.0, %v681
      %v683 = vrcp.pop %v632
      %v684 = vmul.f32 1.0, %v683
      %v685 = vrcp.pop %v633
      %v686 = vmul.f32 1.0, %v685
      %v687 = vrcp.pop %v634
      %v688 = vmul.f32 1.0, %v687
      %v689 = vrcp.pop %v635
      %v690 = vmul.f32 1.0, %v689
      %v691 = vrcp.pop %v636
      %v692 = vmul.f32 1.0, %v691
      %v693 = vrcp.pop %v637
      %v694 = vmul.f32 1.0, %v693
      %v695 = vrcp.pop %v638
      %v696 = vmul.f32 1.0, %v695
      %v697 = vrcp.pop %v639
      %v698 = vmul.f32 1.0, %v697
      %v699 = vrcp.pop %v640
      %v700 = vmul.f32 1.0, %v699
      %v701 = vrcp.pop %v641
      %v702 = vmul.f32 1.0, %v701
      %v703 = vrcp.pop %v642
      %v704 = vmul.f32 1.0, %v703
      %v705 = vrcp.pop %v643
      %v706 = vmul.f32 1.0, %v705
      %v707 = vrcp.pop %v644
      %v708 = vmul.f32 1.0, %v707
      %v709 = vmul.f32 %v391, %v646
      %v710 = vmul.f32 %v394, %v648
      %v711 = vmul.f32 %v399, %v650
      %v712 = vmul.f32 %v402, %v652
      %v713 = vmul.f32 %v407, %v654
      %v714 = vmul.f32 %v410, %v656
      %v715 = vmul.f32 %v415, %v658
      %v716 = vmul.f32 %v418, %v660
      %v717 = vmul.f32 %v423, %v662
      %v718 = vmul.f32 %v426, %v664
      %v719 = vmul.f32 %v431, %v666
      %v720 = vmul.f32 %v434, %v668
      %v721 = vmul.f32 %v439, %v670
      %v722 = vmul.f32 %v442, %v672
      %v723 = vmul.f32 %v447, %v674
      %v724 = vmul.f32 %v450, %v676
      %v725 = vmul.f32 %v455, %v678
      %v726 = vmul.f32 %v458, %v680
      %v727 = vmul.f32 %v463, %v682
      %v728 = vmul.f32 %v466, %v684
      %v729 = vmul.f32 %v471, %v686
      %v730 = vmul.f32 %v474, %v688
      %v731 = vmul.f32 %v479, %v690
      %v732 = vmul.f32 %v482, %v692
      %v733 = vmul.f32 %v487, %v694
      %v734 = vmul.f32 %v490, %v696
      %v735 = vmul.f32 %v495, %v698
      %v736 = vmul.f32 %v498, %v700
      %v737 = vmul.f32 %v503, %v702
      %v738 = vmul.f32 %v506, %v704
      %v739 = vmul.f32 %v511, %v706
      %v740 = vmul.f32 %v514, %v708
      %v741 = vpack.c.bf16 %v710, %v709
      %v742 = vpack.c.bf16 %v712, %v711
      %v743 = vpack.c.bf16 %v714, %v713
      %v744 = vpack.c.bf16 %v716, %v715
      %v745 = vpack.c.bf16 %v718, %v717
      %v746 = vpack.c.bf16 %v720, %v719
      %v747 = vpack.c.bf16 %v722, %v721
      %v748 = vpack.c.bf16 %v724, %v723
      %v749 = vpack.c.bf16 %v726, %v725
      %v750 = vpack.c.bf16 %v728, %v727
      %v751 = vpack.c.bf16 %v730, %v729
      %v752 = vpack.c.bf16 %v732, %v731
      %v753 = vpack.c.bf16 %v734, %v733
      %v754 = vpack.c.bf16 %v736, %v735
      %v755 = vpack.c.bf16 %v738, %v737
      %v756 = vpack.c.bf16 %v740, %v739
      %v773 = vunpack.c.l.b16 %v741
      %v774 = vunpack.c.h.b16 %v741
      %v775 = vunpack.c.l.b16 %v742
      %v776 = vunpack.c.h.b16 %v742
      %v777 = vunpack.c.l.b16 %v743
      %v778 = vunpack.c.h.b16 %v743
      %v779 = vunpack.c.l.b16 %v744
      %v780 = vunpack.c.h.b16 %v744
      %v781 = vunpack.c.l.b16 %v745
      %v782 = vunpack.c.h.b16 %v745
      %v783 = vunpack.c.l.b16 %v746
      %v784 = vunpack.c.h.b16 %v746
      %v785 = vunpack.c.l.b16 %v747
      %v786 = vunpack.c.h.b16 %v747
      %v787 = vunpack.c.l.b16 %v748
      %v788 = vunpack.c.h.b16 %v748
      %v789 = vunpack.c.l.b16 %v749
      %v790 = vunpack.c.h.b16 %v749
      %v791 = vunpack.c.l.b16 %v750
      %v792 = vunpack.c.h.b16 %v750
      %v793 = vunpack.c.l.b16 %v751
      %v794 = vunpack.c.h.b16 %v751
      %v795 = vunpack.c.l.b16 %v752
      %v796 = vunpack.c.h.b16 %v752
      %v797 = vunpack.c.l.b16 %v753
      %v798 = vunpack.c.h.b16 %v753
      %v799 = vunpack.c.l.b16 %v754
      %v800 = vunpack.c.h.b16 %v754
      %v801 = vunpack.c.l.b16 %v755
      %v802 = vunpack.c.h.b16 %v755
      %v803 = vunpack.c.l.b16 %v756
      %v804 = vunpack.c.h.b16 %v756
      %v805 = vpack.c.b16 %v773, %v773
      %v806 = vpack.c.b16 %v774, %v774
      %v807 = vpack.c.b16 %v775, %v775
      %v808 = vpack.c.b16 %v776, %v776
      %v809 = vpack.c.b16 %v777, %v777
      %v810 = vpack.c.b16 %v778, %v778
      %v811 = vpack.c.b16 %v779, %v779
      %v812 = vpack.c.b16 %v780, %v780
      %v813 = vpack.c.b16 %v781, %v781
      %v814 = vpack.c.b16 %v782, %v782
      %v815 = vpack.c.b16 %v783, %v783
      %v816 = vpack.c.b16 %v784, %v784
      %v817 = vpack.c.b16 %v785, %v785
      %v818 = vpack.c.b16 %v786, %v786
      %v819 = vpack.c.b16 %v787, %v787
      %v820 = vpack.c.b16 %v788, %v788
      %v821 = vpack.c.b16 %v789, %v789
      %v822 = vpack.c.b16 %v790, %v790
      %v823 = vpack.c.b16 %v791, %v791
      %v824 = vpack.c.b16 %v792, %v792
      %v825 = vpack.c.b16 %v793, %v793
      %v826 = vpack.c.b16 %v794, %v794
      %v827 = vpack.c.b16 %v795, %v795
      %v828 = vpack.c.b16 %v796, %v796
      %v829 = vpack.c.b16 %v797, %v797
      %v830 = vpack.c.b16 %v798, %v798
      %v831 = vpack.c.b16 %v799, %v799
      %v832 = vpack.c.b16 %v800, %v800
      %v833 = vpack.c.b16 %v801, %v801
      %v834 = vpack.c.b16 %v802, %v802
      %v835 = vpack.c.b16 %v803, %v803
      %v836 = vpack.c.b16 %v804, %v804
      %vm869 = vcmask 11264
      %870 = vst.msk [vmem:[%s254] sm:$0xf] %vm869, %v805
      %871 = vst.msk [vmem:[%s254 + $0x4] sm:$0xf] %vm869, %v806
      %872 = vst.msk [vmem:[%s254 + $0x8] sm:$0xf] %vm869, %v807
      %873 = vst.msk [vmem:[%s254 + $0xc] sm:$0xf] %vm869, %v808
      %874 = vst.msk [vmem:[%s254 + $0x10] sm:$0xf] %vm869, %v809
      %875 = vst.msk [vmem:[%s254 + $0x14] sm:$0xf] %vm869, %v810
      %876 = vst.msk [vmem:[%s254 + $0x18] sm:$0xf] %vm869, %v811
      %877 = vst.msk [vmem:[%s254 + $0x1c] sm:$0xf] %vm869, %v812
      %878 = vst.msk [vmem:[%s254 + $0x20] sm:$0xf] %vm869, %v813
      %879 = vst.msk [vmem:[%s254 + $0x24] sm:$0xf] %vm869, %v814
      %880 = vst.msk [vmem:[%s254 + $0x28] sm:$0xf] %vm869, %v815
      %881 = vst.msk [vmem:[%s254 + $0x2c] sm:$0xf] %vm869, %v816
      %882 = vst.msk [vmem:[%s254 + $0x30] sm:$0xf] %vm869, %v817
      %883 = vst.msk [vmem:[%s254 + $0x34] sm:$0xf] %vm869, %v818
      %884 = vst.msk [vmem:[%s254 + $0x38] sm:$0xf] %vm869, %v819
      %885 = vst.msk [vmem:[%s254 + $0x3c] sm:$0xf] %vm869, %v820
      %886 = vst.msk [vmem:[%s254 + $0x40] sm:$0xf] %vm869, %v821
      %887 = vst.msk [vmem:[%s254 + $0x44] sm:$0xf] %vm869, %v822
      %888 = vst.msk [vmem:[%s254 + $0x48] sm:$0xf] %vm869, %v823
      %889 = vst.msk [vmem:[%s254 + $0x4c] sm:$0xf] %vm869, %v824
      %890 = vst.msk [vmem:[%s254 + $0x50] sm:$0xf] %vm869, %v825
      %891 = vst.msk [vmem:[%s254 + $0x54] sm:$0xf] %vm869, %v826
      %892 = vst.msk [vmem:[%s254 + $0x58] sm:$0xf] %vm869, %v827
      %893 = vst.msk [vmem:[%s254 + $0x5c] sm:$0xf] %vm869, %v828
      %894 = vst.msk [vmem:[%s254 + $0x60] sm:$0xf] %vm869, %v829
      %895 = vst.msk [vmem:[%s254 + $0x64] sm:$0xf] %vm869, %v830
      %896 = vst.msk [vmem:[%s254 + $0x68] sm:$0xf] %vm869, %v831
      %897 = vst.msk [vmem:[%s254 + $0x6c] sm:$0xf] %vm869, %v832
      %898 = vst.msk [vmem:[%s254 + $0x70] sm:$0xf] %vm869, %v833
      %899 = vst.msk [vmem:[%s254 + $0x74] sm:$0xf] %vm869, %v834
      %900 = vst.msk [vmem:[%s254 + $0x78] sm:$0xf] %vm869, %v835
      %901 = vst.msk [vmem:[%s254 + $0x7c] sm:$0xf] %vm869, %v836
      %s902 = smul.u32 32, %s20
      %p903 = scmp.lt.s32.totalorder %s19, 1
      %s904 = scalar_select %p903, %s19, 1
      %p905 = scmp.lt.s32.totalorder %s902, 31
      %s906 = scalar_select %p905, %s902, 31
      %p907 = scmp.lt.s32.totalorder %s21, 0
      %s908 = scalar_select %p907, %s21, 0
      %s909 = sadd.s32 %s908, %s906
      %s910 = smul.addr %s904, 32
      %s911 = sadd.s32 %s909, %s910
      %s912 = smul.addr %s911, 4
      %s913 = scalar_lea.vmem %s3, %s912
      // Predicated region
      $region33: #{sppf_forward.2} parent=31 // pred_check
        %p914 = pneg %p135
      $region34: #{sppf_forward.2} parent=31 // pred_check_branch
        %916 = sbr.rel (%p914) target = $region36
      $region35: #{sppf_forward.2} parent=31 // pred_region
        %s917 = smul.u32 32, %s20
      $region36: #{sppf_forward.2} parent=31 // pred_fallthru
        _
    $region32: #{sppf_forward.2} parent=5 // pred_fallthru
      _
    %p918 = scmp.le.s32.totalorder 2, %s9
    // Predicated region
    $region37: #{sppf_forward.2} parent=5 // pred_check
      %p919 = pneg %p918
    $region38: #{sppf_forward.2} parent=5 // pred_check_branch
      %921 = sbr.rel (%p919) target = $region40
    $region39: #{sppf_forward.2} parent=5 // pred_region
      %s922 = ssub.s32 %s9, 2
      // Predicated region
      $region41: #{sppf_forward.2} parent=39 // pred_check
        %p923 = pneg %p141
      $region42: #{sppf_forward.2} parent=39 // pred_check_branch
        %925 = sbr.rel (%p923) target = $region44
      $region43: #{sppf_forward.2} parent=39 // pred_region
        %s926 = smul.u32 32, %s23
        %p927 = scmp.lt.s32.totalorder %s22, 1
        %s928 = scalar_select %p927, %s22, 1
        %p929 = scmp.lt.s32.totalorder %s926, 31
        %s930 = scalar_select %p929, %s926, 31
        %p931 = scmp.lt.s32.totalorder %s24, 0
        %s932 = scalar_select %p931, %s24, 0
        %s933 = sadd.s32 %s932, %s930
        %s934 = smul.addr %s928, 32
        %s935 = sadd.s32 %s933, %s934
        %s936 = smul.addr %s935, 4
        %s937 = scalar_lea.vmem %s3, %s936
      $region44: #{sppf_forward.2} parent=39 // pred_fallthru
        _
    $region40: #{sppf_forward.2} parent=5 // pred_fallthru
      _
  $region6: #{sppf_forward.2} parent=0 // loop_footer
    %s13 = sadd.s32 1, %s9
  $region7: #{sppf_forward.2} parent=0 // loop_footer_branch
    %8 = sbr.rel target = $region3
  $region8: #{sppf_forward.2} parent=0 // loop_exit
    _

// kernel: sppf_forward.3
$region0: #{sppf_forward.3}
  #allocation0 [shape = 'u32[]', space=smem, size = 0x4, offset = 0x4, fixed_abs, tag = 'smem constant byte address 0x4 - core index']
  #allocation1 [shape = 'u32[144,128]{1,0:T(1,128)}', space=vmem, size = 0x12000, scoped, tag = 'internal scratch']
  #allocation2 [shape = 'f32[28,32,2]{2,1,0:T(8,128)}', space=vmem, size = 0x70000, scoped, tag = 'scratch operand']
  %s0 = inlined_call_operand.vmem [shape: bf16[2,16,16,2], index: 0, kind: input, shape index: {}]
  %s1 = inlined_call_operand.vmem [shape: bf16[8,8], index: 1, kind: input, shape index: {}]
  %s2 = inlined_call_operand.vmem [shape: f32[1,8], index: 2, kind: input, shape index: {}]
  %s3 = inlined_call_operand.vmem [shape: f32[2,16,16,8], index: 3, kind: output, shape index: {}]
  %s4 = sld [smem:[#allocation0]]
  $region45: #{sppf_forward.3} parent=0
    _
  %s6 = ssub.s32 1, %s4
  %s7 = scalar_select 0, %s6, %s4
  loop: start=0, step=1, limit=4
  $region2: #{sppf_forward.3} parent=0 // loop_pre_header
    _
  $region3: #{sppf_forward.3} parent=0 // loop_header
    %s9 = sphi 0, %s13
    %p10 = scmp.ge.s32.totalorder %s9, 4
    %s19 = sphi 0, %s21
    %s22 = sphi 0, %s19
    %s23 = sphi 0, %s22
    %s39 = sphi 0, %s23
    %s43 = sphi 0, %s43
    %s45 = sphi 0, %s43
    %s46 = sphi 0, %s45
    %s60 = sphi 0, %s46
    %s64 = sphi 0, %s64
    %s66 = sphi 0, %s64
    %s67 = sphi 0, %s66
    %s81 = sphi 0, %s67
    %s87 = sphi 0, %s89
    %s90 = sphi 0, %s87
    %s91 = sphi 0, %s90
    %s107 = sphi 0, %s91
  $region4: #{sppf_forward.3} parent=0 // loop_header_branch
    %12 = sbr.rel (%p10) target = $region8
  $region5: #{sppf_forward.3} parent=0 // loop_body
    %s14 = ssub.s32 %s9, 1
    %s15 = ssub.s32 %s9, 2
    %s16 = sadd.s32 %s9, 1
    %s17 = ssub.s32 %s9, %s16
    %p18 = scmp.eq.s32.totalorder %s17, 0
    %s20 = sadd.s32 %s19, 1
    %s21 = scalar_select %p18, %s19, %s20
    %p24 = pneg %p18
    %p25 = scmp.eq.s32.totalorder %s9, 1
    %p26 = por %p24, %p25
    %p27 = scmp.ne.s32.totalorder %s19, %s22
    %p28 = scmp.eq.s32.totalorder %s9, 0
    %p29 = por %p27, %p28
    %p30 = scmp.ne.s32.totalorder %s19, %s22
    %p31 = scmp.eq.s32.totalorder %s14, 1
    %p32 = por %p30, %p31
    %p33 = scmp.ne.s32.totalorder %s22, %s23
    %p34 = scmp.eq.s32.totalorder %s14, 0
    %p35 = por %p33, %p34
    %p36 = scmp.ne.s32.totalorder %s22, %s23
    %p37 = scmp.eq.s32.totalorder %s15, 1
    %p38 = por %p36, %p37
    %p40 = scmp.ne.s32.totalorder %s23, %s39
    %p41 = scmp.eq.s32.totalorder %s15, 0
    %p42 = por %p40, %p41
    %s44 = sadd.s32 %s43, 1
    %p47 = scmp.eq.s32.totalorder %s9, 1
    %p48 = scmp.ne.s32.totalorder %s43, %s45
    %p49 = scmp.eq.s32.totalorder %s9, 0
    %p50 = por %p48, %p49
    %p51 = scmp.ne.s32.totalorder %s43, %s45
    %p52 = scmp.eq.s32.totalorder %s14, 1
    %p53 = por %p51, %p52
    %p54 = scmp.ne.s32.totalorder %s45, %s46
    %p55 = scmp.eq.s32.totalorder %s14, 0
    %p56 = por %p54, %p55
    %p57 = scmp.ne.s32.totalorder %s45, %s46
    %p58 = scmp.eq.s32.totalorder %s15, 1
    %p59 = por %p57, %p58
    %p61 = scmp.ne.s32.totalorder %s46, %s60
    %p62 = scmp.eq.s32.totalorder %s15, 0
    %p63 = por %p61, %p62
    %s65 = sadd.s32 %s64, 1
    %p68 = scmp.eq.s32.totalorder %s9, 1
    %p69 = scmp.ne.s32.totalorder %s64, %s66
    %p70 = scmp.eq.s32.totalorder %s9, 0
    %p71 = por %p69, %p70
    %p72 = scmp.ne.s32.totalorder %s64, %s66
    %p73 = scmp.eq.s32.totalorder %s14, 1
    %p74 = por %p72, %p73
    %p75 = scmp.ne.s32.totalorder %s66, %s67
    %p76 = scmp.eq.s32.totalorder %s14, 0
    %p77 = por %p75, %p76
    %p78 = scmp.ne.s32.totalorder %s66, %s67
    %p79 = scmp.eq.s32.totalorder %s15, 1
    %p80 = por %p78, %p79
    %p82 = scmp.ne.s32.totalorder %s67, %s81
    %p83 = scmp.eq.s32.totalorder %s15, 0
    %p84 = por %p82, %p83
    %s85 = ssub.s32 %s9, %s16
    %p86 = scmp.eq.s32.totalorder %s85, 0
    %s88 = sadd.s32 %s87, 1
    %s89 = scalar_select %p86, %s87, %s88
    %p92 = pneg %p86
    %p93 = scmp.eq.s32.totalorder %s9, 1
    %p94 = por %p92, %p93
    %p95 = scmp.ne.s32.totalorder %s87, %s90
    %p96 = scmp.eq.s32.totalorder %s9, 0
    %p97 = por %p95, %p96
    %p98 = scmp.ne.s32.totalorder %s87, %s90
    %p99 = scmp.eq.s32.totalorder %s14, 1
    %p100 = por %p98, %p99
    %p101 = scmp.ne.s32.totalorder %s90, %s91
    %p102 = scmp.eq.s32.totalorder %s14, 0
    %p103 = por %p101, %p102
    %p104 = scmp.ne.s32.totalorder %s90, %s91
    %p105 = scmp.eq.s32.totalorder %s15, 1
    %p106 = por %p104, %p105
    %p108 = scmp.ne.s32.totalorder %s91, %s107
    %p109 = scmp.eq.s32.totalorder %s15, 0
    %p110 = por %p108, %p109
    %p111 = scmp.le.s32.totalorder 1, %s9
    %p112 = scmp.lt.s32.totalorder %s9, 3
    %p113 = pnand %p111, %p112
    %p114 = pneg %p113
    // Predicated region
    $region9: #{sppf_forward.3} parent=5 // pred_check
      _
    $region10: #{sppf_forward.3} parent=5 // pred_check_branch
      %116 = sbr.rel (%p113) target = $region12
    $region11: #{sppf_forward.3} parent=5 // pred_region
      %s117 = ssub.s32 %s9, 1
      // Predicated region
      $region13: #{sppf_forward.3} parent=11 // pred_check
        %p118 = pneg %p56
      $region14: #{sppf_forward.3} parent=11 // pred_check_branch
        %120 = sbr.rel (%p118) target = $region16
      $region15: #{sppf_forward.3} parent=11 // pred_region
        _
      $region16: #{sppf_forward.3} parent=11 // pred_fallthru
        _
      // Predicated region
      $region17: #{sppf_forward.3} parent=11 // pred_check
        %p121 = pneg %p77
      $region18: #{sppf_forward.3} parent=11 // pred_check_branch
        %123 = sbr.rel (%p121) target = $region20
      $region19: #{sppf_forward.3} parent=11 // pred_region
        _
      $region20: #{sppf_forward.3} parent=11 // pred_fallthru
        _
    $region12: #{sppf_forward.3} parent=5 // pred_fallthru
      _
    %p124 = scmp.lt.s32.totalorder %s9, 2
    // Predicated region
    $region21: #{sppf_forward.3} parent=5 // pred_check
      %p125 = pneg %p124
    $region22: #{sppf_forward.3} parent=5 // pred_check_branch
      %127 = sbr.rel (%p125) target = $region24
    $region23: #{sppf_forward.3} parent=5 // pred_region
      // Predicated region
      $region25: #{sppf_forward.3} parent=23 // pred_check
        %p128 = pneg %p29
      $region26: #{sppf_forward.3} parent=23 // pred_check_branch
        %130 = sbr.rel (%p128) target = $region28
      $region27: #{sppf_forward.3} parent=23 // pred_region
        %p131 = scmp.lt.s32.totalorder %s9, 1
        %s132 = scalar_select %p131, %s9, 1
        %s133 = smul.addr %s132, 32
        %s134 = smul.addr %s133, 4
        %s135 = scalar_lea.vmem %s0, %s134
      $region28: #{sppf_forward.3} parent=23 // pred_fallthru
        _
    $region24: #{sppf_forward.3} parent=5 // pred_fallthru
      _
    %p136 = scmp.le.s32.totalorder 1, %s9
    %p137 = scmp.lt.s32.totalorder %s9, 3
    %p138 = pnand %p136, %p137
    %p139 = pneg %p138
    // Predicated region
    $region29: #{sppf_forward.3} parent=5 // pred_check
      _
    $region30: #{sppf_forward.3} parent=5 // pred_check_branch
      %141 = sbr.rel (%p138) target = $region32
    $region31: #{sppf_forward.3} parent=5 // pred_region
      %s142 = ssub.s32 %s9, 1
      %p143 = scmp.lt.s32.totalorder %s14, 1
      %s144 = scalar_select %p143, %s14, 1
      %s145 = smul.addr %s144, 32
      %s146 = smul.addr %s145, 4
      %s147 = scalar_lea.vmem %s0, %s146
      %p148 = pneg %p35
      %p149 = pneg %p32
      %p150 = pneg %p56
      %p151 = pneg %p53
      %p152 = pneg %p77
      %p153 = pneg %p74
      %p154 = pneg %p103
      %p155 = pneg %p100
      %p156 = scmp.lt.s32.totalorder %s14, 1
      %s157 = scalar_select %p156, %s14, 1
      %s158 = smul.addr %s157, 32
      %s159 = smul.addr %s158, 8
      %s160 = scalar_lea.vmem %s3, %s159
      %p161 = scmp.lt.s32.totalorder %s14, 1
      %s162 = scalar_select %p161, %s14, 1
      %s163 = smul.addr %s162, 32
      %s164 = smul.addr %s163, 4
      %s165 = scalar_lea.vmem %s0, %s164
      %p166 = scmp.lt.s32.totalorder %s14, 1
      %s167 = scalar_select %p166, %s14, 1
      %s168 = smul.addr %s167, 32
      %s169 = smul.addr %s168, 8
      %s170 = scalar_lea.vmem %s3, %s169
      %v172 = vld [vmem:[%s165] sm:$0xf]
      %v173 = vld [vmem:[%s165 + $0x4] sm:$0xf]
      %v174 = vld [vmem:[%s165 + $0x8] sm:$0xf]
      %v175 = vld [vmem:[%s165 + $0xc] sm:$0xf]
      %v176 = vld [vmem:[%s165 + $0x10] sm:$0xf]
      %v177 = vld [vmem:[%s165 + $0x14] sm:$0xf]
      %v178 = vld [vmem:[%s165 + $0x18] sm:$0xf]
      %v179 = vld [vmem:[%s165 + $0x1c] sm:$0xf]
      %v180 = vld [vmem:[%s165 + $0x20] sm:$0xf]
      %v181 = vld [vmem:[%s165 + $0x24] sm:$0xf]
      %v182 = vld [vmem:[%s165 + $0x28] sm:$0xf]
      %v183 = vld [vmem:[%s165 + $0x2c] sm:$0xf]
      %v184 = vld [vmem:[%s165 + $0x30] sm:$0xf]
      %v185 = vld [vmem:[%s165 + $0x34] sm:$0xf]
      %v186 = vld [vmem:[%s165 + $0x38] sm:$0xf]
      %v187 = vld [vmem:[%s165 + $0x3c] sm:$0xf]
      %v188 = vld [vmem:[%s165 + $0x40] sm:$0xf]
      %v189 = vld [vmem:[%s165 + $0x44] sm:$0xf]
      %v190 = vld [vmem:[%s165 + $0x48] sm:$0xf]
      %v191 = vld [vmem:[%s165 + $0x4c] sm:$0xf]
      %v192 = vld [vmem:[%s165 + $0x50] sm:$0xf]
      %v193 = vld [vmem:[%s165 + $0x54] sm:$0xf]
      %v194 = vld [vmem:[%s165 + $0x58] sm:$0xf]
      %v195 = vld [vmem:[%s165 + $0x5c] sm:$0xf]
      %v196 = vld [vmem:[%s165 + $0x60] sm:$0xf]
      %v197 = vld [vmem:[%s165 + $0x64] sm:$0xf]
      %v198 = vld [vmem:[%s165 + $0x68] sm:$0xf]
      %v199 = vld [vmem:[%s165 + $0x6c] sm:$0xf]
      %v200 = vld [vmem:[%s165 + $0x70] sm:$0xf]
      %v201 = vld [vmem:[%s165 + $0x74] sm:$0xf]
      %v202 = vld [vmem:[%s165 + $0x78] sm:$0xf]
      %v203 = vld [vmem:[%s165 + $0x7c] sm:$0xf]
      %v204 = vunpack.c.l.bf16 %v172
      %v205 = vunpack.c.l.bf16 %v173
      %v206 = vunpack.c.l.bf16 %v174
      %v207 = vunpack.c.l.bf16 %v175
      %v208 = vunpack.c.l.bf16 %v176
      %v209 = vunpack.c.l.bf16 %v177
      %v210 = vunpack.c.l.bf16 %v178
      %v211 = vunpack.c.l.bf16 %v179
      %v212 = vunpack.c.l.bf16 %v180
      %v213 = vunpack.c.l.bf16 %v181
      %v214 = vunpack.c.l.bf16 %v182
      %v215 = vunpack.c.l.bf16 %v183
      %v216 = vunpack.c.l.bf16 %v184
      %v217 = vunpack.c.l.bf16 %v185
      %v218 = vunpack.c.l.bf16 %v186
      %v219 = vunpack.c.l.bf16 %v187
      %v220 = vunpack.c.l.bf16 %v188
      %v221 = vunpack.c.l.bf16 %v189
      %v222 = vunpack.c.l.bf16 %v190
      %v223 = vunpack.c.l.bf16 %v191
      %v224 = vunpack.c.l.bf16 %v192
      %v225 = vunpack.c.l.bf16 %v193
      %v226 = vunpack.c.l.bf16 %v194
      %v227 = vunpack.c.l.bf16 %v195
      %v228 = vunpack.c.l.bf16 %v196
      %v229 = vunpack.c.l.bf16 %v197
      %v230 = vunpack.c.l.bf16 %v198
      %v231 = vunpack.c.l.bf16 %v199
      %v232 = vunpack.c.l.bf16 %v200
      %v233 = vunpack.c.l.bf16 %v201
      %v234 = vunpack.c.l.bf16 %v202
      %v235 = vunpack.c.l.bf16 %v203
      %vm236 = vcmask 15360
      %237 = vst.msk [vmem:[#allocation2] sm:$0xff] %vm236, -inf
      %238 = vst.msk [vmem:[#allocation2 + $0x8] sm:$0xff] %vm236, -inf
      %239 = vst.msk [vmem:[#allocation2 + $0x10] sm:$0xff] %vm236, -inf
      %240 = vst.msk [vmem:[#allocation2 + $0x18] sm:$0xff] %vm236, -inf
      %241 = vst.msk [vmem:[#allocation2 + $0x20] sm:$0xff] %vm236, -inf
      %242 = vst.msk [vmem:[#allocation2 + $0x28] sm:$0xff] %vm236, -inf
      %243 = vst.msk [vmem:[#allocation2 + $0x30] sm:$0xff] %vm236, -inf
      %244 = vst.msk [vmem:[#allocation2 + $0x38] sm:$0xff] %vm236, -inf
      %245 = vst.msk [vmem:[#allocation2 + $0x40] sm:$0xff] %vm236, -inf
      %246 = vst.msk [vmem:[#allocation2 + $0x48] sm:$0xff] %vm236, -inf
      %247 = vst.msk [vmem:[#allocation2 + $0x50] sm:$0xff] %vm236, -inf
      %248 = vst.msk [vmem:[#allocation2 + $0x58] sm:$0xff] %vm236, -inf
      %249 = vst.msk [vmem:[#allocation2 + $0x60] sm:$0xff] %vm236, -inf
      %250 = vst.msk [vmem:[#allocation2 + $0x68] sm:$0xff] %vm236, -inf
      %251 = vst.msk [vmem:[#allocation2 + $0x70] sm:$0xff] %vm236, -inf
      %252 = vst.msk [vmem:[#allocation2 + $0x78] sm:$0xff] %vm236, -inf
      %253 = vst.msk [vmem:[#allocation2 + $0x80] sm:$0xff] %vm236, -inf
      %254 = vst.msk [vmem:[#allocation2 + $0x88] sm:$0xff] %vm236, -inf
      %255 = vst.msk [vmem:[#allocation2 + $0x90] sm:$0xff] %vm236, -inf
      %256 = vst.msk [vmem:[#allocation2 + $0x98] sm:$0xff] %vm236, -inf
      %257 = vst.msk [vmem:[#allocation2 + $0xa0] sm:$0xff] %vm236, -inf
      %258 = vst.msk [vmem:[#allocation2 + $0xa8] sm:$0xff] %vm236, -inf
      %259 = vst.msk [vmem:[#allocation2 + $0xb0] sm:$0xff] %vm236, -inf
      %260 = vst.msk [vmem:[#allocation2 + $0xb8] sm:$0xff] %vm236, -inf
      %s261 = scalar_lea.vmem [#allocation2], 704
      %262 = vst.msk [vmem:[%s261] sm:$0xff] %vm236, -inf
      %263 = vst.msk [vmem:[%s261 + $0x8] sm:$0xff] %vm236, -inf
      %264 = vst.msk [vmem:[%s261 + $0x10] sm:$0xff] %vm236, -inf
      %265 = vst.msk [vmem:[%s261 + $0x18] sm:$0xff] %vm236, -inf
      %266 = vst.msk [vmem:[%s261 + $0x20] sm:$0xff] %vm236, -inf
      %267 = vst.msk [vmem:[%s261 + $0x28] sm:$0xff] %vm236, -inf
      %268 = vst.msk [vmem:[%s261 + $0x30] sm:$0xff] %vm236, -inf
      %269 = vst.msk [vmem:[%s261 + $0x38] sm:$0xff] %vm236, -inf
      %270 = vst.msk [vmem:[%s261 + $0x40] sm:$0xff] %vm236, -inf
      %271 = vst.msk [vmem:[%s261 + $0x48] sm:$0xff] %vm236, -inf
      %272 = vst.msk [vmem:[%s261 + $0x50] sm:$0xff] %vm236, -inf
      %273 = vst.msk [vmem:[%s261 + $0x58] sm:$0xff] %vm236, -inf
      %274 = vst.msk [vmem:[%s261 + $0x60] sm:$0xff] %vm236, -inf
      %275 = vst.msk [vmem:[%s261 + $0x68] sm:$0xff] %vm236, -inf
      %276 = vst.msk [vmem:[%s261 + $0x70] sm:$0xff] %vm236, -inf
      %277 = vst.msk [vmem:[%s261 + $0x78] sm:$0xff] %vm236, -inf
      %278 = vst.msk [vmem:[%s261 + $0x80] sm:$0xff] %vm236, -inf
      %279 = vst.msk [vmem:[%s261 + $0x88] sm:$0xff] %vm236, -inf
      %280 = vst.msk [vmem:[%s261 + $0x90] sm:$0xff] %vm236, -inf
      %281 = vst.msk [vmem:[%s261 + $0x98] sm:$0xff] %vm236, -inf
      %282 = vst.msk [vmem:[%s261 + $0xa0] sm:$0xff] %vm236, -inf
      %283 = vst.msk [vmem:[%s261 + $0xa8] sm:$0xff] %vm236, -inf
      %284 = vst.msk [vmem:[%s261 + $0xb0] sm:$0xff] %vm236, -inf
      %285 = vst.msk [vmem:[%s261 + $0xb8] sm:$0xff] %vm236, -inf
      %s286 = scalar_lea.vmem [#allocation2], 192
      %287 = vst.msk [vmem:[%s286] sm:$0xff] %vm236, -inf
      %288 = vst.msk [vmem:[%s286 + $0x20] sm:$0xff] %vm236, -inf
      %289 = vst.msk [vmem:[%s286 + $0x40] sm:$0xff] %vm236, -inf
      %290 = vst.msk [vmem:[%s286 + $0x60] sm:$0xff] %vm236, -inf
      %291 = vst.msk [vmem:[%s286 + $0x80] sm:$0xff] %vm236, -inf
      %292 = vst.msk [vmem:[%s286 + $0xa0] sm:$0xff] %vm236, -inf
      %293 = vst.msk [vmem:[%s286 + $0xc0] sm:$0xff] %vm236, -inf
      %294 = vst.msk [vmem:[%s286 + $0xe0] sm:$0xff] %vm236, -inf
      %295 = vst.msk [vmem:[%s286 + $0x100] sm:$0xff] %vm236, -inf
      %296 = vst.msk [vmem:[%s286 + $0x120] sm:$0xff] %vm236, -inf
      %297 = vst.msk [vmem:[%s286 + $0x140] sm:$0xff] %vm236, -inf
      %298 = vst.msk [vmem:[%s286 + $0x160] sm:$0xff] %vm236, -inf
      %299 = vst.msk [vmem:[%s286 + $0x180] sm:$0xff] %vm236, -inf
      %300 = vst.msk [vmem:[%s286 + $0x1a0] sm:$0xff] %vm236, -inf
      %301 = vst.msk [vmem:[%s286 + $0x1c0] sm:$0xff] %vm236, -inf
      %302 = vst.msk [vmem:[%s286 + $0x1e0] sm:$0xff] %vm236, -inf
      %303 = vst.msk [vmem:[%s286 + $0x18] sm:$0xff] %vm236, -inf
      %304 = vst.msk [vmem:[%s286 + $0x38] sm:$0xff] %vm236, -inf
      %305 = vst.msk [vmem:[%s286 + $0x58] sm:$0xff] %vm236, -inf
      %306 = vst.msk [vmem:[%s286 + $0x78] sm:$0xff] %vm236, -inf
      %307 = vst.msk [vmem:[%s286 + $0x98] sm:$0xff] %vm236, -inf
      %308 = vst.msk [vmem:[%s286 + $0xb8] sm:$0xff] %vm236, -inf
      %309 = vst.msk [vmem:[%s286 + $0xd8] sm:$0xff] %vm236, -inf
      %310 = vst.msk [vmem:[%s286 + $0xf8] sm:$0xff] %vm236, -inf
      %311 = vst.msk [vmem:[%s286 + $0x118] sm:$0xff] %vm236, -inf
      %312 = vst.msk [vmem:[%s286 + $0x138] sm:$0xff] %vm236, -inf
      %313 = vst.msk [vmem:[%s286 + $0x158] sm:$0xff] %vm236, -inf
      %314 = vst.msk [vmem:[%s286 + $0x178] sm:$0xff] %vm236, -inf
      %315 = vst.msk [vmem:[%s286 + $0x198] sm:$0xff] %vm236, -inf
      %316 = vst.msk [vmem:[%s286 + $0x1b8] sm:$0xff] %vm236, -inf
      %317 = vst.msk [vmem:[%s286 + $0x1d8] sm:$0xff] %vm236, -inf
      %318 = vst.msk [vmem:[%s286 + $0x1f8] sm:$0xff] %vm236, -inf
      %319 = vst.msk [vmem:[%s286 + $0x8] sm:$0xff] %vm236, %v204
      %320 = vst.msk [vmem:[%s286 + $0x10] sm:$0xff] %vm236, %v205
      %321 = vst.msk [vmem:[%s286 + $0x28] sm:$0xff] %vm236, %v206
      %322 = vst.msk [vmem:[%s286 + $0x30] sm:$0xff] %vm236, %v207
      %323 = vst.msk [vmem:[%s286 + $0x48] sm:$0xff] %vm236, %v208
      %324 = vst.msk [vmem:[%s286 + $0x50] sm:$0xff] %vm236, %v209
      %325 = vst.msk [vmem:[%s286 + $0x68] sm:$0xff] %vm236, %v210
      %326 = vst.msk [vmem:[%s286 + $0x70] sm:$0xff] %vm236, %v211
      %327 = vst.msk [vmem:[%s286 + $0x88] sm:$0xff] %vm236, %v212
      %328 = vst.msk [vmem:[%s286 + $0x90] sm:$0xff] %vm236, %v213
      %329 = vst.msk [vmem:[%s286 + $0xa8] sm:$0xff] %vm236, %v214
      %330 = vst.msk [vmem:[%s286 + $0xb0] sm:$0xff] %vm236, %v215
      %331 = vst.msk [vmem:[%s286 + $0xc8] sm:$0xff] %vm236, %v216
      %332 = vst.msk [vmem:[%s286 + $0xd0] sm:$0xff] %vm236, %v217
      %333 = vst.msk [vmem:[%s286 + $0xe8] sm:$0xff] %vm236, %v218
      %334 = vst.msk [vmem:[%s286 + $0xf0] sm:$0xff] %vm236, %v219
      %335 = vst.msk [vmem:[%s286 + $0x108] sm:$0xff] %vm236, %v220
      %336 = vst.msk [vmem:[%s286 + $0x110] sm:$0xff] %vm236, %v221
      %337 = vst.msk [vmem:[%s286 + $0x128] sm:$0xff] %vm236, %v222
      %338 = vst.msk [vmem:[%s286 + $0x130] sm:$0xff] %vm236, %v223
      %339 = vst.msk [vmem:[%s286 + $0x148] sm:$0xff] %vm236, %v224
      %340 = vst.msk [vmem:[%s286 + $0x150] sm:$0xff] %vm236, %v225
      %341 = vst.msk [vmem:[%s286 + $0x168] sm:$0xff] %vm236, %v226
      %342 = vst.msk [vmem:[%s286 + $0x170] sm:$0xff] %vm236, %v227
      %343 = vst.msk [vmem:[%s286 + $0x188] sm:$0xff] %vm236, %v228
      %344 = vst.msk [vmem:[%s286 + $0x190] sm:$0xff] %vm236, %v229
      %345 = vst.msk [vmem:[%s286 + $0x1a8] sm:$0xff] %vm236, %v230
      %346 = vst.msk [vmem:[%s286 + $0x1b0] sm:$0xff] %vm236, %v231
      %347 = vst.msk [vmem:[%s286 + $0x1c8] sm:$0xff] %vm236, %v232
      %348 = vst.msk [vmem:[%s286 + $0x1d0] sm:$0xff] %vm236, %v233
      %349 = vst.msk [vmem:[%s286 + $0x1e8] sm:$0xff] %vm236, %v234
      %350 = vst.msk [vmem:[%s286 + $0x1f0] sm:$0xff] %vm236, %v235
      %v351 = vld [vmem:[#allocation2] sm:$0xff]
      %v352 = vld [vmem:[#allocation2 + $0x8] sm:$0xff]
      %v353 = vld [vmem:[#allocation2 + $0x10] sm:$0xff]
      %v354 = vld [vmem:[#allocation2 + $0x18] sm:$0xff]
      %v355 = vld [vmem:[#allocation2 + $0x20] sm:$0xff]
      %v356 = vld [vmem:[#allocation2 + $0x28] sm:$0xff]
      %v357 = vld [vmem:[#allocation2 + $0x30] sm:$0xff]
      %v358 = vld [vmem:[#allocation2 + $0x38] sm:$0xff]
      %v359 = vld [vmem:[#allocation2 + $0x40] sm:$0xff]
      %v360 = vld [vmem:[#allocation2 + $0x48] sm:$0xff]
      %v361 = vld [vmem:[#allocation2 + $0x50] sm:$0xff]
      %v362 = vld [vmem:[#allocation2 + $0x58] sm:$0xff]
      %v363 = vld [vmem:[#allocation2 + $0x60] sm:$0xff]
      %v364 = vld [vmem:[#allocation2 + $0x68] sm:$0xff]
      %v365 = vld [vmem:[#allocation2 + $0x70] sm:$0xff]
      %v366 = vld [vmem:[#allocation2 + $0x78] sm:$0xff]
      %v367 = vld [vmem:[#allocation2 + $0x80] sm:$0xff]
      %v368 = vld [vmem:[#allocation2 + $0x88] sm:$0xff]
      %v369 = vld [vmem:[#allocation2 + $0x90] sm:$0xff]
      %v370 = vld [vmem:[#allocation2 + $0x98] sm:$0xff]
      %v371 = vld [vmem:[#allocation2 + $0xa0] sm:$0xff]
      %v372 = vld [vmem:[#allocation2 + $0xa8] sm:$0xff]
      %v373 = vld [vmem:[#allocation2 + $0xb0] sm:$0xff]
      %v374 = vld [vmem:[#allocation2 + $0xb8] sm:$0xff]
      %v375 = vld [vmem:[#allocation2 + $0xc0] sm:$0xff]
      %v376 = vld [vmem:[#allocation2 + $0xc8] sm:$0xff]
      %v377 = vld [vmem:[#allocation2 + $0xd0] sm:$0xff]
      %v378 = vld [vmem:[#allocation2 + $0xd8] sm:$0xff]
      %v379 = vld [vmem:[#allocation2 + $0xe0] sm:$0xff]
      %v380 = vld [vmem:[#allocation2 + $0xe8] sm:$0xff]
      %v381 = vld [vmem:[#allocation2 + $0xf0] sm:$0xff]
      %v382 = vld [vmem:[#allocation2 + $0xf8] sm:$0xff]
      %v383 = vld [vmem:[#allocation2 + $0x100] sm:$0xff]
      %v384 = vld [vmem:[#allocation2 + $0x108] sm:$0xff]
      %v385 = vld [vmem:[#allocation2 + $0x110] sm:$0xff]
      %v386 = vld [vmem:[#allocation2 + $0x118] sm:$0xff]
      %v387 = vld [vmem:[#allocation2 + $0x120] sm:$0xff]
      %v388 = vld [vmem:[#allocation2 + $0x128] sm:$0xff]
      %v389 = vld [vmem:[#allocation2 + $0x130] sm:$0xff]
      %v390 = vld [vmem:[#allocation2 + $0x138] sm:$0xff]
      %v391 = vld [vmem:[#allocation2 + $0x140] sm:$0xff]
      %v392 = vld [vmem:[#allocation2 + $0x148] sm:$0xff]
      %v393 = vld [vmem:[#allocation2 + $0x150] sm:$0xff]
      %v394 = vld [vmem:[#allocation2 + $0x158] sm:$0xff]
      %v395 = vld [vmem:[#allocation2 + $0x160] sm:$0xff]
      %v396 = vld [vmem:[#allocation2 + $0x168] sm:$0xff]
      %v397 = vld [vmem:[#allocation2 + $0x170] sm:$0xff]
      %v398 = vld [vmem:[#allocation2 + $0x178] sm:$0xff]
      %v399 = vld [vmem:[#allocation2 + $0x180] sm:$0xff]
      %v400 = vld [vmem:[#allocation2 + $0x188] sm:$0xff]
      %v401 = vld [vmem:[#allocation2 + $0x190] sm:$0xff]
      %v402 = vld [vmem:[#allocation2 + $0x198] sm:$0xff]
      %v403 = vld [vmem:[#allocation2 + $0x1a0] sm:$0xff]
      %v404 = vld [vmem:[#allocation2 + $0x1a8] sm:$0xff]
      %v405 = vld [vmem:[#allocation2 + $0x1b0] sm:$0xff]
      %v406 = vld [vmem:[#allocation2 + $0x1b8] sm:$0xff]
      %v407 = vld [vmem:[#allocation2 + $0x1c0] sm:$0xff]
      %v408 = vld [vmem:[#allocation2 + $0x1c8] sm:$0xff]
      %v409 = vld [vmem:[#allocation2 + $0x1d0] sm:$0xff]
      %v410 = vld [vmem:[#allocation2 + $0x1d8] sm:$0xff]
      %v411 = vld [vmem:[#allocation2 + $0x1e0] sm:$0xff]
      %v412 = vld [vmem:[#allocation2 + $0x1e8] sm:$0xff]
      %v413 = vld [vmem:[#allocation2 + $0x1f0] sm:$0xff]
      %v414 = vld [vmem:[#allocation2 + $0x1f8] sm:$0xff]
      %v415 = vld [vmem:[#allocation2 + $0x200] sm:$0xff]
      %v416 = vld [vmem:[#allocation2 + $0x208] sm:$0xff]
      %v417 = vld [vmem:[#allocation2 + $0x210] sm:$0xff]
      %v418 = vld [vmem:[#allocation2 + $0x218] sm:$0xff]
      %v419 = vld [vmem:[#allocation2 + $0x220] sm:$0xff]
      %v420 = vld [vmem:[#allocation2 + $0x228] sm:$0xff]
      %v421 = vld [vmem:[#allocation2 + $0x230] sm:$0xff]
      %v422 = vld [vmem:[#allocation2 + $0x238] sm:$0xff]
      %v423 = vld [vmem:[#allocation2 + $0x240] sm:$0xff]
      %v424 = vld [vmem:[#allocation2 + $0x248] sm:$0xff]
      %v425 = vld [vmem:[#allocation2 + $0x250] sm:$0xff]
      %v426 = vld [vmem:[#allocation2 + $0x258] sm:$0xff]
      %v427 = vld [vmem:[#allocation2 + $0x260] sm:$0xff]
      %v428 = vld [vmem:[#allocation2 + $0x268] sm:$0xff]
      %v429 = vld [vmem:[#allocation2 + $0x270] sm:$0xff]
      %v430 = vld [vmem:[#allocation2 + $0x278] sm:$0xff]
      %v431 = vld [vmem:[#allocation2 + $0x280] sm:$0xff]
      %v432 = vld [vmem:[#allocation2 + $0x288] sm:$0xff]
      %v433 = vld [vmem:[#allocation2 + $0x290] sm:$0xff]
      %v434 = vld [vmem:[#allocation2 + $0x298] sm:$0xff]
      %v435 = vld [vmem:[#allocation2 + $0x2a0] sm:$0xff]
      %v436 = vld [vmem:[#allocation2 + $0x2a8] sm:$0xff]
      %v437 = vld [vmem:[#allocation2 + $0x2b0] sm:$0xff]
      %v438 = vld [vmem:[#allocation2 + $0x2b8] sm:$0xff]
      %v439 = vld [vmem:[#allocation2 + $0x2c0] sm:$0xff]
      %v440 = vld [vmem:[#allocation2 + $0x2c8] sm:$0xff]
      %v441 = vld [vmem:[#allocation2 + $0x2d0] sm:$0xff]
      %v442 = vld [vmem:[#allocation2 + $0x2d8] sm:$0xff]
      %v443 = vld [vmem:[#allocation2 + $0x2e0] sm:$0xff]
      %v444 = vld [vmem:[#allocation2 + $0x2e8] sm:$0xff]
      %v445 = vld [vmem:[#allocation2 + $0x2f0] sm:$0xff]
      %v446 = vld [vmem:[#allocation2 + $0x2f8] sm:$0xff]
      %v447 = vld [vmem:[#allocation2 + $0x300] sm:$0xff]
      %v448 = vld [vmem:[#allocation2 + $0x308] sm:$0xff]
      %v449 = vld [vmem:[#allocation2 + $0x310] sm:$0xff]
      %v450 = vld [vmem:[#allocation2 + $0x318] sm:$0xff]
      %v451 = vld [vmem:[#allocation2 + $0x320] sm:$0xff]
      %v452 = vld [vmem:[#allocation2 + $0x328] sm:$0xff]
      %v453 = vld [vmem:[#allocation2 + $0x330] sm:$0xff]
      %v454 = vld [vmem:[#allocation2 + $0x338] sm:$0xff]
      %v455 = vld [vmem:[#allocation2 + $0x340] sm:$0xff]
      %v456 = vld [vmem:[#allocation2 + $0x348] sm:$0xff]
      %v457 = vld [vmem:[#allocation2 + $0x350] sm:$0xff]
      %v458 = vld [vmem:[#allocation2 + $0x358] sm:$0xff]
      %v459 = vld [vmem:[#allocation2 + $0x360] sm:$0xff]
      %v460 = vld [vmem:[#allocation2 + $0x368] sm:$0xff]
      %v461 = vld [vmem:[#allocation2 + $0x370] sm:$0xff]
      %v462 = vld [vmem:[#allocation2 + $0x378] sm:$0xff]
      %v463 = vmax.f32 %v351, %v355
      %v464 = vmax.f32 %v352, %v356
      %v465 = vmax.f32 %v353, %v357
      %v466 = vmax.f32 %v354, %v358
      %v467 = vmax.f32 %v355, %v359
      %v468 = vmax.f32 %v356, %v360
      %v469 = vmax.f32 %v357, %v361
      %v470 = vmax.f32 %v358, %v362
      %v471 = vmax.f32 %v359, %v363
      %v472 = vmax.f32 %v360, %v364
      %v473 = vmax.f32 %v361, %v365
      %v474 = vmax.f32 %v362, %v366
      %v475 = vmax.f32 %v363, %v367
      %v476 = vmax.f32 %v364, %v368
      %v477 = vmax.f32 %v365, %v369
      %v478 = vmax.f32 %v366, %v370
      %v479 = vmax.f32 %v367, %v371
      %v480 = vmax.f32 %v368, %v372
      %v481 = vmax.f32 %v369, %v373
      %v482 = vmax.f32 %v370, %v374
      %v483 = vmax.f32 %v371, %v375
      %v484 = vmax.f32 %v372, %v376
      %v485 = vmax.f32 %v373, %v377
      %v486 = vmax.f32 %v374, %v378
      %v487 = vmax.f32 %v375, %v379
      %v488 = vmax.f32 %v376, %v380
      %v489 = vmax.f32 %v377, %v381
      %v490 = vmax.f32 %v378, %v382
      %v491 = vmax.f32 %v379, %v383
      %v492 = vmax.f32 %v380, %v384
      %v493 = vmax.f32 %v381, %v385
      %v494 = vmax.f32 %v382, %v386
      %v495 = vmax.f32 %v383, %v387
      %v496 = vmax.f32 %v384, %v388
      %v497 = vmax.f32 %v385, %v389
      %v498 = vmax.f32 %v386, %v390
      %v499 = vmax.f32 %v387, %v391
      %v500 = vmax.f32 %v388, %v392
      %v501 = vmax.f32 %v389, %v393
      %v502 = vmax.f32 %v390, %v394
      %v503 = vmax.f32 %v391, %v395
      %v504 = vmax.f32 %v392, %v396
      %v505 = vmax.f32 %v393, %v397
      %v506 = vmax.f32 %v394, %v398
      %v507 = vmax.f32 %v395, %v399
      %v508 = vmax.f32 %v396, %v400
      %v509 = vmax.f32 %v397, %v401
      %v510 = vmax.f32 %v398, %v402
      %v511 = vmax.f32 %v399, %v403
      %v512 = vmax.f32 %v400, %v404
      %v513 = vmax.f32 %v401, %v405
      %v514 = vmax.f32 %v402, %v406
      %v515 = vmax.f32 %v403, %v407
      %v516 = vmax.f32 %v404, %v408
      %v517 = vmax.f32 %v405, %v409
      %v518 = vmax.f32 %v406, %v410
      %v519 = vmax.f32 %v407, %v411
      %v520 = vmax.f32 %v408, %v412
      %v521 = vmax.f32 %v409, %v413
      %v522 = vmax.f32 %v410, %v414
      %v523 = vmax.f32 %v411, %v415
      %v524 = vmax.f32 %v412, %v416
      %v525 = vmax.f32 %v413, %v417
      %v526 = vmax.f32 %v414, %v418
      %v527 = vmax.f32 %v415, %v419
      %v528 = vmax.f32 %v416, %v420
      %v529 = vmax.f32 %v417, %v421
      %v530 = vmax.f32 %v418, %v422
      %v531 = vmax.f32 %v419, %v423
      %v532 = vmax.f32 %v420, %v424
      %v533 = vmax.f32 %v421, %v425
      %v534 = vmax.f32 %v422, %v426
      %v535 = vmax.f32 %v423, %v427
      %v536 = vmax.f32 %v424, %v428
      %v537 = vmax.f32 %v425, %v429
      %v538 = vmax.f32 %v426, %v430
      %v539 = vmax.f32 %v427, %v431
      %v540 = vmax.f32 %v428, %v432
      %v541 = vmax.f32 %v429, %v433
      %v542 = vmax.f32 %v430, %v434
      %v543 = vmax.f32 %v431, %v435
      %v544 = vmax.f32 %v432, %v436
      %v545 = vmax.f32 %v433, %v437
      %v546 = vmax.f32 %v434, %v438
      %v547 = vmax.f32 %v435, %v439
      %v548 = vmax.f32 %v436, %v440
      %v549 = vmax.f32 %v437, %v441
      %v550 = vmax.f32 %v438, %v442
      %v551 = vmax.f32 %v439, %v443
      %v552 = vmax.f32 %v440, %v444
      %v553 = vmax.f32 %v441, %v445
      %v554 = vmax.f32 %v442, %v446
      %v555 = vmax.f32 %v443, %v447
      %v556 = vmax.f32 %v444, %v448
      %v557 = vmax.f32 %v445, %v449
      %v558 = vmax.f32 %v446, %v450
      %v559 = vmax.f32 %v463, %v359
      %v560 = vmax.f32 %v464, %v360
      %v561 = vmax.f32 %v465, %v361
      %v562 = vmax.f32 %v466, %v362
      %v563 = vmax.f32 %v467, %v363
      %v564 = vmax.f32 %v468, %v364
      %v565 = vmax.f32 %v469, %v365
      %v566 = vmax.f32 %v470, %v366
      %v567 = vmax.f32 %v471, %v367
      %v568 = vmax.f32 %v472, %v368
      %v569 = vmax.f32 %v473, %v369
      %v570 = vmax.f32 %v474, %v370
      %v571 = vmax.f32 %v475, %v371
      %v572 = vmax.f32 %v476, %v372
      %v573 = vmax.f32 %v477, %v373
      %v574 = vmax.f32 %v478, %v374
      %v575 = vmax.f32 %v479, %v375
      %v576 = vmax.f32 %v480, %v376
      %v577 = vmax.f32 %v481, %v377
      %v578 = vmax.f32 %v482, %v378
      %v579 = vmax.f32 %v483, %v379
      %v580 = vmax.f32 %v484, %v380
      %v581 = vmax.f32 %v485, %v381
      %v582 = vmax.f32 %v486, %v382
      %v583 = vmax.f32 %v487, %v383
      %v584 = vmax.f32 %v488, %v384
      %v585 = vmax.f32 %v489, %v385
      %v586 = vmax.f32 %v490, %v386
      %v587 = vmax.f32 %v491, %v387
      %v588 = vmax.f32 %v492, %v388
      %v589 = vmax.f32 %v493, %v389
      %v590 = vmax.f32 %v494, %v390
      %v591 = vmax.f32 %v495, %v391
      %v592 = vmax.f32 %v496, %v392
      %v593 = vmax.f32 %v497, %v393
      %v594 = vmax.f32 %v498, %v394
      %v595 = vmax.f32 %v499, %v395
      %v596 = vmax.f32 %v500, %v396
      %v597 = vmax.f32 %v501, %v397
      %v598 = vmax.f32 %v502, %v398
      %v599 = vmax.f32 %v503, %v399
      %v600 = vmax.f32 %v504, %v400
      %v601 = vmax.f32 %v505, %v401
      %v602 = vmax.f32 %v506, %v402
      %v603 = vmax.f32 %v507, %v403
      %v604 = vmax.f32 %v508, %v404
      %v605 = vmax.f32 %v509, %v405
      %v606 = vmax.f32 %v510, %v406
      %v607 = vmax.f32 %v511, %v407
      %v608 = vmax.f32 %v512, %v408
      %v609 = vmax.f32 %v513, %v409
      %v610 = vmax.f32 %v514, %v410
      %v611 = vmax.f32 %v515, %v411
      %v612 = vmax.f32 %v516, %v412
      %v613 = vmax.f32 %v517, %v413
      %v614 = vmax.f32 %v518, %v414
      %v615 = vmax.f32 %v519, %v415
      %v616 = vmax.f32 %v520, %v416
      %v617 = vmax.f32 %v521, %v417
      %v618 = vmax.f32 %v522, %v418
      %v619 = vmax.f32 %v523, %v419
      %v620 = vmax.f32 %v524, %v420
      %v621 = vmax.f32 %v525, %v421
      %v622 = vmax.f32 %v526, %v422
      %v623 = vmax.f32 %v527, %v423
      %v624 = vmax.f32 %v528, %v424
      %v625 = vmax.f32 %v529, %v425
      %v626 = vmax.f32 %v530, %v426
      %v627 = vmax.f32 %v531, %v427
      %v628 = vmax.f32 %v532, %v428
      %v629 = vmax.f32 %v533, %v429
      %v630 = vmax.f32 %v534, %v430
      %v631 = vmax.f32 %v535, %v431
      %v632 = vmax.f32 %v536, %v432
      %v633 = vmax.f32 %v537, %v433
      %v634 = vmax.f32 %v538, %v434
      %v635 = vmax.f32 %v539, %v435
      %v636 = vmax.f32 %v540, %v436
      %v637 = vmax.f32 %v541, %v437
      %v638 = vmax.f32 %v542, %v438
      %v639 = vmax.f32 %v543, %v439
      %v640 = vmax.f32 %v544, %v440
      %v641 = vmax.f32 %v545, %v441
      %v642 = vmax.f32 %v546, %v442
      %v643 = vmax.f32 %v547, %v443
      %v644 = vmax.f32 %v548, %v444
      %v645 = vmax.f32 %v549, %v445
      %v646 = vmax.f32 %v550, %v446
      %v647 = vmax.f32 %v551, %v447
      %v648 = vmax.f32 %v552, %v448
      %v649 = vmax.f32 %v553, %v449
      %v650 = vmax.f32 %v554, %v450
      %v651 = vmax.f32 %v555, %v451
      %v652 = vmax.f32 %v556, %v452
      %v653 = vmax.f32 %v557, %v453
      %v654 = vmax.f32 %v558, %v454
      %v655 = vmax.f32 %v559, %v363
      %v656 = vmax.f32 %v560, %v364
      %v657 = vmax.f32 %v561, %v365
      %v658 = vmax.f32 %v562, %v366
      %v659 = vmax.f32 %v563, %v367
      %v660 = vmax.f32 %v564, %v368
      %v661 = vmax.f32 %v565, %v369
      %v662 = vmax.f32 %v566, %v370
      %v663 = vmax.f32 %v567, %v371
      %v664 = vmax.f32 %v568, %v372
      %v665 = vmax.f32 %v569, %v373
      %v666 = vmax.f32 %v570, %v374
      %v667 = vmax.f32 %v571, %v375
      %v668 = vmax.f32 %v572, %v376
      %v669 = vmax.f32 %v573, %v377
      %v670 = vmax.f32 %v574, %v378
      %v671 = vmax.f32 %v575, %v379
      %v672 = vmax.f32 %v576, %v380
      %v673 = vmax.f32 %v577, %v381
      %v674 = vmax.f32 %v578, %v382
      %v675 = vmax.f32 %v579, %v383
      %v676 = vmax.f32 %v580, %v384
      %v677 = vmax.f32 %v581, %v385
      %v678 = vmax.f32 %v582, %v386
      %v679 = vmax.f32 %v583, %v387
      %v680 = vmax.f32 %v584, %v388
      %v681 = vmax.f32 %v585, %v389
      %v682 = vmax.f32 %v586, %v390
      %v683 = vmax.f32 %v587, %v391
      %v684 = vmax.f32 %v588, %v392
      %v685 = vmax.f32 %v589, %v393
      %v686 = vmax.f32 %v590, %v394
      %v687 = vmax.f32 %v591, %v395
      %v688 = vmax.f32 %v592, %v396
      %v689 = vmax.f32 %v593, %v397
      %v690 = vmax.f32 %v594, %v398
      %v691 = vmax.f32 %v595, %v399
      %v692 = vmax.f32 %v596, %v400
      %v693 = vmax.f32 %v597, %v401
      %v694 = vmax.f32 %v598, %v402
      %v695 = vmax.f32 %v599, %v403
      %v696 = vmax.f32 %v600, %v404
      %v697 = vmax.f32 %v601, %v405
      %v698 = vmax.f32 %v602, %v406
      %v699 = vmax.f32 %v603, %v407
      %v700 = vmax.f32 %v604, %v408
      %v701 = vmax.f32 %v605, %v409
      %v702 = vmax.f32 %v606, %v410
      %v703 = vmax.f32 %v607, %v411
      %v704 = vmax.f32 %v608, %v412
      %v705 = vmax.f32 %v609, %v413
      %v706 = vmax.f32 %v610, %v414
      %v707 = vmax.f32 %v611, %v415
      %v708 = vmax.f32 %v612, %v416
      %v709 = vmax.f32 %v613, %v417
      %v710 = vmax.f32 %v614, %v418
      %v711 = vmax.f32 %v615, %v419
      %v712 = vmax.f32 %v616, %v420
      %v713 = vmax.f32 %v617, %v421
      %v714 = vmax.f32 %v618, %v422
      %v715 = vmax.f32 %v619, %v423
      %v716 = vmax.f32 %v620, %v424
      %v717 = vmax.f32 %v621, %v425
      %v718 = vmax.f32 %v622, %v426
      %v719 = vmax.f32 %v623, %v427
      %v720 = vmax.f32 %v624, %v428
      %v721 = vmax.f32 %v625, %v429
      %v722 = vmax.f32 %v626, %v430
      %v723 = vmax.f32 %v627, %v431
      %v724 = vmax.f32 %v628, %v432
      %v725 = vmax.f32 %v629, %v433
      %v726 = vmax.f32 %v630, %v434
      %v727 = vmax.f32 %v631, %v435
      %v728 = vmax.f32 %v632, %v436
      %v729 = vmax.f32 %v633, %v437
      %v730 = vmax.f32 %v634, %v438
      %v731 = vmax.f32 %v635, %v439
      %v732 = vmax.f32 %v636, %v440
      %v733 = vmax.f32 %v637, %v441
      %v734 = vmax.f32 %v638, %v442
      %v735 = vmax.f32 %v639, %v443
      %v736 = vmax.f32 %v640, %v444
      %v737 = vmax.f32 %v641, %v445
      %v738 = vmax.f32 %v642, %v446
      %v739 = vmax.f32 %v643, %v447
      %v740 = vmax.f32 %v644, %v448
      %v741 = vmax.f32 %v645, %v449
      %v742 = vmax.f32 %v646, %v450
      %v743 = vmax.f32 %v647, %v451
      %v744 = vmax.f32 %v648, %v452
      %v745 = vmax.f32 %v649, %v453
      %v746 = vmax.f32 %v650, %v454
      %v747 = vmax.f32 %v651, %v455
      %v748 = vmax.f32 %v652, %v456
      %v749 = vmax.f32 %v653, %v457
      %v750 = vmax.f32 %v654, %v458
      %v751 = vmax.f32 %v655, %v367
      %v752 = vmax.f32 %v656, %v368
      %v753 = vmax.f32 %v657, %v369
      %v754 = vmax.f32 %v658, %v370
      %v755 = vmax.f32 %v659, %v371
      %v756 = vmax.f32 %v660, %v372
      %v757 = vmax.f32 %v661, %v373
      %v758 = vmax.f32 %v662, %v374
      %v759 = vmax.f32 %v663, %v375
      %v760 = vmax.f32 %v664, %v376
      %v761 = vmax.f32 %v665, %v377
      %v762 = vmax.f32 %v666, %v378
      %v763 = vmax.f32 %v667, %v379
      %v764 = vmax.f32 %v668, %v380
      %v765 = vmax.f32 %v669, %v381
      %v766 = vmax.f32 %v670, %v382
      %v767 = vmax.f32 %v671, %v383
      %v768 = vmax.f32 %v672, %v384
      %v769 = vmax.f32 %v673, %v385
      %v770 = vmax.f32 %v674, %v386
      %v771 = vmax.f32 %v675, %v387
      %v772 = vmax.f32 %v676, %v388
      %v773 = vmax.f32 %v677, %v389
      %v774 = vmax.f32 %v678, %v390
      %v775 = vmax.f32 %v679, %v391
      %v776 = vmax.f32 %v680, %v392
      %v777 = vmax.f32 %v681, %v393
      %v778 = vmax.f32 %v682, %v394
      %v779 = vmax.f32 %v683, %v395
      %v780 = vmax.f32 %v684, %v396
      %v781 = vmax.f32 %v685, %v397
      %v782 = vmax.f32 %v686, %v398
      %v783 = vmax.f32 %v687, %v399
      %v784 = vmax.f32 %v688, %v400
      %v785 = vmax.f32 %v689, %v401
      %v786 = vmax.f32 %v690, %v402
      %v787 = vmax.f32 %v691, %v403
      %v788 = vmax.f32 %v692, %v404
      %v789 = vmax.f32 %v693, %v405
      %v790 = vmax.f32 %v694, %v406
      %v791 = vmax.f32 %v695, %v407
      %v792 = vmax.f32 %v696, %v408
      %v793 = vmax.f32 %v697, %v409
      %v794 = vmax.f32 %v698, %v410
      %v795 = vmax.f32 %v699, %v411
      %v796 = vmax.f32 %v700, %v412
      %v797 = vmax.f32 %v701, %v413
      %v798 = vmax.f32 %v702, %v414
      %v799 = vmax.f32 %v703, %v415
      %v800 = vmax.f32 %v704, %v416
      %v801 = vmax.f32 %v705, %v417
      %v802 = vmax.f32 %v706, %v418
      %v803 = vmax.f32 %v707, %v419
      %v804 = vmax.f32 %v708, %v420
      %v805 = vmax.f32 %v709, %v421
      %v806 = vmax.f32 %v710, %v422
      %v807 = vmax.f32 %v711, %v423
      %v808 = vmax.f32 %v712, %v424
      %v809 = vmax.f32 %v713, %v425
      %v810 = vmax.f32 %v714, %v426
      %v811 = vmax.f32 %v715, %v427
      %v812 = vmax.f32 %v716, %v428
      %v813 = vmax.f32 %v717, %v429
      %v814 = vmax.f32 %v718, %v430
      %v815 = vmax.f32 %v719, %v431
      %v816 = vmax.f32 %v720, %v432
      %v817 = vmax.f32 %v721, %v433
      %v818 = vmax.f32 %v722, %v434
      %v819 = vmax.f32 %v723, %v435
      %v820 = vmax.f32 %v724, %v436
      %v821 = vmax.f32 %v725, %v437
      %v822 = vmax.f32 %v726, %v438
      %v823 = vmax.f32 %v727, %v439
      %v824 = vmax.f32 %v728, %v440
      %v825 = vmax.f32 %v729, %v441
      %v826 = vmax.f32 %v730, %v442
      %v827 = vmax.f32 %v731, %v443
      %v828 = vmax.f32 %v732, %v444
      %v829 = vmax.f32 %v733, %v445
      %v830 = vmax.f32 %v734, %v446
      %v831 = vmax.f32 %v735, %v447
      %v832 = vmax.f32 %v736, %v448
      %v833 = vmax.f32 %v737, %v449
      %v834 = vmax.f32 %v738, %v450
      %v835 = vmax.f32 %v739, %v451
      %v836 = vmax.f32 %v740, %v452
      %v837 = vmax.f32 %v741, %v453
      %v838 = vmax.f32 %v742, %v454
      %v839 = vmax.f32 %v743, %v455
      %v840 = vmax.f32 %v744, %v456
      %v841 = vmax.f32 %v745, %v457
      %v842 = vmax.f32 %v746, %v458
      %v843 = vmax.f32 %v747, %v459
      %v844 = vmax.f32 %v748, %v460
      %v845 = vmax.f32 %v749, %v461
      %v846 = vmax.f32 %v750, %v462
      %vm943 = vcmask 1046528
      %v944 = vrot.slane %v751, 1
      %v945 = vrot.slane %v752, 1
      %v946 = vsel %vm943, %v944, %v945
      %v947 = vrot.slane %v753, 1
      %v948 = vsel %vm943, %v945, %v947
      %v949 = vrot.slane %v754, 1
      %v950 = vsel %vm943, %v947, %v949
      %v951 = vrot.slane %v755, 1
      %v952 = vrot.slane %v756, 1
      %v953 = vsel %vm943, %v951, %v952
      %v954 = vrot.slane %v757, 1
      %v955 = vsel %vm943, %v952, %v954
      %v956 = vrot.slane %v758, 1
      %v957 = vsel %vm943, %v954, %v956
      %v958 = vrot.slane %v759, 1
      %v959 = vrot.slane %v760, 1
      %v960 = vsel %vm943, %v958, %v959
      %v961 = vrot.slane %v761, 1
      %v962 = vsel %vm943, %v959, %v961
      %v963 = vrot.slane %v762, 1
      %v964 = vsel %vm943, %v961, %v963
      %v965 = vrot.slane %v763, 1
      %v966 = vrot.slane %v764, 1
      %v967 = vsel %vm943, %v965, %v966
      %v968 = vrot.slane %v765, 1
      %v969 = vsel %vm943, %v966, %v968
      %v970 = vrot.slane %v766, 1
      %v971 = vsel %vm943, %v968, %v970
      %v972 = vrot.slane %v767, 1
      %v973 = vrot.slane %v768, 1
      %v974 = vsel %vm943, %v972, %v973
      %v975 = vrot.slane %v769, 1
      %v976 = vsel %vm943, %v973, %v975
      %v977 = vrot.slane %v770, 1
      %v978 = vsel %vm943, %v975, %v977
      %v979 = vrot.slane %v771, 1
      %v980 = vrot.slane %v772, 1
      %v981 = vsel %vm943, %v979, %v980
      %v982 = vrot.slane %v773, 1
      %v983 = vsel %vm943, %v980, %v982
      %v984 = vrot.slane %v774, 1
      %v985 = vsel %vm943, %v982, %v984
      %v986 = vrot.slane %v775, 1
      %v987 = vrot.slane %v776, 1
      %v988 = vsel %vm943, %v986, %v987
      %v989 = vrot.slane %v777, 1
      %v990 = vsel %vm943, %v987, %v989
      %v991 = vrot.slane %v778, 1
      %v992 = vsel %vm943, %v989, %v991
      %v993 = vrot.slane %v779, 1
      %v994 = vrot.slane %v780, 1
      %v995 = vsel %vm943, %v993, %v994
      %v996 = vrot.slane %v781, 1
      %v997 = vsel %vm943, %v994, %v996
      %v998 = vrot.slane %v782, 1
      %v999 = vsel %vm943, %v996, %v998
      %v1000 = vrot.slane %v783, 1
      %v1001 = vrot.slane %v784, 1
      %v1002 = vsel %vm943, %v1000, %v1001
      %v1003 = vrot.slane %v785, 1
      %v1004 = vsel %vm943, %v1001, %v1003
      %v1005 = vrot.slane %v786, 1
      %v1006 = vsel %vm943, %v1003, %v1005
      %v1007 = vrot.slane %v787, 1
      %v1008 = vrot.slane %v788, 1
      %v1009 = vsel %vm943, %v1007, %v1008
      %v1010 = vrot.slane %v789, 1
      %v1011 = vsel %vm943, %v1008, %v1010
      %v1012 = vrot.slane %v790, 1
      %v1013 = vsel %vm943, %v1010, %v1012
      %v1014 = vrot.slane %v791, 1
      %v1015 = vrot.slane %v792, 1
      %v1016 = vsel %vm943, %v1014, %v1015
      %v1017 = vrot.slane %v793, 1
      %v1018 = vsel %vm943, %v1015, %v1017
      %v1019 = vrot.slane %v794, 1
      %v1020 = vsel %vm943, %v1017, %v1019
      %v1021 = vrot.slane %v795, 1
      %v1022 = vrot.slane %v796, 1
      %v1023 = vsel %vm943, %v1021, %v1022
      %v1024 = vrot.slane %v797, 1
      %v1025 = vsel %vm943, %v1022, %v1024
      %v1026 = vrot.slane %v798, 1
      %v1027 = vsel %vm943, %v1024, %v1026
      %v1028 = vrot.slane %v799, 1
      %v1029 = vrot.slane %v800, 1
      %v1030 = vsel %vm943, %v1028, %v1029
      %v1031 = vrot.slane %v801, 1
      %v1032 = vsel %vm943, %v1029, %v1031
      %v1033 = vrot.slane %v802, 1
      %v1034 = vsel %vm943, %v1031, %v1033
      %v1035 = vrot.slane %v803, 1
      %v1036 = vrot.slane %v804, 1
      %v1037 = vsel %vm943, %v1035, %v1036
      %v1038 = vrot.slane %v805, 1
      %v1039 = vsel %vm943, %v1036, %v1038
      %v1040 = vrot.slane %v806, 1
      %v1041 = vsel %vm943, %v1038, %v1040
      %v1042 = vrot.slane %v807, 1
      %v1043 = vrot.slane %v808, 1
      %v1044 = vsel %vm943, %v1042, %v1043
      %v1045 = vrot.slane %v809, 1
      %v1046 = vsel %vm943, %v1043, %v1045
      %v1047 = vrot.slane %v810, 1
      %v1048 = vsel %vm943, %v1045, %v1047
      %v1049 = vrot.slane %v811, 1
      %v1050 = vrot.slane %v812, 1
      %v1051 = vsel %vm943, %v1049, %v1050
      %v1052 = vrot.slane %v813, 1
      %v1053 = vsel %vm943, %v1050, %v1052
      %v1054 = vrot.slane %v814, 1
      %v1055 = vsel %vm943, %v1052, %v1054
      %v1056 = vrot.slane %v815, 1
      %v1057 = vrot.slane %v816, 1
      %v1058 = vsel %vm943, %v1056, %v1057
      %v1059 = vrot.slane %v817, 1
      %v1060 = vsel %vm943, %v1057, %v1059
      %v1061 = vrot.slane %v818, 1
      %v1062 = vsel %vm943, %v1059, %v1061
      %v1063 = vrot.slane %v819, 1
      %v1064 = vrot.slane %v820, 1
      %v1065 = vsel %vm943, %v1063, %v1064
      %v1066 = vrot.slane %v821, 1
      %v1067 = vsel %vm943, %v1064, %v1066
      %v1068 = vrot.slane %v822, 1
      %v1069 = vsel %vm943, %v1066, %v1068
      %v1070 = vrot.slane %v823, 1
      %v1071 = vrot.slane %v824, 1
      %v1072 = vsel %vm943, %v1070, %v1071
      %v1073 = vrot.slane %v825, 1
      %v1074 = vsel %vm943, %v1071, %v1073
      %v1075 = vrot.slane %v826, 1
      %v1076 = vsel %vm943, %v1073, %v1075
      %v1077 = vrot.slane %v827, 1
      %v1078 = vrot.slane %v828, 1
      %v1079 = vsel %vm943, %v1077, %v1078
      %v1080 = vrot.slane %v829, 1
      %v1081 = vsel %vm943, %v1078, %v1080
      %v1082 = vrot.slane %v830, 1
      %v1083 = vsel %vm943, %v1080, %v1082
      %v1084 = vrot.slane %v831, 1
      %v1085 = vrot.slane %v832, 1
      %v1086 = vsel %vm943, %v1084, %v1085
      %v1087 = vrot.slane %v833, 1
      %v1088 = vsel %vm943, %v1085, %v1087
      %v1089 = vrot.slane %v834, 1
      %v1090 = vsel %vm943, %v1087, %v1089
      %v1091 = vrot.slane %v835, 1
      %v1092 = vrot.slane %v836, 1
      %v1093 = vsel %vm943, %v1091, %v1092
      %v1094 = vrot.slane %v837, 1
      %v1095 = vsel %vm943, %v1092, %v1094
      %v1096 = vrot.slane %v838, 1
      %v1097 = vsel %vm943, %v1094, %v1096
      %v1098 = vrot.slane %v839, 1
      %v1099 = vrot.slane %v840, 1
      %v1100 = vsel %vm943, %v1098, %v1099
      %v1101 = vrot.slane %v841, 1
      %v1102 = vsel %vm943, %v1099, %v1101
      %v1103 = vrot.slane %v842, 1
      %v1104 = vsel %vm943, %v1101, %v1103
      %v1105 = vrot.slane %v843, 1
      %v1106 = vrot.slane %v844, 1
      %v1107 = vsel %vm943, %v1105, %v1106
      %v1108 = vrot.slane %v845, 1
      %v1109 = vsel %vm943, %v1106, %v1108
      %v1110 = vrot.slane %v846, 1
      %v1111 = vsel %vm943, %v1108, %v1110
      %v1208 = vmax.f32 %v751, %v946
      %v1209 = vmax.f32 %v752, %v948
      %v1210 = vmax.f32 %v753, %v950
      %v1211 = vmax.f32 %v754, %v949
      %v1212 = vmax.f32 %v755, %v953
      %v1213 = vmax.f32 %v756, %v955
      %v1214 = vmax.f32 %v757, %v957
      %v1215 = vmax.f32 %v758, %v956
      %v1216 = vmax.f32 %v759, %v960
      %v1217 = vmax.f32 %v760, %v962
      %v1218 = vmax.f32 %v761, %v964
      %v1219 = vmax.f32 %v762, %v963
      %v1220 = vmax.f32 %v763, %v967
      %v1221 = vmax.f32 %v764, %v969
      %v1222 = vmax.f32 %v765, %v971
      %v1223 = vmax.f32 %v766, %v970
      %v1224 = vmax.f32 %v767, %v974
      %v1225 = vmax.f32 %v768, %v976
      %v1226 = vmax.f32 %v769, %v978
      %v1227 = vmax.f32 %v770, %v977
      %v1228 = vmax.f32 %v771, %v981
      %v1229 = vmax.f32 %v772, %v983
      %v1230 = vmax.f32 %v773, %v985
      %v1231 = vmax.f32 %v774, %v984
      %v1232 = vmax.f32 %v775, %v988
      %v1233 = vmax.f32 %v776, %v990
      %v1234 = vmax.f32 %v777, %v992
      %v1235 = vmax.f32 %v778, %v991
      %v1236 = vmax.f32 %v779, %v995
      %v1237 = vmax.f32 %v780, %v997
      %v1238 = vmax.f32 %v781, %v999
      %v1239 = vmax.f32 %v782, %v998
      %v1240 = vmax.f32 %v783, %v1002
      %v1241 = vmax.f32 %v784, %v1004
      %v1242 = vmax.f32 %v785, %v1006
      %v1243 = vmax.f32 %v786, %v1005
      %v1244 = vmax.f32 %v787, %v1009
      %v1245 = vmax.f32 %v788, %v1011
      %v1246 = vmax.f32 %v789, %v1013
      %v1247 = vmax.f32 %v790, %v1012
      %v1248 = vmax.f32 %v791, %v1016
      %v1249 = vmax.f32 %v792, %v1018
      %v1250 = vmax.f32 %v793, %v1020
      %v1251 = vmax.f32 %v794, %v1019
      %v1252 = vmax.f32 %v795, %v1023
      %v1253 = vmax.f32 %v796, %v1025
      %v1254 = vmax.f32 %v797, %v1027
      %v1255 = vmax.f32 %v798, %v1026
      %v1256 = vmax.f32 %v799, %v1030
      %v1257 = vmax.f32 %v800, %v1032
      %v1258 = vmax.f32 %v801, %v1034
      %v1259 = vmax.f32 %v802, %v1033
      %v1260 = vmax.f32 %v803, %v1037
      %v1261 = vmax.f32 %v804, %v1039
      %v1262 = vmax.f32 %v805, %v1041
      %v1263 = vmax.f32 %v806, %v1040
      %v1264 = vmax.f32 %v807, %v1044
      %v1265 = vmax.f32 %v808, %v1046
      %v1266 = vmax.f32 %v809, %v1048
      %v1267 = vmax.f32 %v810, %v1047
      %v1268 = vmax.f32 %v811, %v1051
      %v1269 = vmax.f32 %v812, %v1053
      %v1270 = vmax.f32 %v813, %v1055
      %v1271 = vmax.f32 %v814, %v1054
      %v1272 = vmax.f32 %v815, %v1058
      %v1273 = vmax.f32 %v816, %v1060
      %v1274 = vmax.f32 %v817, %v1062
      %v1275 = vmax.f32 %v818, %v1061
      %v1276 = vmax.f32 %v819, %v1065
      %v1277 = vmax.f32 %v820, %v1067
      %v1278 = vmax.f32 %v821, %v1069
      %v1279 = vmax.f32 %v822, %v1068
      %v1280 = vmax.f32 %v823, %v1072
      %v1281 = vmax.f32 %v824, %v1074
      %v1282 = vmax.f32 %v825, %v1076
      %v1283 = vmax.f32 %v826, %v1075
      %v1284 = vmax.f32 %v827, %v1079
      %v1285 = vmax.f32 %v828, %v1081
      %v1286 = vmax.f32 %v829, %v1083
      %v1287 = vmax.f32 %v830, %v1082
      %v1288 = vmax.f32 %v831, %v1086
      %v1289 = vmax.f32 %v832, %v1088
      %v1290 = vmax.f32 %v833, %v1090
      %v1291 = vmax.f32 %v834, %v1089
      %v1292 = vmax.f32 %v835, %v1093
      %v1293 = vmax.f32 %v836, %v1095
      %v1294 = vmax.f32 %v837, %v1097
      %v1295 = vmax.f32 %v838, %v1096
      %v1296 = vmax.f32 %v839, %v1100
      %v1297 = vmax.f32 %v840, %v1102
      %v1298 = vmax.f32 %v841, %v1104
      %v1299 = vmax.f32 %v842, %v1103
      %v1300 = vmax.f32 %v843, %v1107
      %v1301 = vmax.f32 %v844, %v1109
      %v1302 = vmax.f32 %v845, %v1111
      %v1303 = vmax.f32 %v846, %v1110
      %vm1304 = vcmask 1045504
      %v1305 = vrot.slane %v751, 2
      %v1306 = vrot.slane %v752, 2
      %v1307 = vsel %vm1304, %v1305, %v1306
      %v1308 = vrot.slane %v753, 2
      %v1309 = vsel %vm1304, %v1306, %v1308
      %v1310 = vrot.slane %v754, 2
      %v1311 = vsel %vm1304, %v1308, %v1310
      %v1312 = vrot.slane %v755, 2
      %v1313 = vrot.slane %v756, 2
      %v1314 = vsel %vm1304, %v1312, %v1313
      %v1315 = vrot.slane %v757, 2
      %v1316 = vsel %vm1304, %v1313, %v1315
      %v1317 = vrot.slane %v758, 2
      %v1318 = vsel %vm1304, %v1315, %v1317
      %v1319 = vrot.slane %v759, 2
      %v1320 = vrot.slane %v760, 2
      %v1321 = vsel %vm1304, %v1319, %v1320
      %v1322 = vrot.slane %v761, 2
      %v1323 = vsel %vm1304, %v1320, %v1322
      %v1324 = vrot.slane %v762, 2
      %v1325 = vsel %vm1304, %v1322, %v1324
      %v1326 = vrot.slane %v763, 2
      %v1327 = vrot.slane %v764, 2
      %v1328 = vsel %vm1304, %v1326, %v1327
      %v1329 = vrot.slane %v765, 2
      %v1330 = vsel %vm1304, %v1327, %v1329
      %v1331 = vrot.slane %v766, 2
      %v1332 = vsel %vm1304, %v1329, %v1331
      %v1333 = vrot.slane %v767, 2
      %v1334 = vrot.slane %v768, 2
      %v1335 = vsel %vm1304, %v1333, %v1334
      %v1336 = vrot.slane %v769, 2
      %v1337 = vsel %vm1304, %v1334, %v1336
      %v1338 = vrot.slane %v770, 2
      %v1339 = vsel %vm1304, %v1336, %v1338
      %v1340 = vrot.slane %v771, 2
      %v1341 = vrot.slane %v772, 2
      %v1342 = vsel %vm1304, %v1340, %v1341
      %v1343 = vrot.slane %v773, 2
      %v1344 = vsel %vm1304, %v1341, %v1343
      %v1345 = vrot.slane %v774, 2
      %v1346 = vsel %vm1304, %v1343, %v1345
      %v1347 = vrot.slane %v775, 2
      %v1348 = vrot.slane %v776, 2
      %v1349 = vsel %vm1304, %v1347, %v1348
      %v1350 = vrot.slane %v777, 2
      %v1351 = vsel %vm1304, %v1348, %v1350
      %v1352 = vrot.slane %v778, 2
      %v1353 = vsel %vm1304, %v1350, %v1352
      %v1354 = vrot.slane %v779, 2
      %v1355 = vrot.slane %v780, 2
      %v1356 = vsel %vm1304, %v1354, %v1355
      %v1357 = vrot.slane %v781, 2
      %v1358 = vsel %vm1304, %v1355, %v1357
      %v1359 = vrot.slane %v782, 2
      %v1360 = vsel %vm1304, %v1357, %v1359
      %v1361 = vrot.slane %v783, 2
      %v1362 = vrot.slane %v784, 2
      %v1363 = vsel %vm1304, %v1361, %v1362
      %v1364 = vrot.slane %v785, 2
      %v1365 = vsel %vm1304, %v1362, %v1364
      %v1366 = vrot.slane %v786, 2
      %v1367 = vsel %vm1304, %v1364, %v1366
      %v1368 = vrot.slane %v787, 2
      %v1369 = vrot.slane %v788, 2
      %v1370 = vsel %vm1304, %v1368, %v1369
      %v1371 = vrot.slane %v789, 2
      %v1372 = vsel %vm1304, %v1369, %v1371
      %v1373 = vrot.slane %v790, 2
      %v1374 = vsel %vm1304, %v1371, %v1373
      %v1375 = vrot.slane %v791, 2
      %v1376 = vrot.slane %v792, 2
      %v1377 = vsel %vm1304, %v1375, %v1376
      %v1378 = vrot.slane %v793, 2
      %v1379 = vsel %vm1304, %v1376, %v1378
      %v1380 = vrot.slane %v794, 2
      %v1381 = vsel %vm1304, %v1378, %v1380
      %v1382 = vrot.slane %v795, 2
      %v1383 = vrot.slane %v796, 2
      %v1384 = vsel %vm1304, %v1382, %v1383
      %v1385 = vrot.slane %v797, 2
      %v1386 = vsel %vm1304, %v1383, %v1385
      %v1387 = vrot.slane %v798, 2
      %v1388 = vsel %vm1304, %v1385, %v1387
      %v1389 = vrot.slane %v799, 2
      %v1390 = vrot.slane %v800, 2
      %v1391 = vsel %vm1304, %v1389, %v1390
      %v1392 = vrot.slane %v801, 2
      %v1393 = vsel %vm1304, %v1390, %v1392
      %v1394 = vrot.slane %v802, 2
      %v1395 = vsel %vm1304, %v1392, %v1394
      %v1396 = vrot.slane %v803, 2
      %v1397 = vrot.slane %v804, 2
      %v1398 = vsel %vm1304, %v1396, %v1397
      %v1399 = vrot.slane %v805, 2
      %v1400 = vsel %vm1304, %v1397, %v1399
      %v1401 = vrot.slane %v806, 2
      %v1402 = vsel %vm1304, %v1399, %v1401
      %v1403 = vrot.slane %v807, 2
      %v1404 = vrot.slane %v808, 2
      %v1405 = vsel %vm1304, %v1403, %v1404
      %v1406 = vrot.slane %v809, 2
      %v1407 = vsel %vm1304, %v1404, %v1406
      %v1408 = vrot.slane %v810, 2
      %v1409 = vsel %vm1304, %v1406, %v1408
      %v1410 = vrot.slane %v811, 2
      %v1411 = vrot.slane %v812, 2
      %v1412 = vsel %vm1304, %v1410, %v1411
      %v1413 = vrot.slane %v813, 2
      %v1414 = vsel %vm1304, %v1411, %v1413
      %v1415 = vrot.slane %v814, 2
      %v1416 = vsel %vm1304, %v1413, %v1415
      %v1417 = vrot.slane %v815, 2
      %v1418 = vrot.slane %v816, 2
      %v1419 = vsel %vm1304, %v1417, %v1418
      %v1420 = vrot.slane %v817, 2
      %v1421 = vsel %vm1304, %v1418, %v1420
      %v1422 = vrot.slane %v818, 2
      %v1423 = vsel %vm1304, %v1420, %v1422
      %v1424 = vrot.slane %v819, 2
      %v1425 = vrot.slane %v820, 2
      %v1426 = vsel %vm1304, %v1424, %v1425
      %v1427 = vrot.slane %v821, 2
      %v1428 = vsel %vm1304, %v1425, %v1427
      %v1429 = vrot.slane %v822, 2
      %v1430 = vsel %vm1304, %v1427, %v1429
      %v1431 = vrot.slane %v823, 2
      %v1432 = vrot.slane %v824, 2
      %v1433 = vsel %vm1304, %v1431, %v1432
      %v1434 = vrot.slane %v825, 2
      %v1435 = vsel %vm1304, %v1432, %v1434
      %v1436 = vrot.slane %v826, 2
      %v1437 = vsel %vm1304, %v1434, %v1436
      %v1438 = vrot.slane %v827, 2
      %v1439 = vrot.slane %v828, 2
      %v1440 = vsel %vm1304, %v1438, %v1439
      %v1441 = vrot.slane %v829, 2
      %v1442 = vsel %vm1304, %v1439, %v1441
      %v1443 = vrot.slane %v830, 2
      %v1444 = vsel %vm1304, %v1441, %v1443
      %v1445 = vrot.slane %v831, 2
      %v1446 = vrot.slane %v832, 2
      %v1447 = vsel %vm1304, %v1445, %v1446
      %v1448 = vrot.slane %v833, 2
      %v1449 = vsel %vm1304, %v1446, %v1448
      %v1450 = vrot.slane %v834, 2
      %v1451 = vsel %vm1304, %v1448, %v1450
      %v1452 = vrot.slane %v835, 2
      %v1453 = vrot.slane %v836, 2
      %v1454 = vsel %vm1304, %v1452, %v1453
      %v1455 = vrot.slane %v837, 2
      %v1456 = vsel %vm1304, %v1453, %v1455
      %v1457 = vrot.slane %v838, 2
      %v1458 = vsel %vm1304, %v1455, %v1457
      %v1459 = vrot.slane %v839, 2
      %v1460 = vrot.slane %v840, 2
      %v1461 = vsel %vm1304, %v1459, %v1460
      %v1462 = vrot.slane %v841, 2
      %v1463 = vsel %vm1304, %v1460, %v1462
      %v1464 = vrot.slane %v842, 2
      %v1465 = vsel %vm1304, %v1462, %v1464
      %v1466 = vrot.slane %v843, 2
      %v1467 = vrot.slane %v844, 2
      %v1468 = vsel %vm1304, %v1466, %v1467
      %v1469 = vrot.slane %v845, 2
      %v1470 = vsel %vm1304, %v1467, %v1469
      %v1471 = vrot.slane %v846, 2
      %v1472 = vsel %vm1304, %v1469, %v1471
      %v1569 = vmax.f32 %v1208, %v1307
      %v1570 = vmax.f32 %v1209, %v1309
      %v1571 = vmax.f32 %v1210, %v1311
      %v1572 = vmax.f32 %v1211, %v1310
      %v1573 = vmax.f32 %v1212, %v1314
      %v1574 = vmax.f32 %v1213, %v1316
      %v1575 = vmax.f32 %v1214, %v1318
      %v1576 = vmax.f32 %v1215, %v1317
      %v1577 = vmax.f32 %v1216, %v1321
      %v1578 = vmax.f32 %v1217, %v1323
      %v1579 = vmax.f32 %v1218, %v1325
      %v1580 = vmax.f32 %v1219, %v1324
      %v1581 = vmax.f32 %v1220, %v1328
      %v1582 = vmax.f32 %v1221, %v1330
      %v1583 = vmax.f32 %v1222, %v1332
      %v1584 = vmax.f32 %v1223, %v1331
      %v1585 = vmax.f32 %v1224, %v1335
      %v1586 = vmax.f32 %v1225, %v1337
      %v1587 = vmax.f32 %v1226, %v1339
      %v1588 = vmax.f32 %v1227, %v1338
      %v1589 = vmax.f32 %v1228, %v1342
      %v1590 = vmax.f32 %v1229, %v1344
      %v1591 = vmax.f32 %v1230, %v1346
      %v1592 = vmax.f32 %v1231, %v1345
      %v1593 = vmax.f32 %v1232, %v1349
      %v1594 = vmax.f32 %v1233, %v1351
      %v1595 = vmax.f32 %v1234, %v1353
      %v1596 = vmax.f32 %v1235, %v1352
      %v1597 = vmax.f32 %v1236, %v1356
      %v1598 = vmax.f32 %v1237, %v1358
      %v1599 = vmax.f32 %v1238, %v1360
      %v1600 = vmax.f32 %v1239, %v1359
      %v1601 = vmax.f32 %v1240, %v1363
      %v1602 = vmax.f32 %v1241, %v1365
      %v1603 = vmax.f32 %v1242, %v1367
      %v1604 = vmax.f32 %v1243, %v1366
      %v1605 = vmax.f32 %v1244, %v1370
      %v1606 = vmax.f32 %v1245, %v1372
      %v1607 = vmax.f32 %v1246, %v1374
      %v1608 = vmax.f32 %v1247, %v1373
      %v1609 = vmax.f32 %v1248, %v1377
      %v1610 = vmax.f32 %v1249, %v1379
      %v1611 = vmax.f32 %v1250, %v1381
      %v1612 = vmax.f32 %v1251, %v1380
      %v1613 = vmax.f32 %v1252, %v1384
      %v1614 = vmax.f32 %v1253, %v1386
      %v1615 = vmax.f32 %v1254, %v1388
      %v1616 = vmax.f32 %v1255, %v1387
      %v1617 = vmax.f32 %v1256, %v1391
      %v1618 = vmax.f32 %v1257, %v1393
      %v1619 = vmax.f32 %v1258, %v1395
      %v1620 = vmax.f32 %v1259, %v1394
      %v1621 = vmax.f32 %v1260, %v1398
      %v1622 = vmax.f32 %v1261, %v1400
      %v1623 = vmax.f32 %v1262, %v1402
      %v1624 = vmax.f32 %v1263, %v1401
      %v1625 = vmax.f32 %v1264, %v1405
      %v1626 = vmax.f32 %v1265, %v1407
      %v1627 = vmax.f32 %v1266, %v1409
      %v1628 = vmax.f32 %v1267, %v1408
      %v1629 = vmax.f32 %v1268, %v1412
      %v1630 = vmax.f32 %v1269, %v1414
      %v1631 = vmax.f32 %v1270, %v1416
      %v1632 = vmax.f32 %v1271, %v1415
      %v1633 = vmax.f32 %v1272, %v1419
      %v1634 = vmax.f32 %v1273, %v1421
      %v1635 = vmax.f32 %v1274, %v1423
      %v1636 = vmax.f32 %v1275, %v1422
      %v1637 = vmax.f32 %v1276, %v1426
      %v1638 = vmax.f32 %v1277, %v1428
      %v1639 = vmax.f32 %v1278, %v1430
      %v1640 = vmax.f32 %v1279, %v1429
      %v1641 = vmax.f32 %v1280, %v1433
      %v1642 = vmax.f32 %v1281, %v1435
      %v1643 = vmax.f32 %v1282, %v1437
      %v1644 = vmax.f32 %v1283, %v1436
      %v1645 = vmax.f32 %v1284, %v1440
      %v1646 = vmax.f32 %v1285, %v1442
      %v1647 = vmax.f32 %v1286, %v1444
      %v1648 = vmax.f32 %v1287, %v1443
      %v1649 = vmax.f32 %v1288, %v1447
      %v1650 = vmax.f32 %v1289, %v1449
      %v1651 = vmax.f32 %v1290, %v1451
      %v1652 = vmax.f32 %v1291, %v1450
      %v1653 = vmax.f32 %v1292, %v1454
      %v1654 = vmax.f32 %v1293, %v1456
      %v1655 = vmax.f32 %v1294, %v1458
      %v1656 = vmax.f32 %v1295, %v1457
      %v1657 = vmax.f32 %v1296, %v1461
      %v1658 = vmax.f32 %v1297, %v1463
      %v1659 = vmax.f32 %v1298, %v1465
      %v1660 = vmax.f32 %v1299, %v1464
      %v1661 = vmax.f32 %v1300, %v1468
      %v1662 = vmax.f32 %v1301, %v1470
      %v1663 = vmax.f32 %v1302, %v1472
      %v1664 = vmax.f32 %v1303, %v1471
      %vm1665 = vcmask 1044480
      %v1666 = vrot.slane %v751, 3
      %v1667 = vrot.slane %v752, 3
      %v1668 = vsel %vm1665, %v1666, %v1667
      %v1669 = vrot.slane %v753, 3
      %v1670 = vsel %vm1665, %v1667, %v1669
      %v1671 = vrot.slane %v754, 3
      %v1672 = vsel %vm1665, %v1669, %v1671
      %v1673 = vrot.slane %v755, 3
      %v1674 = vrot.slane %v756, 3
      %v1675 = vsel %vm1665, %v1673, %v1674
      %v1676 = vrot.slane %v757, 3
      %v1677 = vsel %vm1665, %v1674, %v1676
      %v1678 = vrot.slane %v758, 3
      %v1679 = vsel %vm1665, %v1676, %v1678
      %v1680 = vrot.slane %v759, 3
      %v1681 = vrot.slane %v760, 3
      %v1682 = vsel %vm1665, %v1680, %v1681
      %v1683 = vrot.slane %v761, 3
      %v1684 = vsel %vm1665, %v1681, %v1683
      %v1685 = vrot.slane %v762, 3
      %v1686 = vsel %vm1665, %v1683, %v1685
      %v1687 = vrot.slane %v763, 3
      %v1688 = vrot.slane %v764, 3
      %v1689 = vsel %vm1665, %v1687, %v1688
      %v1690 = vrot.slane %v765, 3
      %v1691 = vsel %vm1665, %v1688, %v1690
      %v1692 = vrot.slane %v766, 3
      %v1693 = vsel %vm1665, %v1690, %v1692
      %v1694 = vrot.slane %v767, 3
      %v1695 = vrot.slane %v768, 3
      %v1696 = vsel %vm1665, %v1694, %v1695
      %v1697 = vrot.slane %v769, 3
      %v1698 = vsel %vm1665, %v1695, %v1697
      %v1699 = vrot.slane %v770, 3
      %v1700 = vsel %vm1665, %v1697, %v1699
      %v1701 = vrot.slane %v771, 3
      %v1702 = vrot.slane %v772, 3
      %v1703 = vsel %vm1665, %v1701, %v1702
      %v1704 = vrot.slane %v773, 3
      %v1705 = vsel %vm1665, %v1702, %v1704
      %v1706 = vrot.slane %v774, 3
      %v1707 = vsel %vm1665, %v1704, %v1706
      %v1708 = vrot.slane %v775, 3
      %v1709 = vrot.slane %v776, 3
      %v1710 = vsel %vm1665, %v1708, %v1709
      %v1711 = vrot.slane %v777, 3
      %v1712 = vsel %vm1665, %v1709, %v1711
      %v1713 = vrot.slane %v778, 3
      %v1714 = vsel %vm1665, %v1711, %v1713
      %v1715 = vrot.slane %v779, 3
      %v1716 = vrot.slane %v780, 3
      %v1717 = vsel %vm1665, %v1715, %v1716
      %v1718 = vrot.slane %v781, 3
      %v1719 = vsel %vm1665, %v1716, %v1718
      %v1720 = vrot.slane %v782, 3
      %v1721 = vsel %vm1665, %v1718, %v1720
      %v1722 = vrot.slane %v783, 3
      %v1723 = vrot.slane %v784, 3
      %v1724 = vsel %vm1665, %v1722, %v1723
      %v1725 = vrot.slane %v785, 3
      %v1726 = vsel %vm1665, %v1723, %v1725
      %v1727 = vrot.slane %v786, 3
      %v1728 = vsel %vm1665, %v1725, %v1727
      %v1729 = vrot.slane %v787, 3
      %v1730 = vrot.slane %v788, 3
      %v1731 = vsel %vm1665, %v1729, %v1730
      %v1732 = vrot.slane %v789, 3
      %v1733 = vsel %vm1665, %v1730, %v1732
      %v1734 = vrot.slane %v790, 3
      %v1735 = vsel %vm1665, %v1732, %v1734
      %v1736 = vrot.slane %v791, 3
      %v1737 = vrot.slane %v792, 3
      %v1738 = vsel %vm1665, %v1736, %v1737
      %v1739 = vrot.slane %v793, 3
      %v1740 = vsel %vm1665, %v1737, %v1739
      %v1741 = vrot.slane %v794, 3
      %v1742 = vsel %vm1665, %v1739, %v1741
      %v1743 = vrot.slane %v795, 3
      %v1744 = vrot.slane %v796, 3
      %v1745 = vsel %vm1665, %v1743, %v1744
      %v1746 = vrot.slane %v797, 3
      %v1747 = vsel %vm1665, %v1744, %v1746
      %v1748 = vrot.slane %v798, 3
      %v1749 = vsel %vm1665, %v1746, %v1748
      %v1750 = vrot.slane %v799, 3
      %v1751 = vrot.slane %v800, 3
      %v1752 = vsel %vm1665, %v1750, %v1751
      %v1753 = vrot.slane %v801, 3
      %v1754 = vsel %vm1665, %v1751, %v1753
      %v1755 = vrot.slane %v802, 3
      %v1756 = vsel %vm1665, %v1753, %v1755
      %v1757 = vrot.slane %v803, 3
      %v1758 = vrot.slane %v804, 3
      %v1759 = vsel %vm1665, %v1757, %v1758
      %v1760 = vrot.slane %v805, 3
      %v1761 = vsel %vm1665, %v1758, %v1760
      %v1762 = vrot.slane %v806, 3
      %v1763 = vsel %vm1665, %v1760, %v1762
      %v1764 = vrot.slane %v807, 3
      %v1765 = vrot.slane %v808, 3
      %v1766 = vsel %vm1665, %v1764, %v1765
      %v1767 = vrot.slane %v809, 3
      %v1768 = vsel %vm1665, %v1765, %v1767
      %v1769 = vrot.slane %v810, 3
      %v1770 = vsel %vm1665, %v1767, %v1769
      %v1771 = vrot.slane %v811, 3
      %v1772 = vrot.slane %v812, 3
      %v1773 = vsel %vm1665, %v1771, %v1772
      %v1774 = vrot.slane %v813, 3
      %v1775 = vsel %vm1665, %v1772, %v1774
      %v1776 = vrot.slane %v814, 3
      %v1777 = vsel %vm1665, %v1774, %v1776
      %v1778 = vrot.slane %v815, 3
      %v1779 = vrot.slane %v816, 3
      %v1780 = vsel %vm1665, %v1778, %v1779
      %v1781 = vrot.slane %v817, 3
      %v1782 = vsel %vm1665, %v1779, %v1781
      %v1783 = vrot.slane %v818, 3
      %v1784 = vsel %vm1665, %v1781, %v1783
      %v1785 = vrot.slane %v819, 3
      %v1786 = vrot.slane %v820, 3
      %v1787 = vsel %vm1665, %v1785, %v1786
      %v1788 = vrot.slane %v821, 3
      %v1789 = vsel %vm1665, %v1786, %v1788
      %v1790 = vrot.slane %v822, 3
      %v1791 = vsel %vm1665, %v1788, %v1790
      %v1792 = vrot.slane %v823, 3
      %v1793 = vrot.slane %v824, 3
      %v1794 = vsel %vm1665, %v1792, %v1793
      %v1795 = vrot.slane %v825, 3
      %v1796 = vsel %vm1665, %v1793, %v1795
      %v1797 = vrot.slane %v826, 3
      %v1798 = vsel %vm1665, %v1795, %v1797
      %v1799 = vrot.slane %v827, 3
      %v1800 = vrot.slane %v828, 3
      %v1801 = vsel %vm1665, %v1799, %v1800
      %v1802 = vrot.slane %v829, 3
      %v1803 = vsel %vm1665, %v1800, %v1802
      %v1804 = vrot.slane %v830, 3
      %v1805 = vsel %vm1665, %v1802, %v1804
      %v1806 = vrot.slane %v831, 3
      %v1807 = vrot.slane %v832, 3
      %v1808 = vsel %vm1665, %v1806, %v1807
      %v1809 = vrot.slane %v833, 3
      %v1810 = vsel %vm1665, %v1807, %v1809
      %v1811 = vrot.slane %v834, 3
      %v1812 = vsel %vm1665, %v1809, %v1811
      %v1813 = vrot.slane %v835, 3
      %v1814 = vrot.slane %v836, 3
      %v1815 = vsel %vm1665, %v1813, %v1814
      %v1816 = vrot.slane %v837, 3
      %v1817 = vsel %vm1665, %v1814, %v1816
      %v1818 = vrot.slane %v838, 3
      %v1819 = vsel %vm1665, %v1816, %v1818
      %v1820 = vrot.slane %v839, 3
      %v1821 = vrot.slane %v840, 3
      %v1822 = vsel %vm1665, %v1820, %v1821
      %v1823 = vrot.slane %v841, 3
      %v1824 = vsel %vm1665, %v1821, %v1823
      %v1825 = vrot.slane %v842, 3
      %v1826 = vsel %vm1665, %v1823, %v1825
      %v1827 = vrot.slane %v843, 3
      %v1828 = vrot.slane %v844, 3
      %v1829 = vsel %vm1665, %v1827, %v1828
      %v1830 = vrot.slane %v845, 3
      %v1831 = vsel %vm1665, %v1828, %v1830
      %v1832 = vrot.slane %v846, 3
      %v1833 = vsel %vm1665, %v1830, %v1832
      %v1930 = vmax.f32 %v1569, %v1668
      %v1931 = vmax.f32 %v1570, %v1670
      %v1932 = vmax.f32 %v1571, %v1672
      %v1933 = vmax.f32 %v1572, %v1671
      %v1934 = vmax.f32 %v1573, %v1675
      %v1935 = vmax.f32 %v1574, %v1677
      %v1936 = vmax.f32 %v1575, %v1679
      %v1937 = vmax.f32 %v1576, %v1678
      %v1938 = vmax.f32 %v1577, %v1682
      %v1939 = vmax.f32 %v1578, %v1684
      %v1940 = vmax.f32 %v1579, %v1686
      %v1941 = vmax.f32 %v1580, %v1685
      %v1942 = vmax.f32 %v1581, %v1689
      %v1943 = vmax.f32 %v1582, %v1691
      %v1944 = vmax.f32 %v1583, %v1693
      %v1945 = vmax.f32 %v1584, %v1692
      %v1946 = vmax.f32 %v1585, %v1696
      %v1947 = vmax.f32 %v1586, %v1698
      %v1948 = vmax.f32 %v1587, %v1700
      %v1949 = vmax.f32 %v1588, %v1699
      %v1950 = vmax.f32 %v1589, %v1703
      %v1951 = vmax.f32 %v1590, %v1705
      %v1952 = vmax.f32 %v1591, %v1707
      %v1953 = vmax.f32 %v1592, %v1706
      %v1954 = vmax.f32 %v1593, %v1710
      %v1955 = vmax.f32 %v1594, %v1712
      %v1956 = vmax.f32 %v1595, %v1714
      %v1957 = vmax.f32 %v1596, %v1713
      %v1958 = vmax.f32 %v1597, %v1717
      %v1959 = vmax.f32 %v1598, %v1719
      %v1960 = vmax.f32 %v1599, %v1721
      %v1961 = vmax.f32 %v1600, %v1720
      %v1962 = vmax.f32 %v1601, %v1724
      %v1963 = vmax.f32 %v1602, %v1726
      %v1964 = vmax.f32 %v1603, %v1728
      %v1965 = vmax.f32 %v1604, %v1727
      %v1966 = vmax.f32 %v1605, %v1731
      %v1967 = vmax.f32 %v1606, %v1733
      %v1968 = vmax.f32 %v1607, %v1735
      %v1969 = vmax.f32 %v1608, %v1734
      %v1970 = vmax.f32 %v1609, %v1738
      %v1971 = vmax.f32 %v1610, %v1740
      %v1972 = vmax.f32 %v1611, %v1742
      %v1973 = vmax.f32 %v1612, %v1741
      %v1974 = vmax.f32 %v1613, %v1745
      %v1975 = vmax.f32 %v1614, %v1747
      %v1976 = vmax.f32 %v1615, %v1749
      %v1977 = vmax.f32 %v1616, %v1748
      %v1978 = vmax.f32 %v1617, %v1752
      %v1979 = vmax.f32 %v1618, %v1754
      %v1980 = vmax.f32 %v1619, %v1756
      %v1981 = vmax.f32 %v1620, %v1755
      %v1982 = vmax.f32 %v1621, %v1759
      %v1983 = vmax.f32 %v1622, %v1761
      %v1984 = vmax.f32 %v1623, %v1763
      %v1985 = vmax.f32 %v1624, %v1762
      %v1986 = vmax.f32 %v1625, %v1766
      %v1987 = vmax.f32 %v1626, %v1768
      %v1988 = vmax.f32 %v1627, %v1770
      %v1989 = vmax.f32 %v1628, %v1769
      %v1990 = vmax.f32 %v1629, %v1773
      %v1991 = vmax.f32 %v1630, %v1775
      %v1992 = vmax.f32 %v1631, %v1777
      %v1993 = vmax.f32 %v1632, %v1776
      %v1994 = vmax.f32 %v1633, %v1780
      %v1995 = vmax.f32 %v1634, %v1782
      %v1996 = vmax.f32 %v1635, %v1784
      %v1997 = vmax.f32 %v1636, %v1783
      %v1998 = vmax.f32 %v1637, %v1787
      %v1999 = vmax.f32 %v1638, %v1789
      %v2000 = vmax.f32 %v1639, %v1791
      %v2001 = vmax.f32 %v1640, %v1790
      %v2002 = vmax.f32 %v1641, %v1794
      %v2003 = vmax.f32 %v1642, %v1796
      %v2004 = vmax.f32 %v1643, %v1798
      %v2005 = vmax.f32 %v1644, %v1797
      %v2006 = vmax.f32 %v1645, %v1801
      %v2007 = vmax.f32 %v1646, %v1803
      %v2008 = vmax.f32 %v1647, %v1805
      %v2009 = vmax.f32 %v1648, %v1804
      %v2010 = vmax.f32 %v1649, %v1808
      %v2011 = vmax.f32 %v1650, %v1810
      %v2012 = vmax.f32 %v1651, %v1812
      %v2013 = vmax.f32 %v1652, %v1811
      %v2014 = vmax.f32 %v1653, %v1815
      %v2015 = vmax.f32 %v1654, %v1817
      %v2016 = vmax.f32 %v1655, %v1819
      %v2017 = vmax.f32 %v1656, %v1818
      %v2018 = vmax.f32 %v1657, %v1822
      %v2019 = vmax.f32 %v1658, %v1824
      %v2020 = vmax.f32 %v1659, %v1826
      %v2021 = vmax.f32 %v1660, %v1825
      %v2022 = vmax.f32 %v1661, %v1829
      %v2023 = vmax.f32 %v1662, %v1831
      %v2024 = vmax.f32 %v1663, %v1833
      %v2025 = vmax.f32 %v1664, %v1832
      %vm2026 = vcmask 1043456
      %v2027 = vrot.slane %v751, 4
      %v2028 = vrot.slane %v752, 4
      %v2029 = vsel %vm2026, %v2027, %v2028
      %v2030 = vrot.slane %v753, 4
      %v2031 = vsel %vm2026, %v2028, %v2030
      %v2032 = vrot.slane %v754, 4
      %v2033 = vsel %vm2026, %v2030, %v2032
      %v2034 = vrot.slane %v755, 4
      %v2035 = vrot.slane %v756, 4
      %v2036 = vsel %vm2026, %v2034, %v2035
      %v2037 = vrot.slane %v757, 4
      %v2038 = vsel %vm2026, %v2035, %v2037
      %v2039 = vrot.slane %v758, 4
      %v2040 = vsel %vm2026, %v2037, %v2039
      %v2041 = vrot.slane %v759, 4
      %v2042 = vrot.slane %v760, 4
      %v2043 = vsel %vm2026, %v2041, %v2042
      %v2044 = vrot.slane %v761, 4
      %v2045 = vsel %vm2026, %v2042, %v2044
      %v2046 = vrot.slane %v762, 4
      %v2047 = vsel %vm2026, %v2044, %v2046
      %v2048 = vrot.slane %v763, 4
      %v2049 = vrot.slane %v764, 4
      %v2050 = vsel %vm2026, %v2048, %v2049
      %v2051 = vrot.slane %v765, 4
      %v2052 = vsel %vm2026, %v2049, %v2051
      %v2053 = vrot.slane %v766, 4
      %v2054 = vsel %vm2026, %v2051, %v2053
      %v2055 = vrot.slane %v767, 4
      %v2056 = vrot.slane %v768, 4
      %v2057 = vsel %vm2026, %v2055, %v2056
      %v2058 = vrot.slane %v769, 4
      %v2059 = vsel %vm2026, %v2056, %v2058
      %v2060 = vrot.slane %v770, 4
      %v2061 = vsel %vm2026, %v2058, %v2060
      %v2062 = vrot.slane %v771, 4
      %v2063 = vrot.slane %v772, 4
      %v2064 = vsel %vm2026, %v2062, %v2063
      %v2065 = vrot.slane %v773, 4
      %v2066 = vsel %vm2026, %v2063, %v2065
      %v2067 = vrot.slane %v774, 4
      %v2068 = vsel %vm2026, %v2065, %v2067
      %v2069 = vrot.slane %v775, 4
      %v2070 = vrot.slane %v776, 4
      %v2071 = vsel %vm2026, %v2069, %v2070
      %v2072 = vrot.slane %v777, 4
      %v2073 = vsel %vm2026, %v2070, %v2072
      %v2074 = vrot.slane %v778, 4
      %v2075 = vsel %vm2026, %v2072, %v2074
      %v2076 = vrot.slane %v779, 4
      %v2077 = vrot.slane %v780, 4
      %v2078 = vsel %vm2026, %v2076, %v2077
      %v2079 = vrot.slane %v781, 4
      %v2080 = vsel %vm2026, %v2077, %v2079
      %v2081 = vrot.slane %v782, 4
      %v2082 = vsel %vm2026, %v2079, %v2081
      %v2083 = vrot.slane %v783, 4
      %v2084 = vrot.slane %v784, 4
      %v2085 = vsel %vm2026, %v2083, %v2084
      %v2086 = vrot.slane %v785, 4
      %v2087 = vsel %vm2026, %v2084, %v2086
      %v2088 = vrot.slane %v786, 4
      %v2089 = vsel %vm2026, %v2086, %v2088
      %v2090 = vrot.slane %v787, 4
      %v2091 = vrot.slane %v788, 4
      %v2092 = vsel %vm2026, %v2090, %v2091
      %v2093 = vrot.slane %v789, 4
      %v2094 = vsel %vm2026, %v2091, %v2093
      %v2095 = vrot.slane %v790, 4
      %v2096 = vsel %vm2026, %v2093, %v2095
      %v2097 = vrot.slane %v791, 4
      %v2098 = vrot.slane %v792, 4
      %v2099 = vsel %vm2026, %v2097, %v2098
      %v2100 = vrot.slane %v793, 4
      %v2101 = vsel %vm2026, %v2098, %v2100
      %v2102 = vrot.slane %v794, 4
      %v2103 = vsel %vm2026, %v2100, %v2102
      %v2104 = vrot.slane %v795, 4
      %v2105 = vrot.slane %v796, 4
      %v2106 = vsel %vm2026, %v2104, %v2105
      %v2107 = vrot.slane %v797, 4
      %v2108 = vsel %vm2026, %v2105, %v2107
      %v2109 = vrot.slane %v798, 4
      %v2110 = vsel %vm2026, %v2107, %v2109
      %v2111 = vrot.slane %v799, 4
      %v2112 = vrot.slane %v800, 4
      %v2113 = vsel %vm2026, %v2111, %v2112
      %v2114 = vrot.slane %v801, 4
      %v2115 = vsel %vm2026, %v2112, %v2114
      %v2116 = vrot.slane %v802, 4
      %v2117 = vsel %vm2026, %v2114, %v2116
      %v2118 = vrot.slane %v803, 4
      %v2119 = vrot.slane %v804, 4
      %v2120 = vsel %vm2026, %v2118, %v2119
      %v2121 = vrot.slane %v805, 4
      %v2122 = vsel %vm2026, %v2119, %v2121
      %v2123 = vrot.slane %v806, 4
      %v2124 = vsel %vm2026, %v2121, %v2123
      %v2125 = vrot.slane %v807, 4
      %v2126 = vrot.slane %v808, 4
      %v2127 = vsel %vm2026, %v2125, %v2126
      %v2128 = vrot.slane %v809, 4
      %v2129 = vsel %vm2026, %v2126, %v2128
      %v2130 = vrot.slane %v810, 4
      %v2131 = vsel %vm2026, %v2128, %v2130
      %v2132 = vrot.slane %v811, 4
      %v2133 = vrot.slane %v812, 4
      %v2134 = vsel %vm2026, %v2132, %v2133
      %v2135 = vrot.slane %v813, 4
      %v2136 = vsel %vm2026, %v2133, %v2135
      %v2137 = vrot.slane %v814, 4
      %v2138 = vsel %vm2026, %v2135, %v2137
      %v2139 = vrot.slane %v815, 4
      %v2140 = vrot.slane %v816, 4
      %v2141 = vsel %vm2026, %v2139, %v2140
      %v2142 = vrot.slane %v817, 4
      %v2143 = vsel %vm2026, %v2140, %v2142
      %v2144 = vrot.slane %v818, 4
      %v2145 = vsel %vm2026, %v2142, %v2144
      %v2146 = vrot.slane %v819, 4
      %v2147 = vrot.slane %v820, 4
      %v2148 = vsel %vm2026, %v2146, %v2147
      %v2149 = vrot.slane %v821, 4
      %v2150 = vsel %vm2026, %v2147, %v2149
      %v2151 = vrot.slane %v822, 4
      %v2152 = vsel %vm2026, %v2149, %v2151
      %v2153 = vrot.slane %v823, 4
      %v2154 = vrot.slane %v824, 4
      %v2155 = vsel %vm2026, %v2153, %v2154
      %v2156 = vrot.slane %v825, 4
      %v2157 = vsel %vm2026, %v2154, %v2156
      %v2158 = vrot.slane %v826, 4
      %v2159 = vsel %vm2026, %v2156, %v2158
      %v2160 = vrot.slane %v827, 4
      %v2161 = vrot.slane %v828, 4
      %v2162 = vsel %vm2026, %v2160, %v2161
      %v2163 = vrot.slane %v829, 4
      %v2164 = vsel %vm2026, %v2161, %v2163
      %v2165 = vrot.slane %v830, 4
      %v2166 = vsel %vm2026, %v2163, %v2165
      %v2167 = vrot.slane %v831, 4
      %v2168 = vrot.slane %v832, 4
      %v2169 = vsel %vm2026, %v2167, %v2168
      %v2170 = vrot.slane %v833, 4
      %v2171 = vsel %vm2026, %v2168, %v2170
      %v2172 = vrot.slane %v834, 4
      %v2173 = vsel %vm2026, %v2170, %v2172
      %v2174 = vrot.slane %v835, 4
      %v2175 = vrot.slane %v836, 4
      %v2176 = vsel %vm2026, %v2174, %v2175
      %v2177 = vrot.slane %v837, 4
      %v2178 = vsel %vm2026, %v2175, %v2177
      %v2179 = vrot.slane %v838, 4
      %v2180 = vsel %vm2026, %v2177, %v2179
      %v2181 = vrot.slane %v839, 4
      %v2182 = vrot.slane %v840, 4
      %v2183 = vsel %vm2026, %v2181, %v2182
      %v2184 = vrot.slane %v841, 4
      %v2185 = vsel %vm2026, %v2182, %v2184
      %v2186 = vrot.slane %v842, 4
      %v2187 = vsel %vm2026, %v2184, %v2186
      %v2188 = vrot.slane %v843, 4
      %v2189 = vrot.slane %v844, 4
      %v2190 = vsel %vm2026, %v2188, %v2189
      %v2191 = vrot.slane %v845, 4
      %v2192 = vsel %vm2026, %v2189, %v2191
      %v2193 = vrot.slane %v846, 4
      %v2194 = vsel %vm2026, %v2191, %v2193
      %v2291 = vmax.f32 %v1930, %v2029
      %v2292 = vmax.f32 %v1931, %v2031
      %v2293 = vmax.f32 %v1932, %v2033
      %v2294 = vmax.f32 %v1933, %v2032
      %v2295 = vmax.f32 %v1934, %v2036
      %v2296 = vmax.f32 %v1935, %v2038
      %v2297 = vmax.f32 %v1936, %v2040
      %v2298 = vmax.f32 %v1937, %v2039
      %v2299 = vmax.f32 %v1938, %v2043
      %v2300 = vmax.f32 %v1939, %v2045
      %v2301 = vmax.f32 %v1940, %v2047
      %v2302 = vmax.f32 %v1941, %v2046
      %v2303 = vmax.f32 %v1942, %v2050
      %v2304 = vmax.f32 %v1943, %v2052
      %v2305 = vmax.f32 %v1944, %v2054
      %v2306 = vmax.f32 %v1945, %v2053
      %v2307 = vmax.f32 %v1946, %v2057
      %v2308 = vmax.f32 %v1947, %v2059
      %v2309 = vmax.f32 %v1948, %v2061
      %v2310 = vmax.f32 %v1949, %v2060
      %v2311 = vmax.f32 %v1950, %v2064
      %v2312 = vmax.f32 %v1951, %v2066
      %v2313 = vmax.f32 %v1952, %v2068
      %v2314 = vmax.f32 %v1953, %v2067
      %v2315 = vmax.f32 %v1954, %v2071
      %v2316 = vmax.f32 %v1955, %v2073
      %v2317 = vmax.f32 %v1956, %v2075
      %v2318 = vmax.f32 %v1957, %v2074
      %v2319 = vmax.f32 %v1958, %v2078
      %v2320 = vmax.f32 %v1959, %v2080
      %v2321 = vmax.f32 %v1960, %v2082
      %v2322 = vmax.f32 %v1961, %v2081
      %v2323 = vmax.f32 %v1962, %v2085
      %v2324 = vmax.f32 %v1963, %v2087
      %v2325 = vmax.f32 %v1964, %v2089
      %v2326 = vmax.f32 %v1965, %v2088
      %v2327 = vmax.f32 %v1966, %v2092
      %v2328 = vmax.f32 %v1967, %v2094
      %v2329 = vmax.f32 %v1968, %v2096
      %v2330 = vmax.f32 %v1969, %v2095
      %v2331 = vmax.f32 %v1970, %v2099
      %v2332 = vmax.f32 %v1971, %v2101
      %v2333 = vmax.f32 %v1972, %v2103
      %v2334 = vmax.f32 %v1973, %v2102
      %v2335 = vmax.f32 %v1974, %v2106
      %v2336 = vmax.f32 %v1975, %v2108
      %v2337 = vmax.f32 %v1976, %v2110
      %v2338 = vmax.f32 %v1977, %v2109
      %v2339 = vmax.f32 %v1978, %v2113
      %v2340 = vmax.f32 %v1979, %v2115
      %v2341 = vmax.f32 %v1980, %v2117
      %v2342 = vmax.f32 %v1981, %v2116
      %v2343 = vmax.f32 %v1982, %v2120
      %v2344 = vmax.f32 %v1983, %v2122
      %v2345 = vmax.f32 %v1984, %v2124
      %v2346 = vmax.f32 %v1985, %v2123
      %v2347 = vmax.f32 %v1986, %v2127
      %v2348 = vmax.f32 %v1987, %v2129
      %v2349 = vmax.f32 %v1988, %v2131
      %v2350 = vmax.f32 %v1989, %v2130
      %v2351 = vmax.f32 %v1990, %v2134
      %v2352 = vmax.f32 %v1991, %v2136
      %v2353 = vmax.f32 %v1992, %v2138
      %v2354 = vmax.f32 %v1993, %v2137
      %v2355 = vmax.f32 %v1994, %v2141
      %v2356 = vmax.f32 %v1995, %v2143
      %v2357 = vmax.f32 %v1996, %v2145
      %v2358 = vmax.f32 %v1997, %v2144
      %v2359 = vmax.f32 %v1998, %v2148
      %v2360 = vmax.f32 %v1999, %v2150
      %v2361 = vmax.f32 %v2000, %v2152
      %v2362 = vmax.f32 %v2001, %v2151
      %v2363 = vmax.f32 %v2002, %v2155
      %v2364 = vmax.f32 %v2003, %v2157
      %v2365 = vmax.f32 %v2004, %v2159
      %v2366 = vmax.f32 %v2005, %v2158
      %v2367 = vmax.f32 %v2006, %v2162
      %v2368 = vmax.f32 %v2007, %v2164
      %v2369 = vmax.f32 %v2008, %v2166
      %v2370 = vmax.f32 %v2009, %v2165
      %v2371 = vmax.f32 %v2010, %v2169
      %v2372 = vmax.f32 %v2011, %v2171
      %v2373 = vmax.f32 %v2012, %v2173
      %v2374 = vmax.f32 %v2013, %v2172
      %v2375 = vmax.f32 %v2014, %v2176
      %v2376 = vmax.f32 %v2015, %v2178
      %v2377 = vmax.f32 %v2016, %v2180
      %v2378 = vmax.f32 %v2017, %v2179
      %v2379 = vmax.f32 %v2018, %v2183
      %v2380 = vmax.f32 %v2019, %v2185
      %v2381 = vmax.f32 %v2020, %v2187
      %v2382 = vmax.f32 %v2021, %v2186
      %v2383 = vmax.f32 %v2022, %v2190
      %v2384 = vmax.f32 %v2023, %v2192
      %v2385 = vmax.f32 %v2024, %v2194
      %v2386 = vmax.f32 %v2025, %v2193
      %v2387 = vmax.f32 %v2291, %v2295
      %v2388 = vmax.f32 %v2292, %v2296
      %v2389 = vmax.f32 %v2293, %v2297
      %v2390 = vmax.f32 %v2294, %v2298
      %v2391 = vmax.f32 %v2295, %v2299
      %v2392 = vmax.f32 %v2296, %v2300
      %v2393 = vmax.f32 %v2297, %v2301
      %v2394 = vmax.f32 %v2298, %v2302
      %v2395 = vmax.f32 %v2299, %v2303
      %v2396 = vmax.f32 %v2300, %v2304
      %v2397 = vmax.f32 %v2301, %v2305
      %v2398 = vmax.f32 %v2302, %v2306
      %v2399 = vmax.f32 %v2303, %v2307
      %v2400 = vmax.f32 %v2304, %v2308
      %v2401 = vmax.f32 %v2305, %v2309
      %v2402 = vmax.f32 %v2306, %v2310
      %v2403 = vmax.f32 %v2307, %v2311
      %v2404 = vmax.f32 %v2308, %v2312
      %v2405 = vmax.f32 %v2309, %v2313
      %v2406 = vmax.f32 %v2310, %v2314
      %v2407 = vmax.f32 %v2311, %v2315
      %v2408 = vmax.f32 %v2312, %v2316
      %v2409 = vmax.f32 %v2313, %v2317
      %v2410 = vmax.f32 %v2314, %v2318
      %v2411 = vmax.f32 %v2315, %v2319
      %v2412 = vmax.f32 %v2316, %v2320
      %v2413 = vmax.f32 %v2317, %v2321
      %v2414 = vmax.f32 %v2318, %v2322
      %v2415 = vmax.f32 %v2319, %v2323
      %v2416 = vmax.f32 %v2320, %v2324
      %v2417 = vmax.f32 %v2321, %v2325
      %v2418 = vmax.f32 %v2322, %v2326
      %v2419 = vmax.f32 %v2323, %v2327
      %v2420 = vmax.f32 %v2324, %v2328
      %v2421 = vmax.f32 %v2325, %v2329
      %v2422 = vmax.f32 %v2326, %v2330
      %v2423 = vmax.f32 %v2327, %v2331
      %v2424 = vmax.f32 %v2328, %v2332
      %v2425 = vmax.f32 %v2329, %v2333
      %v2426 = vmax.f32 %v2330, %v2334
      %v2427 = vmax.f32 %v2331, %v2335
      %v2428 = vmax.f32 %v2332, %v2336
      %v2429 = vmax.f32 %v2333, %v2337
      %v2430 = vmax.f32 %v2334, %v2338
      %v2431 = vmax.f32 %v2335, %v2339
      %v2432 = vmax.f32 %v2336, %v2340
      %v2433 = vmax.f32 %v2337, %v2341
      %v2434 = vmax.f32 %v2338, %v2342
      %v2435 = vmax.f32 %v2339, %v2343
      %v2436 = vmax.f32 %v2340, %v2344
      %v2437 = vmax.f32 %v2341, %v2345
      %v2438 = vmax.f32 %v2342, %v2346
      %v2439 = vmax.f32 %v2343, %v2347
      %v2440 = vmax.f32 %v2344, %v2348
      %v2441 = vmax.f32 %v2345, %v2349
      %v2442 = vmax.f32 %v2346, %v2350
      %v2443 = vmax.f32 %v2347, %v2351
      %v2444 = vmax.f32 %v2348, %v2352
      %v2445 = vmax.f32 %v2349, %v2353
      %v2446 = vmax.f32 %v2350, %v2354
      %v2447 = vmax.f32 %v2351, %v2355
      %v2448 = vmax.f32 %v2352, %v2356
      %v2449 = vmax.f32 %v2353, %v2357
      %v2450 = vmax.f32 %v2354, %v2358
      %v2451 = vmax.f32 %v2355, %v2359
      %v2452 = vmax.f32 %v2356, %v2360
      %v2453 = vmax.f32 %v2357, %v2361
      %v2454 = vmax.f32 %v2358, %v2362
      %v2455 = vmax.f32 %v2359, %v2363
      %v2456 = vmax.f32 %v2360, %v2364
      %v2457 = vmax.f32 %v2361, %v2365
      %v2458 = vmax.f32 %v2362, %v2366
      %v2459 = vmax.f32 %v2363, %v2367
      %v2460 = vmax.f32 %v2364, %v2368
      %v2461 = vmax.f32 %v2365, %v2369
      %v2462 = vmax.f32 %v2366, %v2370
      %v2463 = vmax.f32 %v2367, %v2371
      %v2464 = vmax.f32 %v2368, %v2372
      %v2465 = vmax.f32 %v2369, %v2373
      %v2466 = vmax.f32 %v2370, %v2374
      %v2467 = vmax.f32 %v2387, %v2299
      %v2468 = vmax.f32 %v2388, %v2300
      %v2469 = vmax.f32 %v2389, %v2301
      %v2470 = vmax.f32 %v2390, %v2302
      %v2471 = vmax.f32 %v2391, %v2303
      %v2472 = vmax.f32 %v2392, %v2304
      %v2473 = vmax.f32 %v2393, %v2305
      %v2474 = vmax.f32 %v2394, %v2306
      %v2475 = vmax.f32 %v2395, %v2307
      %v2476 = vmax.f32 %v2396, %v2308
      %v2477 = vmax.f32 %v2397, %v2309
      %v2478 = vmax.f32 %v2398, %v2310
      %v2479 = vmax.f32 %v2399, %v2311
      %v2480 = vmax.f32 %v2400, %v2312
      %v2481 = vmax.f32 %v2401, %v2313
      %v2482 = vmax.f32 %v2402, %v2314
      %v2483 = vmax.f32 %v2403, %v2315
      %v2484 = vmax.f32 %v2404, %v2316
      %v2485 = vmax.f32 %v2405, %v2317
      %v2486 = vmax.f32 %v2406, %v2318
      %v2487 = vmax.f32 %v2407, %v2319
      %v2488 = vmax.f32 %v2408, %v2320
      %v2489 = vmax.f32 %v2409, %v2321
      %v2490 = vmax.f32 %v2410, %v2322
      %v2491 = vmax.f32 %v2411, %v2323
      %v2492 = vmax.f32 %v2412, %v2324
      %v2493 = vmax.f32 %v2413, %v2325
      %v2494 = vmax.f32 %v2414, %v2326
      %v2495 = vmax.f32 %v2415, %v2327
      %v2496 = vmax.f32 %v2416, %v2328
      %v2497 = vmax.f32 %v2417, %v2329
      %v2498 = vmax.f32 %v2418, %v2330
      %v2499 = vmax.f32 %v2419, %v2331
      %v2500 = vmax.f32 %v2420, %v2332
      %v2501 = vmax.f32 %v2421, %v2333
      %v2502 = vmax.f32 %v2422, %v2334
      %v2503 = vmax.f32 %v2423, %v2335
      %v2504 = vmax.f32 %v2424, %v2336
      %v2505 = vmax.f32 %v2425, %v2337
      %v2506 = vmax.f32 %v2426, %v2338
      %v2507 = vmax.f32 %v2427, %v2339
      %v2508 = vmax.f32 %v2428, %v2340
      %v2509 = vmax.f32 %v2429, %v2341
      %v2510 = vmax.f32 %v2430, %v2342
      %v2511 = vmax.f32 %v2431, %v2343
      %v2512 = vmax.f32 %v2432, %v2344
      %v2513 = vmax.f32 %v2433, %v2345
      %v2514 = vmax.f32 %v2434, %v2346
      %v2515 = vmax.f32 %v2435, %v2347
      %v2516 = vmax.f32 %v2436, %v2348
      %v2517 = vmax.f32 %v2437, %v2349
      %v2518 = vmax.f32 %v2438, %v2350
      %v2519 = vmax.f32 %v2439, %v2351
      %v2520 = vmax.f32 %v2440, %v2352
      %v2521 = vmax.f32 %v2441, %v2353
      %v2522 = vmax.f32 %v2442, %v2354
      %v2523 = vmax.f32 %v2443, %v2355
      %v2524 = vmax.f32 %v2444, %v2356
      %v2525 = vmax.f32 %v2445, %v2357
      %v2526 = vmax.f32 %v2446, %v2358
      %v2527 = vmax.f32 %v2447, %v2359
      %v2528 = vmax.f32 %v2448, %v2360
      %v2529 = vmax.f32 %v2449, %v2361
      %v2530 = vmax.f32 %v2450, %v2362
      %v2531 = vmax.f32 %v2451, %v2363
      %v2532 = vmax.f32 %v2452, %v2364
      %v2533 = vmax.f32 %v2453, %v2365
      %v2534 = vmax.f32 %v2454, %v2366
      %v2535 = vmax.f32 %v2455, %v2367
      %v2536 = vmax.f32 %v2456, %v2368
      %v2537 = vmax.f32 %v2457, %v2369
      %v2538 = vmax.f32 %v2458, %v2370
      %v2539 = vmax.f32 %v2459, %v2371
      %v2540 = vmax.f32 %v2460, %v2372
      %v2541 = vmax.f32 %v2461, %v2373
      %v2542 = vmax.f32 %v2462, %v2374
      %v2543 = vmax.f32 %v2463, %v2375
      %v2544 = vmax.f32 %v2464, %v2376
      %v2545 = vmax.f32 %v2465, %v2377
      %v2546 = vmax.f32 %v2466, %v2378
      %v2547 = vmax.f32 %v2467, %v2303
      %v2548 = vmax.f32 %v2468, %v2304
      %v2549 = vmax.f32 %v2469, %v2305
      %v2550 = vmax.f32 %v2470, %v2306
      %v2551 = vmax.f32 %v2471, %v2307
      %v2552 = vmax.f32 %v2472, %v2308
      %v2553 = vmax.f32 %v2473, %v2309
      %v2554 = vmax.f32 %v2474, %v2310
      %v2555 = vmax.f32 %v2475, %v2311
      %v2556 = vmax.f32 %v2476, %v2312
      %v2557 = vmax.f32 %v2477, %v2313
      %v2558 = vmax.f32 %v2478, %v2314
      %v2559 = vmax.f32 %v2479, %v2315
      %v2560 = vmax.f32 %v2480, %v2316
      %v2561 = vmax.f32 %v2481, %v2317
      %v2562 = vmax.f32 %v2482, %v2318
      %v2563 = vmax.f32 %v2483, %v2319
      %v2564 = vmax.f32 %v2484, %v2320
      %v2565 = vmax.f32 %v2485, %v2321
      %v2566 = vmax.f32 %v2486, %v2322
      %v2567 = vmax.f32 %v2487, %v2323
      %v2568 = vmax.f32 %v2488, %v2324
      %v2569 = vmax.f32 %v2489, %v2325
      %v2570 = vmax.f32 %v2490, %v2326
      %v2571 = vmax.f32 %v2491, %v2327
      %v2572 = vmax.f32 %v2492, %v2328
      %v2573 = vmax.f32 %v2493, %v2329
      %v2574 = vmax.f32 %v2494, %v2330
      %v2575 = vmax.f32 %v2495, %v2331
      %v2576 = vmax.f32 %v2496, %v2332
      %v2577 = vmax.f32 %v2497, %v2333
      %v2578 = vmax.f32 %v2498, %v2334
      %v2579 = vmax.f32 %v2499, %v2335
      %v2580 = vmax.f32 %v2500, %v2336
      %v2581 = vmax.f32 %v2501, %v2337
      %v2582 = vmax.f32 %v2502, %v2338
      %v2583 = vmax.f32 %v2503, %v2339
      %v2584 = vmax.f32 %v2504, %v2340
      %v2585 = vmax.f32 %v2505, %v2341
      %v2586 = vmax.f32 %v2506, %v2342
      %v2587 = vmax.f32 %v2507, %v2343
      %v2588 = vmax.f32 %v2508, %v2344
      %v2589 = vmax.f32 %v2509, %v2345
      %v2590 = vmax.f32 %v2510, %v2346
      %v2591 = vmax.f32 %v2511, %v2347
      %v2592 = vmax.f32 %v2512, %v2348
      %v2593 = vmax.f32 %v2513, %v2349
      %v2594 = vmax.f32 %v2514, %v2350
      %v2595 = vmax.f32 %v2515, %v2351
      %v2596 = vmax.f32 %v2516, %v2352
      %v2597 = vmax.f32 %v2517, %v2353
      %v2598 = vmax.f32 %v2518, %v2354
      %v2599 = vmax.f32 %v2519, %v2355
      %v2600 = vmax.f32 %v2520, %v2356
      %v2601 = vmax.f32 %v2521, %v2357
      %v2602 = vmax.f32 %v2522, %v2358
      %v2603 = vmax.f32 %v2523, %v2359
      %v2604 = vmax.f32 %v2524, %v2360
      %v2605 = vmax.f32 %v2525, %v2361
      %v2606 = vmax.f32 %v2526, %v2362
      %v2607 = vmax.f32 %v2527, %v2363
      %v2608 = vmax.f32 %v2528, %v2364
      %v2609 = vmax.f32 %v2529, %v2365
      %v2610 = vmax.f32 %v2530, %v2366
      %v2611 = vmax.f32 %v2531, %v2367
      %v2612 = vmax.f32 %v2532, %v2368
      %v2613 = vmax.f32 %v2533, %v2369
      %v2614 = vmax.f32 %v2534, %v2370
      %v2615 = vmax.f32 %v2535, %v2371
      %v2616 = vmax.f32 %v2536, %v2372
      %v2617 = vmax.f32 %v2537, %v2373
      %v2618 = vmax.f32 %v2538, %v2374
      %v2619 = vmax.f32 %v2539, %v2375
      %v2620 = vmax.f32 %v2540, %v2376
      %v2621 = vmax.f32 %v2541, %v2377
      %v2622 = vmax.f32 %v2542, %v2378
      %v2623 = vmax.f32 %v2543, %v2379
      %v2624 = vmax.f32 %v2544, %v2380
      %v2625 = vmax.f32 %v2545, %v2381
      %v2626 = vmax.f32 %v2546, %v2382
      %v2627 = vmax.f32 %v2547, %v2307
      %v2628 = vmax.f32 %v2548, %v2308
      %v2629 = vmax.f32 %v2549, %v2309
      %v2630 = vmax.f32 %v2550, %v2310
      %v2631 = vmax.f32 %v2551, %v2311
      %v2632 = vmax.f32 %v2552, %v2312
      %v2633 = vmax.f32 %v2553, %v2313
      %v2634 = vmax.f32 %v2554, %v2314
      %v2635 = vmax.f32 %v2555, %v2315
      %v2636 = vmax.f32 %v2556, %v2316
      %v2637 = vmax.f32 %v2557, %v2317
      %v2638 = vmax.f32 %v2558, %v2318
      %v2639 = vmax.f32 %v2559, %v2319
      %v2640 = vmax.f32 %v2560, %v2320
      %v2641 = vmax.f32 %v2561, %v2321
      %v2642 = vmax.f32 %v2562, %v2322
      %v2643 = vmax.f32 %v2563, %v2323
      %v2644 = vmax.f32 %v2564, %v2324
      %v2645 = vmax.f32 %v2565, %v2325
      %v2646 = vmax.f32 %v2566, %v2326
      %v2647 = vmax.f32 %v2567, %v2327
      %v2648 = vmax.f32 %v2568, %v2328
      %v2649 = vmax.f32 %v2569, %v2329
      %v2650 = vmax.f32 %v2570, %v2330
      %v2651 = vmax.f32 %v2571, %v2331
      %v2652 = vmax.f32 %v2572, %v2332
      %v2653 = vmax.f32 %v2573, %v2333
      %v2654 = vmax.f32 %v2574, %v2334
      %v2655 = vmax.f32 %v2575, %v2335
      %v2656 = vmax.f32 %v2576, %v2336
      %v2657 = vmax.f32 %v2577, %v2337
      %v2658 = vmax.f32 %v2578, %v2338
      %v2659 = vmax.f32 %v2579, %v2339
      %v2660 = vmax.f32 %v2580, %v2340
      %v2661 = vmax.f32 %v2581, %v2341
      %v2662 = vmax.f32 %v2582, %v2342
      %v2663 = vmax.f32 %v2583, %v2343
      %v2664 = vmax.f32 %v2584, %v2344
      %v2665 = vmax.f32 %v2585, %v2345
      %v2666 = vmax.f32 %v2586, %v2346
      %v2667 = vmax.f32 %v2587, %v2347
      %v2668 = vmax.f32 %v2588, %v2348
      %v2669 = vmax.f32 %v2589, %v2349
      %v2670 = vmax.f32 %v2590, %v2350
      %v2671 = vmax.f32 %v2591, %v2351
      %v2672 = vmax.f32 %v2592, %v2352
      %v2673 = vmax.f32 %v2593, %v2353
      %v2674 = vmax.f32 %v2594, %v2354
      %v2675 = vmax.f32 %v2595, %v2355
      %v2676 = vmax.f32 %v2596, %v2356
      %v2677 = vmax.f32 %v2597, %v2357
      %v2678 = vmax.f32 %v2598, %v2358
      %v2679 = vmax.f32 %v2599, %v2359
      %v2680 = vmax.f32 %v2600, %v2360
      %v2681 = vmax.f32 %v2601, %v2361
      %v2682 = vmax.f32 %v2602, %v2362
      %v2683 = vmax.f32 %v2603, %v2363
      %v2684 = vmax.f32 %v2604, %v2364
      %v2685 = vmax.f32 %v2605, %v2365
      %v2686 = vmax.f32 %v2606, %v2366
      %v2687 = vmax.f32 %v2607, %v2367
      %v2688 = vmax.f32 %v2608, %v2368
      %v2689 = vmax.f32 %v2609, %v2369
      %v2690 = vmax.f32 %v2610, %v2370
      %v2691 = vmax.f32 %v2611, %v2371
      %v2692 = vmax.f32 %v2612, %v2372
      %v2693 = vmax.f32 %v2613, %v2373
      %v2694 = vmax.f32 %v2614, %v2374
      %v2695 = vmax.f32 %v2615, %v2375
      %v2696 = vmax.f32 %v2616, %v2376
      %v2697 = vmax.f32 %v2617, %v2377
      %v2698 = vmax.f32 %v2618, %v2378
      %v2699 = vmax.f32 %v2619, %v2379
      %v2700 = vmax.f32 %v2620, %v2380
      %v2701 = vmax.f32 %v2621, %v2381
      %v2702 = vmax.f32 %v2622, %v2382
      %v2703 = vmax.f32 %v2623, %v2383
      %v2704 = vmax.f32 %v2624, %v2384
      %v2705 = vmax.f32 %v2625, %v2385
      %v2706 = vmax.f32 %v2626, %v2386
      %v2787 = vrot.slane %v2627, 1
      %v2788 = vrot.slane %v2628, 1
      %v2789 = vsel %vm943, %v2787, %v2788
      %v2790 = vrot.slane %v2629, 1
      %v2791 = vsel %vm943, %v2788, %v2790
      %v2792 = vrot.slane %v2630, 1
      %v2793 = vsel %vm943, %v2790, %v2792
      %v2794 = vrot.slane %v2631, 1
      %v2795 = vrot.slane %v2632, 1
      %v2796 = vsel %vm943, %v2794, %v2795
      %v2797 = vrot.slane %v2633, 1
      %v2798 = vsel %vm943, %v2795, %v2797
      %v2799 = vrot.slane %v2634, 1
      %v2800 = vsel %vm943, %v2797, %v2799
      %v2801 = vrot.slane %v2635, 1
      %v2802 = vrot.slane %v2636, 1
      %v2803 = vsel %vm943, %v2801, %v2802
      %v2804 = vrot.slane %v2637, 1
      %v2805 = vsel %vm943, %v2802, %v2804
      %v2806 = vrot.slane %v2638, 1
      %v2807 = vsel %vm943, %v2804, %v2806
      %v2808 = vrot.slane %v2639, 1
      %v2809 = vrot.slane %v2640, 1
      %v2810 = vsel %vm943, %v2808, %v2809
      %v2811 = vrot.slane %v2641, 1
      %v2812 = vsel %vm943, %v2809, %v2811
      %v2813 = vrot.slane %v2642, 1
      %v2814 = vsel %vm943, %v2811, %v2813
      %v2815 = vrot.slane %v2643, 1
      %v2816 = vrot.slane %v2644, 1
      %v2817 = vsel %vm943, %v2815, %v2816
      %v2818 = vrot.slane %v2645, 1
      %v2819 = vsel %vm943, %v2816, %v2818
      %v2820 = vrot.slane %v2646, 1
      %v2821 = vsel %vm943, %v2818, %v2820
      %v2822 = vrot.slane %v2647, 1
      %v2823 = vrot.slane %v2648, 1
      %v2824 = vsel %vm943, %v2822, %v2823
      %v2825 = vrot.slane %v2649, 1
      %v2826 = vsel %vm943, %v2823, %v2825
      %v2827 = vrot.slane %v2650, 1
      %v2828 = vsel %vm943, %v2825, %v2827
      %v2829 = vrot.slane %v2651, 1
      %v2830 = vrot.slane %v2652, 1
      %v2831 = vsel %vm943, %v2829, %v2830
      %v2832 = vrot.slane %v2653, 1
      %v2833 = vsel %vm943, %v2830, %v2832
      %v2834 = vrot.slane %v2654, 1
      %v2835 = vsel %vm943, %v2832, %v2834
      %v2836 = vrot.slane %v2655, 1
      %v2837 = vrot.slane %v2656, 1
      %v2838 = vsel %vm943, %v2836, %v2837
      %v2839 = vrot.slane %v2657, 1
      %v2840 = vsel %vm943, %v2837, %v2839
      %v2841 = vrot.slane %v2658, 1
      %v2842 = vsel %vm943, %v2839, %v2841
      %v2843 = vrot.slane %v2659, 1
      %v2844 = vrot.slane %v2660, 1
      %v2845 = vsel %vm943, %v2843, %v2844
      %v2846 = vrot.slane %v2661, 1
      %v2847 = vsel %vm943, %v2844, %v2846
      %v2848 = vrot.slane %v2662, 1
      %v2849 = vsel %vm943, %v2846, %v2848
      %v2850 = vrot.slane %v2663, 1
      %v2851 = vrot.slane %v2664, 1
      %v2852 = vsel %vm943, %v2850, %v2851
      %v2853 = vrot.slane %v2665, 1
      %v2854 = vsel %vm943, %v2851, %v2853
      %v2855 = vrot.slane %v2666, 1
      %v2856 = vsel %vm943, %v2853, %v2855
      %v2857 = vrot.slane %v2667, 1
      %v2858 = vrot.slane %v2668, 1
      %v2859 = vsel %vm943, %v2857, %v2858
      %v2860 = vrot.slane %v2669, 1
      %v2861 = vsel %vm943, %v2858, %v2860
      %v2862 = vrot.slane %v2670, 1
      %v2863 = vsel %vm943, %v2860, %v2862
      %v2864 = vrot.slane %v2671, 1
      %v2865 = vrot.slane %v2672, 1
      %v2866 = vsel %vm943, %v2864, %v2865
      %v2867 = vrot.slane %v2673, 1
      %v2868 = vsel %vm943, %v2865, %v2867
      %v2869 = vrot.slane %v2674, 1
      %v2870 = vsel %vm943, %v2867, %v2869
      %v2871 = vrot.slane %v2675, 1
      %v2872 = vrot.slane %v2676, 1
      %v2873 = vsel %vm943, %v2871, %v2872
      %v2874 = vrot.slane %v2677, 1
      %v2875 = vsel %vm943, %v2872, %v2874
      %v2876 = vrot.slane %v2678, 1
      %v2877 = vsel %vm943, %v2874, %v2876
      %v2878 = vrot.slane %v2679, 1
      %v2879 = vrot.slane %v2680, 1
      %v2880 = vsel %vm943, %v2878, %v2879
      %v2881 = vrot.slane %v2681, 1
      %v2882 = vsel %vm943, %v2879, %v2881
      %v2883 = vrot.slane %v2682, 1
      %v2884 = vsel %vm943, %v2881, %v2883
      %v2885 = vrot.slane %v2683, 1
      %v2886 = vrot.slane %v2684, 1
      %v2887 = vsel %vm943, %v2885, %v2886
      %v2888 = vrot.slane %v2685, 1
      %v2889 = vsel %vm943, %v2886, %v2888
      %v2890 = vrot.slane %v2686, 1
      %v2891 = vsel %vm943, %v2888, %v2890
      %v2892 = vrot.slane %v2687, 1
      %v2893 = vrot.slane %v2688, 1
      %v2894 = vsel %vm943, %v2892, %v2893
      %v2895 = vrot.slane %v2689, 1
      %v2896 = vsel %vm943, %v2893, %v2895
      %v2897 = vrot.slane %v2690, 1
      %v2898 = vsel %vm943, %v2895, %v2897
      %v2899 = vrot.slane %v2691, 1
      %v2900 = vrot.slane %v2692, 1
      %v2901 = vsel %vm943, %v2899, %v2900
      %v2902 = vrot.slane %v2693, 1
      %v2903 = vsel %vm943, %v2900, %v2902
      %v2904 = vrot.slane %v2694, 1
      %v2905 = vsel %vm943, %v2902, %v2904
      %v2906 = vrot.slane %v2695, 1
      %v2907 = vrot.slane %v2696, 1
      %v2908 = vsel %vm943, %v2906, %v2907
      %v2909 = vrot.slane %v2697, 1
      %v2910 = vsel %vm943, %v2907, %v2909
      %v2911 = vrot.slane %v2698, 1
      %v2912 = vsel %vm943, %v2909, %v2911
      %v2913 = vrot.slane %v2699, 1
      %v2914 = vrot.slane %v2700, 1
      %v2915 = vsel %vm943, %v2913, %v2914
      %v2916 = vrot.slane %v2701, 1
      %v2917 = vsel %vm943, %v2914, %v2916
      %v2918 = vrot.slane %v2702, 1
      %v2919 = vsel %vm943, %v2916, %v2918
      %v2920 = vrot.slane %v2703, 1
      %v2921 = vrot.slane %v2704, 1
      %v2922 = vsel %vm943, %v2920, %v2921
      %v2923 = vrot.slane %v2705, 1
      %v2924 = vsel %vm943, %v2921, %v2923
      %v2925 = vrot.slane %v2706, 1
      %v2926 = vsel %vm943, %v2923, %v2925
      %v2987 = vmax.f32 %v2627, %v2789
      %v2988 = vmax.f32 %v2628, %v2791
      %v2989 = vmax.f32 %v2629, %v2793
      %v2990 = vmax.f32 %v2631, %v2796
      %v2991 = vmax.f32 %v2632, %v2798
      %v2992 = vmax.f32 %v2633, %v2800
      %v2993 = vmax.f32 %v2635, %v2803
      %v2994 = vmax.f32 %v2636, %v2805
      %v2995 = vmax.f32 %v2637, %v2807
      %v2996 = vmax.f32 %v2639, %v2810
      %v2997 = vmax.f32 %v2640, %v2812
      %v2998 = vmax.f32 %v2641, %v2814
      %v2999 = vmax.f32 %v2643, %v2817
      %v3000 = vmax.f32 %v2644, %v2819
      %v3001 = vmax.f32 %v2645, %v2821
      %v3002 = vmax.f32 %v2647, %v2824
      %v3003 = vmax.f32 %v2648, %v2826
      %v3004 = vmax.f32 %v2649, %v2828
      %v3005 = vmax.f32 %v2651, %v2831
      %v3006 = vmax.f32 %v2652, %v2833
      %v3007 = vmax.f32 %v2653, %v2835
      %v3008 = vmax.f32 %v2655, %v2838
      %v3009 = vmax.f32 %v2656, %v2840
      %v3010 = vmax.f32 %v2657, %v2842
      %v3011 = vmax.f32 %v2659, %v2845
      %v3012 = vmax.f32 %v2660, %v2847
      %v3013 = vmax.f32 %v2661, %v2849
      %v3014 = vmax.f32 %v2663, %v2852
      %v3015 = vmax.f32 %v2664, %v2854
      %v3016 = vmax.f32 %v2665, %v2856
      %v3017 = vmax.f32 %v2667, %v2859
      %v3018 = vmax.f32 %v2668, %v2861
      %v3019 = vmax.f32 %v2669, %v2863
      %v3020 = vmax.f32 %v2671, %v2866
      %v3021 = vmax.f32 %v2672, %v2868
      %v3022 = vmax.f32 %v2673, %v2870
      %v3023 = vmax.f32 %v2675, %v2873
      %v3024 = vmax.f32 %v2676, %v2875
      %v3025 = vmax.f32 %v2677, %v2877
      %v3026 = vmax.f32 %v2679, %v2880
      %v3027 = vmax.f32 %v2680, %v2882
      %v3028 = vmax.f32 %v2681, %v2884
      %v3029 = vmax.f32 %v2683, %v2887
      %v3030 = vmax.f32 %v2684, %v2889
      %v3031 = vmax.f32 %v2685, %v2891
      %v3032 = vmax.f32 %v2687, %v2894
      %v3033 = vmax.f32 %v2688, %v2896
      %v3034 = vmax.f32 %v2689, %v2898
      %v3035 = vmax.f32 %v2691, %v2901
      %v3036 = vmax.f32 %v2692, %v2903
      %v3037 = vmax.f32 %v2693, %v2905
      %v3038 = vmax.f32 %v2695, %v2908
      %v3039 = vmax.f32 %v2696, %v2910
      %v3040 = vmax.f32 %v2697, %v2912
      %v3041 = vmax.f32 %v2699, %v2915
      %v3042 = vmax.f32 %v2700, %v2917
      %v3043 = vmax.f32 %v2701, %v2919
      %v3044 = vmax.f32 %v2703, %v2922
      %v3045 = vmax.f32 %v2704, %v2924
      %v3046 = vmax.f32 %v2705, %v2926
      %v3047 = vrot.slane %v2627, 2
      %v3048 = vrot.slane %v2628, 2
      %v3049 = vsel %vm1304, %v3047, %v3048
      %v3050 = vrot.slane %v2629, 2
      %v3051 = vsel %vm1304, %v3048, %v3050
      %v3052 = vrot.slane %v2630, 2
      %v3053 = vsel %vm1304, %v3050, %v3052
      %v3054 = vrot.slane %v2631, 2
      %v3055 = vrot.slane %v2632, 2
      %v3056 = vsel %vm1304, %v3054, %v3055
      %v3057 = vrot.slane %v2633, 2
      %v3058 = vsel %vm1304, %v3055, %v3057
      %v3059 = vrot.slane %v2634, 2
      %v3060 = vsel %vm1304, %v3057, %v3059
      %v3061 = vrot.slane %v2635, 2
      %v3062 = vrot.slane %v2636, 2
      %v3063 = vsel %vm1304, %v3061, %v3062
      %v3064 = vrot.slane %v2637, 2
      %v3065 = vsel %vm1304, %v3062, %v3064
      %v3066 = vrot.slane %v2638, 2
      %v3067 = vsel %vm1304, %v3064, %v3066
      %v3068 = vrot.slane %v2639, 2
      %v3069 = vrot.slane %v2640, 2
      %v3070 = vsel %vm1304, %v3068, %v3069
      %v3071 = vrot.slane %v2641, 2
      %v3072 = vsel %vm1304, %v3069, %v3071
      %v3073 = vrot.slane %v2642, 2
      %v3074 = vsel %vm1304, %v3071, %v3073
      %v3075 = vrot.slane %v2643, 2
      %v3076 = vrot.slane %v2644, 2
      %v3077 = vsel %vm1304, %v3075, %v3076
      %v3078 = vrot.slane %v2645, 2
      %v3079 = vsel %vm1304, %v3076, %v3078
      %v3080 = vrot.slane %v2646, 2
      %v3081 = vsel %vm1304, %v3078, %v3080
      %v3082 = vrot.slane %v2647, 2
      %v3083 = vrot.slane %v2648, 2
      %v3084 = vsel %vm1304, %v3082, %v3083
      %v3085 = vrot.slane %v2649, 2
      %v3086 = vsel %vm1304, %v3083, %v3085
      %v3087 = vrot.slane %v2650, 2
      %v3088 = vsel %vm1304, %v3085, %v3087
      %v3089 = vrot.slane %v2651, 2
      %v3090 = vrot.slane %v2652, 2
      %v3091 = vsel %vm1304, %v3089, %v3090
      %v3092 = vrot.slane %v2653, 2
      %v3093 = vsel %vm1304, %v3090, %v3092
      %v3094 = vrot.slane %v2654, 2
      %v3095 = vsel %vm1304, %v3092, %v3094
      %v3096 = vrot.slane %v2655, 2
      %v3097 = vrot.slane %v2656, 2
      %v3098 = vsel %vm1304, %v3096, %v3097
      %v3099 = vrot.slane %v2657, 2
      %v3100 = vsel %vm1304, %v3097, %v3099
      %v3101 = vrot.slane %v2658, 2
      %v3102 = vsel %vm1304, %v3099, %v3101
      %v3103 = vrot.slane %v2659, 2
      %v3104 = vrot.slane %v2660, 2
      %v3105 = vsel %vm1304, %v3103, %v3104
      %v3106 = vrot.slane %v2661, 2
      %v3107 = vsel %vm1304, %v3104, %v3106
      %v3108 = vrot.slane %v2662, 2
      %v3109 = vsel %vm1304, %v3106, %v3108
      %v3110 = vrot.slane %v2663, 2
      %v3111 = vrot.slane %v2664, 2
      %v3112 = vsel %vm1304, %v3110, %v3111
      %v3113 = vrot.slane %v2665, 2
      %v3114 = vsel %vm1304, %v3111, %v3113
      %v3115 = vrot.slane %v2666, 2
      %v3116 = vsel %vm1304, %v3113, %v3115
      %v3117 = vrot.slane %v2667, 2
      %v3118 = vrot.slane %v2668, 2
      %v3119 = vsel %vm1304, %v3117, %v3118
      %v3120 = vrot.slane %v2669, 2
      %v3121 = vsel %vm1304, %v3118, %v3120
      %v3122 = vrot.slane %v2670, 2
      %v3123 = vsel %vm1304, %v3120, %v3122
      %v3124 = vrot.slane %v2671, 2
      %v3125 = vrot.slane %v2672, 2
      %v3126 = vsel %vm1304, %v3124, %v3125
      %v3127 = vrot.slane %v2673, 2
      %v3128 = vsel %vm1304, %v3125, %v3127
      %v3129 = vrot.slane %v2674, 2
      %v3130 = vsel %vm1304, %v3127, %v3129
      %v3131 = vrot.slane %v2675, 2
      %v3132 = vrot.slane %v2676, 2
      %v3133 = vsel %vm1304, %v3131, %v3132
      %v3134 = vrot.slane %v2677, 2
      %v3135 = vsel %vm1304, %v3132, %v3134
      %v3136 = vrot.slane %v2678, 2
      %v3137 = vsel %vm1304, %v3134, %v3136
      %v3138 = vrot.slane %v2679, 2
      %v3139 = vrot.slane %v2680, 2
      %v3140 = vsel %vm1304, %v3138, %v3139
      %v3141 = vrot.slane %v2681, 2
      %v3142 = vsel %vm1304, %v3139, %v3141
      %v3143 = vrot.slane %v2682, 2
      %v3144 = vsel %vm1304, %v3141, %v3143
      %v3145 = vrot.slane %v2683, 2
      %v3146 = vrot.slane %v2684, 2
      %v3147 = vsel %vm1304, %v3145, %v3146
      %v3148 = vrot.slane %v2685, 2
      %v3149 = vsel %vm1304, %v3146, %v3148
      %v3150 = vrot.slane %v2686, 2
      %v3151 = vsel %vm1304, %v3148, %v3150
      %v3152 = vrot.slane %v2687, 2
      %v3153 = vrot.slane %v2688, 2
      %v3154 = vsel %vm1304, %v3152, %v3153
      %v3155 = vrot.slane %v2689, 2
      %v3156 = vsel %vm1304, %v3153, %v3155
      %v3157 = vrot.slane %v2690, 2
      %v3158 = vsel %vm1304, %v3155, %v3157
      %v3159 = vrot.slane %v2691, 2
      %v3160 = vrot.slane %v2692, 2
      %v3161 = vsel %vm1304, %v3159, %v3160
      %v3162 = vrot.slane %v2693, 2
      %v3163 = vsel %vm1304, %v3160, %v3162
      %v3164 = vrot.slane %v2694, 2
      %v3165 = vsel %vm1304, %v3162, %v3164
      %v3166 = vrot.slane %v2695, 2
      %v3167 = vrot.slane %v2696, 2
      %v3168 = vsel %vm1304, %v3166, %v3167
      %v3169 = vrot.slane %v2697, 2
      %v3170 = vsel %vm1304, %v3167, %v3169
      %v3171 = vrot.slane %v2698, 2
      %v3172 = vsel %vm1304, %v3169, %v3171
      %v3173 = vrot.slane %v2699, 2
      %v3174 = vrot.slane %v2700, 2
      %v3175 = vsel %vm1304, %v3173, %v3174
      %v3176 = vrot.slane %v2701, 2
      %v3177 = vsel %vm1304, %v3174, %v3176
      %v3178 = vrot.slane %v2702, 2
      %v3179 = vsel %vm1304, %v3176, %v3178
      %v3180 = vrot.slane %v2703, 2
      %v3181 = vrot.slane %v2704, 2
      %v3182 = vsel %vm1304, %v3180, %v3181
      %v3183 = vrot.slane %v2705, 2
      %v3184 = vsel %vm1304, %v3181, %v3183
      %v3185 = vrot.slane %v2706, 2
      %v3186 = vsel %vm1304, %v3183, %v3185
      %v3247 = vmax.f32 %v2987, %v3049
      %v3248 = vmax.f32 %v2988, %v3051
      %v3249 = vmax.f32 %v2989, %v3053
      %v3250 = vmax.f32 %v2990, %v3056
      %v3251 = vmax.f32 %v2991, %v3058
      %v3252 = vmax.f32 %v2992, %v3060
      %v3253 = vmax.f32 %v2993, %v3063
      %v3254 = vmax.f32 %v2994, %v3065
      %v3255 = vmax.f32 %v2995, %v3067
      %v3256 = vmax.f32 %v2996, %v3070
      %v3257 = vmax.f32 %v2997, %v3072
      %v3258 = vmax.f32 %v2998, %v3074
      %v3259 = vmax.f32 %v2999, %v3077
      %v3260 = vmax.f32 %v3000, %v3079
      %v3261 = vmax.f32 %v3001, %v3081
      %v3262 = vmax.f32 %v3002, %v3084
      %v3263 = vmax.f32 %v3003, %v3086
      %v3264 = vmax.f32 %v3004, %v3088
      %v3265 = vmax.f32 %v3005, %v3091
      %v3266 = vmax.f32 %v3006, %v3093
      %v3267 = vmax.f32 %v3007, %v3095
      %v3268 = vmax.f32 %v3008, %v3098
      %v3269 = vmax.f32 %v3009, %v3100
      %v3270 = vmax.f32 %v3010, %v3102
      %v3271 = vmax.f32 %v3011, %v3105
      %v3272 = vmax.f32 %v3012, %v3107
      %v3273 = vmax.f32 %v3013, %v3109
      %v3274 = vmax.f32 %v3014, %v3112
      %v3275 = vmax.f32 %v3015, %v3114
      %v3276 = vmax.f32 %v3016, %v3116
      %v3277 = vmax.f32 %v3017, %v3119
      %v3278 = vmax.f32 %v3018, %v3121
      %v3279 = vmax.f32 %v3019, %v3123
      %v3280 = vmax.f32 %v3020, %v3126
      %v3281 = vmax.f32 %v3021, %v3128
      %v3282 = vmax.f32 %v3022, %v3130
      %v3283 = vmax.f32 %v3023, %v3133
      %v3284 = vmax.f32 %v3024, %v3135
      %v3285 = vmax.f32 %v3025, %v3137
      %v3286 = vmax.f32 %v3026, %v3140
      %v3287 = vmax.f32 %v3027, %v3142
      %v3288 = vmax.f32 %v3028, %v3144
      %v3289 = vmax.f32 %v3029, %v3147
      %v3290 = vmax.f32 %v3030, %v3149
      %v3291 = vmax.f32 %v3031, %v3151
      %v3292 = vmax.f32 %v3032, %v3154
      %v3293 = vmax.f32 %v3033, %v3156
      %v3294 = vmax.f32 %v3034, %v3158
      %v3295 = vmax.f32 %v3035, %v3161
      %v3296 = vmax.f32 %v3036, %v3163
      %v3297 = vmax.f32 %v3037, %v3165
      %v3298 = vmax.f32 %v3038, %v3168
      %v3299 = vmax.f32 %v3039, %v3170
      %v3300 = vmax.f32 %v3040, %v3172
      %v3301 = vmax.f32 %v3041, %v3175
      %v3302 = vmax.f32 %v3042, %v3177
      %v3303 = vmax.f32 %v3043, %v3179
      %v3304 = vmax.f32 %v3044, %v3182
      %v3305 = vmax.f32 %v3045, %v3184
      %v3306 = vmax.f32 %v3046, %v3186
      %v3307 = vrot.slane %v2627, 3
      %v3308 = vrot.slane %v2628, 3
      %v3309 = vsel %vm1665, %v3307, %v3308
      %v3310 = vrot.slane %v2629, 3
      %v3311 = vsel %vm1665, %v3308, %v3310
      %v3312 = vrot.slane %v2630, 3
      %v3313 = vsel %vm1665, %v3310, %v3312
      %v3314 = vrot.slane %v2631, 3
      %v3315 = vrot.slane %v2632, 3
      %v3316 = vsel %vm1665, %v3314, %v3315
      %v3317 = vrot.slane %v2633, 3
      %v3318 = vsel %vm1665, %v3315, %v3317
      %v3319 = vrot.slane %v2634, 3
      %v3320 = vsel %vm1665, %v3317, %v3319
      %v3321 = vrot.slane %v2635, 3
      %v3322 = vrot.slane %v2636, 3
      %v3323 = vsel %vm1665, %v3321, %v3322
      %v3324 = vrot.slane %v2637, 3
      %v3325 = vsel %vm1665, %v3322, %v3324
      %v3326 = vrot.slane %v2638, 3
      %v3327 = vsel %vm1665, %v3324, %v3326
      %v3328 = vrot.slane %v2639, 3
      %v3329 = vrot.slane %v2640, 3
      %v3330 = vsel %vm1665, %v3328, %v3329
      %v3331 = vrot.slane %v2641, 3
      %v3332 = vsel %vm1665, %v3329, %v3331
      %v3333 = vrot.slane %v2642, 3
      %v3334 = vsel %vm1665, %v3331, %v3333
      %v3335 = vrot.slane %v2643, 3
      %v3336 = vrot.slane %v2644, 3
      %v3337 = vsel %vm1665, %v3335, %v3336
      %v3338 = vrot.slane %v2645, 3
      %v3339 = vsel %vm1665, %v3336, %v3338
      %v3340 = vrot.slane %v2646, 3
      %v3341 = vsel %vm1665, %v3338, %v3340
      %v3342 = vrot.slane %v2647, 3
      %v3343 = vrot.slane %v2648, 3
      %v3344 = vsel %vm1665, %v3342, %v3343
      %v3345 = vrot.slane %v2649, 3
      %v3346 = vsel %vm1665, %v3343, %v3345
      %v3347 = vrot.slane %v2650, 3
      %v3348 = vsel %vm1665, %v3345, %v3347
      %v3349 = vrot.slane %v2651, 3
      %v3350 = vrot.slane %v2652, 3
      %v3351 = vsel %vm1665, %v3349, %v3350
      %v3352 = vrot.slane %v2653, 3
      %v3353 = vsel %vm1665, %v3350, %v3352
      %v3354 = vrot.slane %v2654, 3
      %v3355 = vsel %vm1665, %v3352, %v3354
      %v3356 = vrot.slane %v2655, 3
      %v3357 = vrot.slane %v2656, 3
      %v3358 = vsel %vm1665, %v3356, %v3357
      %v3359 = vrot.slane %v2657, 3
      %v3360 = vsel %vm1665, %v3357, %v3359
      %v3361 = vrot.slane %v2658, 3
      %v3362 = vsel %vm1665, %v3359, %v3361
      %v3363 = vrot.slane %v2659, 3
      %v3364 = vrot.slane %v2660, 3
      %v3365 = vsel %vm1665, %v3363, %v3364
      %v3366 = vrot.slane %v2661, 3
      %v3367 = vsel %vm1665, %v3364, %v3366
      %v3368 = vrot.slane %v2662, 3
      %v3369 = vsel %vm1665, %v3366, %v3368
      %v3370 = vrot.slane %v2663, 3
      %v3371 = vrot.slane %v2664, 3
      %v3372 = vsel %vm1665, %v3370, %v3371
      %v3373 = vrot.slane %v2665, 3
      %v3374 = vsel %vm1665, %v3371, %v3373
      %v3375 = vrot.slane %v2666, 3
      %v3376 = vsel %vm1665, %v3373, %v3375
      %v3377 = vrot.slane %v2667, 3
      %v3378 = vrot.slane %v2668, 3
      %v3379 = vsel %vm1665, %v3377, %v3378
      %v3380 = vrot.slane %v2669, 3
      %v3381 = vsel %vm1665, %v3378, %v3380
      %v3382 = vrot.slane %v2670, 3
      %v3383 = vsel %vm1665, %v3380, %v3382
      %v3384 = vrot.slane %v2671, 3
      %v3385 = vrot.slane %v2672, 3
      %v3386 = vsel %vm1665, %v3384, %v3385
      %v3387 = vrot.slane %v2673, 3
      %v3388 = vsel %vm1665, %v3385, %v3387
      %v3389 = vrot.slane %v2674, 3
      %v3390 = vsel %vm1665, %v3387, %v3389
      %v3391 = vrot.slane %v2675, 3
      %v3392 = vrot.slane %v2676, 3
      %v3393 = vsel %vm1665, %v3391, %v3392
      %v3394 = vrot.slane %v2677, 3
      %v3395 = vsel %vm1665, %v3392, %v3394
      %v3396 = vrot.slane %v2678, 3
      %v3397 = vsel %vm1665, %v3394, %v3396
      %v3398 = vrot.slane %v2679, 3
      %v3399 = vrot.slane %v2680, 3
      %v3400 = vsel %vm1665, %v3398, %v3399
      %v3401 = vrot.slane %v2681, 3
      %v3402 = vsel %vm1665, %v3399, %v3401
      %v3403 = vrot.slane %v2682, 3
      %v3404 = vsel %vm1665, %v3401, %v3403
      %v3405 = vrot.slane %v2683, 3
      %v3406 = vrot.slane %v2684, 3
      %v3407 = vsel %vm1665, %v3405, %v3406
      %v3408 = vrot.slane %v2685, 3
      %v3409 = vsel %vm1665, %v3406, %v3408
      %v3410 = vrot.slane %v2686, 3
      %v3411 = vsel %vm1665, %v3408, %v3410
      %v3412 = vrot.slane %v2687, 3
      %v3413 = vrot.slane %v2688, 3
      %v3414 = vsel %vm1665, %v3412, %v3413
      %v3415 = vrot.slane %v2689, 3
      %v3416 = vsel %vm1665, %v3413, %v3415
      %v3417 = vrot.slane %v2690, 3
      %v3418 = vsel %vm1665, %v3415, %v3417
      %v3419 = vrot.slane %v2691, 3
      %v3420 = vrot.slane %v2692, 3
      %v3421 = vsel %vm1665, %v3419, %v3420
      %v3422 = vrot.slane %v2693, 3
      %v3423 = vsel %vm1665, %v3420, %v3422
      %v3424 = vrot.slane %v2694, 3
      %v3425 = vsel %vm1665, %v3422, %v3424
      %v3426 = vrot.slane %v2695, 3
      %v3427 = vrot.slane %v2696, 3
      %v3428 = vsel %vm1665, %v3426, %v3427
      %v3429 = vrot.slane %v2697, 3
      %v3430 = vsel %vm1665, %v3427, %v3429
      %v3431 = vrot.slane %v2698, 3
      %v3432 = vsel %vm1665, %v3429, %v3431
      %v3433 = vrot.slane %v2699, 3
      %v3434 = vrot.slane %v2700, 3
      %v3435 = vsel %vm1665, %v3433, %v3434
      %v3436 = vrot.slane %v2701, 3
      %v3437 = vsel %vm1665, %v3434, %v3436
      %v3438 = vrot.slane %v2702, 3
      %v3439 = vsel %vm1665, %v3436, %v3438
      %v3440 = vrot.slane %v2703, 3
      %v3441 = vrot.slane %v2704, 3
      %v3442 = vsel %vm1665, %v3440, %v3441
      %v3443 = vrot.slane %v2705, 3
      %v3444 = vsel %vm1665, %v3441, %v3443
      %v3445 = vrot.slane %v2706, 3
      %v3446 = vsel %vm1665, %v3443, %v3445
      %v3507 = vmax.f32 %v3247, %v3309
      %v3508 = vmax.f32 %v3248, %v3311
      %v3509 = vmax.f32 %v3249, %v3313
      %v3510 = vmax.f32 %v3250, %v3316
      %v3511 = vmax.f32 %v3251, %v3318
      %v3512 = vmax.f32 %v3252, %v3320
      %v3513 = vmax.f32 %v3253, %v3323
      %v3514 = vmax.f32 %v3254, %v3325
      %v3515 = vmax.f32 %v3255, %v3327
      %v3516 = vmax.f32 %v3256, %v3330
      %v3517 = vmax.f32 %v3257, %v3332
      %v3518 = vmax.f32 %v3258, %v3334
      %v3519 = vmax.f32 %v3259, %v3337
      %v3520 = vmax.f32 %v3260, %v3339
      %v3521 = vmax.f32 %v3261, %v3341
      %v3522 = vmax.f32 %v3262, %v3344
      %v3523 = vmax.f32 %v3263, %v3346
      %v3524 = vmax.f32 %v3264, %v3348
      %v3525 = vmax.f32 %v3265, %v3351
      %v3526 = vmax.f32 %v3266, %v3353
      %v3527 = vmax.f32 %v3267, %v3355
      %v3528 = vmax.f32 %v3268, %v3358
      %v3529 = vmax.f32 %v3269, %v3360
      %v3530 = vmax.f32 %v3270, %v3362
      %v3531 = vmax.f32 %v3271, %v3365
      %v3532 = vmax.f32 %v3272, %v3367
      %v3533 = vmax.f32 %v3273, %v3369
      %v3534 = vmax.f32 %v3274, %v3372
      %v3535 = vmax.f32 %v3275, %v3374
      %v3536 = vmax.f32 %v3276, %v3376
      %v3537 = vmax.f32 %v3277, %v3379
      %v3538 = vmax.f32 %v3278, %v3381
      %v3539 = vmax.f32 %v3279, %v3383
      %v3540 = vmax.f32 %v3280, %v3386
      %v3541 = vmax.f32 %v3281, %v3388
      %v3542 = vmax.f32 %v3282, %v3390
      %v3543 = vmax.f32 %v3283, %v3393
      %v3544 = vmax.f32 %v3284, %v3395
      %v3545 = vmax.f32 %v3285, %v3397
      %v3546 = vmax.f32 %v3286, %v3400
      %v3547 = vmax.f32 %v3287, %v3402
      %v3548 = vmax.f32 %v3288, %v3404
      %v3549 = vmax.f32 %v3289, %v3407
      %v3550 = vmax.f32 %v3290, %v3409
      %v3551 = vmax.f32 %v3291, %v3411
      %v3552 = vmax.f32 %v3292, %v3414
      %v3553 = vmax.f32 %v3293, %v3416
      %v3554 = vmax.f32 %v3294, %v3418
      %v3555 = vmax.f32 %v3295, %v3421
      %v3556 = vmax.f32 %v3296, %v3423
      %v3557 = vmax.f32 %v3297, %v3425
      %v3558 = vmax.f32 %v3298, %v3428
      %v3559 = vmax.f32 %v3299, %v3430
      %v3560 = vmax.f32 %v3300, %v3432
      %v3561 = vmax.f32 %v3301, %v3435
      %v3562 = vmax.f32 %v3302, %v3437
      %v3563 = vmax.f32 %v3303, %v3439
      %v3564 = vmax.f32 %v3304, %v3442
      %v3565 = vmax.f32 %v3305, %v3444
      %v3566 = vmax.f32 %v3306, %v3446
      %v3567 = vrot.slane %v2627, 4
      %v3568 = vrot.slane %v2628, 4
      %v3569 = vsel %vm2026, %v3567, %v3568
      %v3570 = vrot.slane %v2629, 4
      %v3571 = vsel %vm2026, %v3568, %v3570
      %v3572 = vrot.slane %v2630, 4
      %v3573 = vsel %vm2026, %v3570, %v3572
      %v3574 = vrot.slane %v2631, 4
      %v3575 = vrot.slane %v2632, 4
      %v3576 = vsel %vm2026, %v3574, %v3575
      %v3577 = vrot.slane %v2633, 4
      %v3578 = vsel %vm2026, %v3575, %v3577
      %v3579 = vrot.slane %v2634, 4
      %v3580 = vsel %vm2026, %v3577, %v3579
      %v3581 = vrot.slane %v2635, 4
      %v3582 = vrot.slane %v2636, 4
      %v3583 = vsel %vm2026, %v3581, %v3582
      %v3584 = vrot.slane %v2637, 4
      %v3585 = vsel %vm2026, %v3582, %v3584
      %v3586 = vrot.slane %v2638, 4
      %v3587 = vsel %vm2026, %v3584, %v3586
      %v3588 = vrot.slane %v2639, 4
      %v3589 = vrot.slane %v2640, 4
      %v3590 = vsel %vm2026, %v3588, %v3589
      %v3591 = vrot.slane %v2641, 4
      %v3592 = vsel %vm2026, %v3589, %v3591
      %v3593 = vrot.slane %v2642, 4
      %v3594 = vsel %vm2026, %v3591, %v3593
      %v3595 = vrot.slane %v2643, 4
      %v3596 = vrot.slane %v2644, 4
      %v3597 = vsel %vm2026, %v3595, %v3596
      %v3598 = vrot.slane %v2645, 4
      %v3599 = vsel %vm2026, %v3596, %v3598
      %v3600 = vrot.slane %v2646, 4
      %v3601 = vsel %vm2026, %v3598, %v3600
      %v3602 = vrot.slane %v2647, 4
      %v3603 = vrot.slane %v2648, 4
      %v3604 = vsel %vm2026, %v3602, %v3603
      %v3605 = vrot.slane %v2649, 4
      %v3606 = vsel %vm2026, %v3603, %v3605
      %v3607 = vrot.slane %v2650, 4
      %v3608 = vsel %vm2026, %v3605, %v3607
      %v3609 = vrot.slane %v2651, 4
      %v3610 = vrot.slane %v2652, 4
      %v3611 = vsel %vm2026, %v3609, %v3610
      %v3612 = vrot.slane %v2653, 4
      %v3613 = vsel %vm2026, %v3610, %v3612
      %v3614 = vrot.slane %v2654, 4
      %v3615 = vsel %vm2026, %v3612, %v3614
      %v3616 = vrot.slane %v2655, 4
      %v3617 = vrot.slane %v2656, 4
      %v3618 = vsel %vm2026, %v3616, %v3617
      %v3619 = vrot.slane %v2657, 4
      %v3620 = vsel %vm2026, %v3617, %v3619
      %v3621 = vrot.slane %v2658, 4
      %v3622 = vsel %vm2026, %v3619, %v3621
      %v3623 = vrot.slane %v2659, 4
      %v3624 = vrot.slane %v2660, 4
      %v3625 = vsel %vm2026, %v3623, %v3624
      %v3626 = vrot.slane %v2661, 4
      %v3627 = vsel %vm2026, %v3624, %v3626
      %v3628 = vrot.slane %v2662, 4
      %v3629 = vsel %vm2026, %v3626, %v3628
      %v3630 = vrot.slane %v2663, 4
      %v3631 = vrot.slane %v2664, 4
      %v3632 = vsel %vm2026, %v3630, %v3631
      %v3633 = vrot.slane %v2665, 4
      %v3634 = vsel %vm2026, %v3631, %v3633
      %v3635 = vrot.slane %v2666, 4
      %v3636 = vsel %vm2026, %v3633, %v3635
      %v3637 = vrot.slane %v2667, 4
      %v3638 = vrot.slane %v2668, 4
      %v3639 = vsel %vm2026, %v3637, %v3638
      %v3640 = vrot.slane %v2669, 4
      %v3641 = vsel %vm2026, %v3638, %v3640
      %v3642 = vrot.slane %v2670, 4
      %v3643 = vsel %vm2026, %v3640, %v3642
      %v3644 = vrot.slane %v2671, 4
      %v3645 = vrot.slane %v2672, 4
      %v3646 = vsel %vm2026, %v3644, %v3645
      %v3647 = vrot.slane %v2673, 4
      %v3648 = vsel %vm2026, %v3645, %v3647
      %v3649 = vrot.slane %v2674, 4
      %v3650 = vsel %vm2026, %v3647, %v3649
      %v3651 = vrot.slane %v2675, 4
      %v3652 = vrot.slane %v2676, 4
      %v3653 = vsel %vm2026, %v3651, %v3652
      %v3654 = vrot.slane %v2677, 4
      %v3655 = vsel %vm2026, %v3652, %v3654
      %v3656 = vrot.slane %v2678, 4
      %v3657 = vsel %vm2026, %v3654, %v3656
      %v3658 = vrot.slane %v2679, 4
      %v3659 = vrot.slane %v2680, 4
      %v3660 = vsel %vm2026, %v3658, %v3659
      %v3661 = vrot.slane %v2681, 4
      %v3662 = vsel %vm2026, %v3659, %v3661
      %v3663 = vrot.slane %v2682, 4
      %v3664 = vsel %vm2026, %v3661, %v3663
      %v3665 = vrot.slane %v2683, 4
      %v3666 = vrot.slane %v2684, 4
      %v3667 = vsel %vm2026, %v3665, %v3666
      %v3668 = vrot.slane %v2685, 4
      %v3669 = vsel %vm2026, %v3666, %v3668
      %v3670 = vrot.slane %v2686, 4
      %v3671 = vsel %vm2026, %v3668, %v3670
      %v3672 = vrot.slane %v2687, 4
      %v3673 = vrot.slane %v2688, 4
      %v3674 = vsel %vm2026, %v3672, %v3673
      %v3675 = vrot.slane %v2689, 4
      %v3676 = vsel %vm2026, %v3673, %v3675
      %v3677 = vrot.slane %v2690, 4
      %v3678 = vsel %vm2026, %v3675, %v3677
      %v3679 = vrot.slane %v2691, 4
      %v3680 = vrot.slane %v2692, 4
      %v3681 = vsel %vm2026, %v3679, %v3680
      %v3682 = vrot.slane %v2693, 4
      %v3683 = vsel %vm2026, %v3680, %v3682
      %v3684 = vrot.slane %v2694, 4
      %v3685 = vsel %vm2026, %v3682, %v3684
      %v3686 = vrot.slane %v2695, 4
      %v3687 = vrot.slane %v2696, 4
      %v3688 = vsel %vm2026, %v3686, %v3687
      %v3689 = vrot.slane %v2697, 4
      %v3690 = vsel %vm2026, %v3687, %v3689
      %v3691 = vrot.slane %v2698, 4
      %v3692 = vsel %vm2026, %v3689, %v3691
      %v3693 = vrot.slane %v2699, 4
      %v3694 = vrot.slane %v2700, 4
      %v3695 = vsel %vm2026, %v3693, %v3694
      %v3696 = vrot.slane %v2701, 4
      %v3697 = vsel %vm2026, %v3694, %v3696
      %v3698 = vrot.slane %v2702, 4
      %v3699 = vsel %vm2026, %v3696, %v3698
      %v3700 = vrot.slane %v2703, 4
      %v3701 = vrot.slane %v2704, 4
      %v3702 = vsel %vm2026, %v3700, %v3701
      %v3703 = vrot.slane %v2705, 4
      %v3704 = vsel %vm2026, %v3701, %v3703
      %v3705 = vrot.slane %v2706, 4
      %v3706 = vsel %vm2026, %v3703, %v3705
      %v3767 = vmax.f32 %v3507, %v3569
      %v3768 = vmax.f32 %v3508, %v3571
      %v3769 = vmax.f32 %v3509, %v3573
      %v3770 = vmax.f32 %v3510, %v3576
      %v3771 = vmax.f32 %v3511, %v3578
      %v3772 = vmax.f32 %v3512, %v3580
      %v3773 = vmax.f32 %v3513, %v3583
      %v3774 = vmax.f32 %v3514, %v3585
      %v3775 = vmax.f32 %v3515, %v3587
      %v3776 = vmax.f32 %v3516, %v3590
      %v3777 = vmax.f32 %v3517, %v3592
      %v3778 = vmax.f32 %v3518, %v3594
      %v3779 = vmax.f32 %v3519, %v3597
      %v3780 = vmax.f32 %v3520, %v3599
      %v3781 = vmax.f32 %v3521, %v3601
      %v3782 = vmax.f32 %v3522, %v3604
      %v3783 = vmax.f32 %v3523, %v3606
      %v3784 = vmax.f32 %v3524, %v3608
      %v3785 = vmax.f32 %v3525, %v3611
      %v3786 = vmax.f32 %v3526, %v3613
      %v3787 = vmax.f32 %v3527, %v3615
      %v3788 = vmax.f32 %v3528, %v3618
      %v3789 = vmax.f32 %v3529, %v3620
      %v3790 = vmax.f32 %v3530, %v3622
      %v3791 = vmax.f32 %v3531, %v3625
      %v3792 = vmax.f32 %v3532, %v3627
      %v3793 = vmax.f32 %v3533, %v3629
      %v3794 = vmax.f32 %v3534, %v3632
      %v3795 = vmax.f32 %v3535, %v3634
      %v3796 = vmax.f32 %v3536, %v3636
      %v3797 = vmax.f32 %v3537, %v3639
      %v3798 = vmax.f32 %v3538, %v3641
      %v3799 = vmax.f32 %v3539, %v3643
      %v3800 = vmax.f32 %v3540, %v3646
      %v3801 = vmax.f32 %v3541, %v3648
      %v3802 = vmax.f32 %v3542, %v3650
      %v3803 = vmax.f32 %v3543, %v3653
      %v3804 = vmax.f32 %v3544, %v3655
      %v3805 = vmax.f32 %v3545, %v3657
      %v3806 = vmax.f32 %v3546, %v3660
      %v3807 = vmax.f32 %v3547, %v3662
      %v3808 = vmax.f32 %v3548, %v3664
      %v3809 = vmax.f32 %v3549, %v3667
      %v3810 = vmax.f32 %v3550, %v3669
      %v3811 = vmax.f32 %v3551, %v3671
      %v3812 = vmax.f32 %v3552, %v3674
      %v3813 = vmax.f32 %v3553, %v3676
      %v3814 = vmax.f32 %v3554, %v3678
      %v3815 = vmax.f32 %v3555, %v3681
      %v3816 = vmax.f32 %v3556, %v3683
      %v3817 = vmax.f32 %v3557, %v3685
      %v3818 = vmax.f32 %v3558, %v3688
      %v3819 = vmax.f32 %v3559, %v3690
      %v3820 = vmax.f32 %v3560, %v3692
      %v3821 = vmax.f32 %v3561, %v3695
      %v3822 = vmax.f32 %v3562, %v3697
      %v3823 = vmax.f32 %v3563, %v3699
      %v3824 = vmax.f32 %v3564, %v3702
      %v3825 = vmax.f32 %v3565, %v3704
      %v3826 = vmax.f32 %v3566, %v3706
      %v3827 = vmax.f32 %v3767, %v3770
      %v3828 = vmax.f32 %v3768, %v3771
      %v3829 = vmax.f32 %v3769, %v3772
      %v3830 = vmax.f32 %v3770, %v3773
      %v3831 = vmax.f32 %v3771, %v3774
      %v3832 = vmax.f32 %v3772, %v3775
      %v3833 = vmax.f32 %v3773, %v3776
      %v3834 = vmax.f32 %v3774, %v3777
      %v3835 = vmax.f32 %v3775, %v3778
      %v3836 = vmax.f32 %v3776, %v3779
      %v3837 = vmax.f32 %v3777, %v3780
      %v3838 = vmax.f32 %v3778, %v3781
      %v3839 = vmax.f32 %v3779, %v3782
      %v3840 = vmax.f32 %v3780, %v3783
      %v3841 = vmax.f32 %v3781, %v3784
      %v3842 = vmax.f32 %v3782, %v3785
      %v3843 = vmax.f32 %v3783, %v3786
      %v3844 = vmax.f32 %v3784, %v3787
      %v3845 = vmax.f32 %v3785, %v3788
      %v3846 = vmax.f32 %v3786, %v3789
      %v3847 = vmax.f32 %v3787, %v3790
      %v3848 = vmax.f32 %v3788, %v3791
      %v3849 = vmax.f32 %v3789, %v3792
      %v3850 = vmax.f32 %v3790, %v3793
      %v3851 = vmax.f32 %v3791, %v3794
      %v3852 = vmax.f32 %v3792, %v3795
      %v3853 = vmax.f32 %v3793, %v3796
      %v3854 = vmax.f32 %v3794, %v3797
      %v3855 = vmax.f32 %v3795, %v3798
      %v3856 = vmax.f32 %v3796, %v3799
      %v3857 = vmax.f32 %v3797, %v3800
      %v3858 = vmax.f32 %v3798, %v3801
      %v3859 = vmax.f32 %v3799, %v3802
      %v3860 = vmax.f32 %v3800, %v3803
      %v3861 = vmax.f32 %v3801, %v3804
      %v3862 = vmax.f32 %v3802, %v3805
      %v3863 = vmax.f32 %v3803, %v3806
      %v3864 = vmax.f32 %v3804, %v3807
      %v3865 = vmax.f32 %v3805, %v3808
      %v3866 = vmax.f32 %v3806, %v3809
      %v3867 = vmax.f32 %v3807, %v3810
      %v3868 = vmax.f32 %v3808, %v3811
      %v3869 = vmax.f32 %v3809, %v3812
      %v3870 = vmax.f32 %v3810, %v3813
      %v3871 = vmax.f32 %v3811, %v3814
      %v3872 = vmax.f32 %v3812, %v3815
      %v3873 = vmax.f32 %v3813, %v3816
      %v3874 = vmax.f32 %v3814, %v3817
      %v3875 = vmax.f32 %v3827, %v3773
      %v3876 = vmax.f32 %v3828, %v3774
      %v3877 = vmax.f32 %v3829, %v3775
      %v3878 = vmax.f32 %v3830, %v3776
      %v3879 = vmax.f32 %v3831, %v3777
      %v3880 = vmax.f32 %v3832, %v3778
      %v3881 = vmax.f32 %v3833, %v3779
      %v3882 = vmax.f32 %v3834, %v3780
      %v3883 = vmax.f32 %v3835, %v3781
      %v3884 = vmax.f32 %v3836, %v3782
      %v3885 = vmax.f32 %v3837, %v3783
      %v3886 = vmax.f32 %v3838, %v3784
      %v3887 = vmax.f32 %v3839, %v3785
      %v3888 = vmax.f32 %v3840, %v3786
      %v3889 = vmax.f32 %v3841, %v3787
      %v3890 = vmax.f32 %v3842, %v3788
      %v3891 = vmax.f32 %v3843, %v3789
      %v3892 = vmax.f32 %v3844, %v3790
      %v3893 = vmax.f32 %v3845, %v3791
      %v3894 = vmax.f32 %v3846, %v3792
      %v3895 = vmax.f32 %v3847, %v3793
      %v3896 = vmax.f32 %v3848, %v3794
      %v3897 = vmax.f32 %v3849, %v3795
      %v3898 = vmax.f32 %v3850, %v3796
      %v3899 = vmax.f32 %v3851, %v3797
      %v3900 = vmax.f32 %v3852, %v3798
      %v3901 = vmax.f32 %v3853, %v3799
      %v3902 = vmax.f32 %v3854, %v3800
      %v3903 = vmax.f32 %v3855, %v3801
      %v3904 = vmax.f32 %v3856, %v3802
      %v3905 = vmax.f32 %v3857, %v3803
      %v3906 = vmax.f32 %v3858, %v3804
      %v3907 = vmax.f32 %v3859, %v3805
      %v3908 = vmax.f32 %v3860, %v3806
      %v3909 = vmax.f32 %v3861, %v3807
      %v3910 = vmax.f32 %v3862, %v3808
      %v3911 = vmax.f32 %v3863, %v3809
      %v3912 = vmax.f32 %v3864, %v3810
      %v3913 = vmax.f32 %v3865, %v3811
      %v3914 = vmax.f32 %v3866, %v3812
      %v3915 = vmax.f32 %v3867, %v3813
      %v3916 = vmax.f32 %v3868, %v3814
      %v3917 = vmax.f32 %v3869, %v3815
      %v3918 = vmax.f32 %v3870, %v3816
      %v3919 = vmax.f32 %v3871, %v3817
      %v3920 = vmax.f32 %v3872, %v3818
      %v3921 = vmax.f32 %v3873, %v3819
      %v3922 = vmax.f32 %v3874, %v3820
      %v3923 = vmax.f32 %v3875, %v3776
      %v3924 = vmax.f32 %v3876, %v3777
      %v3925 = vmax.f32 %v3877, %v3778
      %v3926 = vmax.f32 %v3878, %v3779
      %v3927 = vmax.f32 %v3879, %v3780
      %v3928 = vmax.f32 %v3880, %v3781
      %v3929 = vmax.f32 %v3881, %v3782
      %v3930 = vmax.f32 %v3882, %v3783
      %v3931 = vmax.f32 %v3883, %v3784
      %v3932 = vmax.f32 %v3884, %v3785
      %v3933 = vmax.f32 %v3885, %v3786
      %v3934 = vmax.f32 %v3886, %v3787
      %v3935 = vmax.f32 %v3887, %v3788
      %v3936 = vmax.f32 %v3888, %v3789
      %v3937 = vmax.f32 %v3889, %v3790
      %v3938 = vmax.f32 %v3890, %v3791
      %v3939 = vmax.f32 %v3891, %v3792
      %v3940 = vmax.f32 %v3892, %v3793
      %v3941 = vmax.f32 %v3893, %v3794
      %v3942 = vmax.f32 %v3894, %v3795
      %v3943 = vmax.f32 %v3895, %v3796
      %v3944 = vmax.f32 %v3896, %v3797
      %v3945 = vmax.f32 %v3897, %v3798
      %v3946 = vmax.f32 %v3898, %v3799
      %v3947 = vmax.f32 %v3899, %v3800
      %v3948 = vmax.f32 %v3900, %v3801
      %v3949 = vmax.f32 %v3901, %v3802
      %v3950 = vmax.f32 %v3902, %v3803
      %v3951 = vmax.f32 %v3903, %v3804
      %v3952 = vmax.f32 %v3904, %v3805
      %v3953 = vmax.f32 %v3905, %v3806
      %v3954 = vmax.f32 %v3906, %v3807
      %v3955 = vmax.f32 %v3907, %v3808
      %v3956 = vmax.f32 %v3908, %v3809
      %v3957 = vmax.f32 %v3909, %v3810
      %v3958 = vmax.f32 %v3910, %v3811
      %v3959 = vmax.f32 %v3911, %v3812
      %v3960 = vmax.f32 %v3912, %v3813
      %v3961 = vmax.f32 %v3913, %v3814
      %v3962 = vmax.f32 %v3914, %v3815
      %v3963 = vmax.f32 %v3915, %v3816
      %v3964 = vmax.f32 %v3916, %v3817
      %v3965 = vmax.f32 %v3917, %v3818
      %v3966 = vmax.f32 %v3918, %v3819
      %v3967 = vmax.f32 %v3919, %v3820
      %v3968 = vmax.f32 %v3920, %v3821
      %v3969 = vmax.f32 %v3921, %v3822
      %v3970 = vmax.f32 %v3922, %v3823
      %v3971 = vmax.f32 %v3923, %v3779
      %v3972 = vmax.f32 %v3924, %v3780
      %v3973 = vmax.f32 %v3925, %v3781
      %v3974 = vmax.f32 %v3926, %v3782
      %v3975 = vmax.f32 %v3927, %v3783
      %v3976 = vmax.f32 %v3928, %v3784
      %v3977 = vmax.f32 %v3929, %v3785
      %v3978 = vmax.f32 %v3930, %v3786
      %v3979 = vmax.f32 %v3931, %v3787
      %v3980 = vmax.f32 %v3932, %v3788
      %v3981 = vmax.f32 %v3933, %v3789
      %v3982 = vmax.f32 %v3934, %v3790
      %v3983 = vmax.f32 %v3935, %v3791
      %v3984 = vmax.f32 %v3936, %v3792
      %v3985 = vmax.f32 %v3937, %v3793
      %v3986 = vmax.f32 %v3938, %v3794
      %v3987 = vmax.f32 %v3939, %v3795
      %v3988 = vmax.f32 %v3940, %v3796
      %v3989 = vmax.f32 %v3941, %v3797
      %v3990 = vmax.f32 %v3942, %v3798
      %v3991 = vmax.f32 %v3943, %v3799
      %v3992 = vmax.f32 %v3944, %v3800
      %v3993 = vmax.f32 %v3945, %v3801
      %v3994 = vmax.f32 %v3946, %v3802
      %v3995 = vmax.f32 %v3947, %v3803
      %v3996 = vmax.f32 %v3948, %v3804
      %v3997 = vmax.f32 %v3949, %v3805
      %v3998 = vmax.f32 %v3950, %v3806
      %v3999 = vmax.f32 %v3951, %v3807
      %v4000 = vmax.f32 %v3952, %v3808
      %v4001 = vmax.f32 %v3953, %v3809
      %v4002 = vmax.f32 %v3954, %v3810
      %v4003 = vmax.f32 %v3955, %v3811
      %v4004 = vmax.f32 %v3956, %v3812
      %v4005 = vmax.f32 %v3957, %v3813
      %v4006 = vmax.f32 %v3958, %v3814
      %v4007 = vmax.f32 %v3959, %v3815
      %v4008 = vmax.f32 %v3960, %v3816
      %v4009 = vmax.f32 %v3961, %v3817
      %v4010 = vmax.f32 %v3962, %v3818
      %v4011 = vmax.f32 %v3963, %v3819
      %v4012 = vmax.f32 %v3964, %v3820
      %v4013 = vmax.f32 %v3965, %v3821
      %v4014 = vmax.f32 %v3966, %v3822
      %v4015 = vmax.f32 %v3967, %v3823
      %v4016 = vmax.f32 %v3968, %v3824
      %v4017 = vmax.f32 %v3969, %v3825
      %v4018 = vmax.f32 %v3970, %v3826
      %v4067 = vrot.slane %v3971, 1
      %v4068 = vrot.slane %v3972, 1
      %v4069 = vsel %vm943, %v4067, %v4068
      %v4070 = vrot.slane %v3973, 1
      %v4071 = vsel %vm943, %v4068, %v4070
      %v4072 = vrot.slane %v3974, 1
      %v4073 = vrot.slane %v3975, 1
      %v4074 = vsel %vm943, %v4072, %v4073
      %v4075 = vrot.slane %v3976, 1
      %v4076 = vsel %vm943, %v4073, %v4075
      %v4077 = vrot.slane %v3977, 1
      %v4078 = vrot.slane %v3978, 1
      %v4079 = vsel %vm943, %v4077, %v4078
      %v4080 = vrot.slane %v3979, 1
      %v4081 = vsel %vm943, %v4078, %v4080
      %v4082 = vrot.slane %v3980, 1
      %v4083 = vrot.slane %v3981, 1
      %v4084 = vsel %vm943, %v4082, %v4083
      %v4085 = vrot.slane %v3982, 1
      %v4086 = vsel %vm943, %v4083, %v4085
      %v4087 = vrot.slane %v3983, 1
      %v4088 = vrot.slane %v3984, 1
      %v4089 = vsel %vm943, %v4087, %v4088
      %v4090 = vrot.slane %v3985, 1
      %v4091 = vsel %vm943, %v4088, %v4090
      %v4092 = vrot.slane %v3986, 1
      %v4093 = vrot.slane %v3987, 1
      %v4094 = vsel %vm943, %v4092, %v4093
      %v4095 = vrot.slane %v3988, 1
      %v4096 = vsel %vm943, %v4093, %v4095
      %v4097 = vrot.slane %v3989, 1
      %v4098 = vrot.slane %v3990, 1
      %v4099 = vsel %vm943, %v4097, %v4098
      %v4100 = vrot.slane %v3991, 1
      %v4101 = vsel %vm943, %v4098, %v4100
      %v4102 = vrot.slane %v3992, 1
      %v4103 = vrot.slane %v3993, 1
      %v4104 = vsel %vm943, %v4102, %v4103
      %v4105 = vrot.slane %v3994, 1
      %v4106 = vsel %vm943, %v4103, %v4105
      %v4107 = vrot.slane %v3995, 1
      %v4108 = vrot.slane %v3996, 1
      %v4109 = vsel %vm943, %v4107, %v4108
      %v4110 = vrot.slane %v3997, 1
      %v4111 = vsel %vm943, %v4108, %v4110
      %v4112 = vrot.slane %v3998, 1
      %v4113 = vrot.slane %v3999, 1
      %v4114 = vsel %vm943, %v4112, %v4113
      %v4115 = vrot.slane %v4000, 1
      %v4116 = vsel %vm943, %v4113, %v4115
      %v4117 = vrot.slane %v4001, 1
      %v4118 = vrot.slane %v4002, 1
      %v4119 = vsel %vm943, %v4117, %v4118
      %v4120 = vrot.slane %v4003, 1
      %v4121 = vsel %vm943, %v4118, %v4120
      %v4122 = vrot.slane %v4004, 1
      %v4123 = vrot.slane %v4005, 1
      %v4124 = vsel %vm943, %v4122, %v4123
      %v4125 = vrot.slane %v4006, 1
      %v4126 = vsel %vm943, %v4123, %v4125
      %v4127 = vrot.slane %v4007, 1
      %v4128 = vrot.slane %v4008, 1
      %v4129 = vsel %vm943, %v4127, %v4128
      %v4130 = vrot.slane %v4009, 1
      %v4131 = vsel %vm943, %v4128, %v4130
      %v4132 = vrot.slane %v4010, 1
      %v4133 = vrot.slane %v4011, 1
      %v4134 = vsel %vm943, %v4132, %v4133
      %v4135 = vrot.slane %v4012, 1
      %v4136 = vsel %vm943, %v4133, %v4135
      %v4137 = vrot.slane %v4013, 1
      %v4138 = vrot.slane %v4014, 1
      %v4139 = vsel %vm943, %v4137, %v4138
      %v4140 = vrot.slane %v4015, 1
      %v4141 = vsel %vm943, %v4138, %v4140
      %v4142 = vrot.slane %v4016, 1
      %v4143 = vrot.slane %v4017, 1
      %v4144 = vsel %vm943, %v4142, %v4143
      %v4145 = vrot.slane %v4018, 1
      %v4146 = vsel %vm943, %v4143, %v4145
      %v4195 = vmax.f32 %v3971, %v4069
      %v4196 = vmax.f32 %v3972, %v4071
      %v4197 = vmax.f32 %v3973, %v4070
      %v4198 = vmax.f32 %v3974, %v4074
      %v4199 = vmax.f32 %v3975, %v4076
      %v4200 = vmax.f32 %v3976, %v4075
      %v4201 = vmax.f32 %v3977, %v4079
      %v4202 = vmax.f32 %v3978, %v4081
      %v4203 = vmax.f32 %v3979, %v4080
      %v4204 = vmax.f32 %v3980, %v4084
      %v4205 = vmax.f32 %v3981, %v4086
      %v4206 = vmax.f32 %v3982, %v4085
      %v4207 = vmax.f32 %v3983, %v4089
      %v4208 = vmax.f32 %v3984, %v4091
      %v4209 = vmax.f32 %v3985, %v4090
      %v4210 = vmax.f32 %v3986, %v4094
      %v4211 = vmax.f32 %v3987, %v4096
      %v4212 = vmax.f32 %v3988, %v4095
      %v4213 = vmax.f32 %v3989, %v4099
      %v4214 = vmax.f32 %v3990, %v4101
      %v4215 = vmax.f32 %v3991, %v4100
      %v4216 = vmax.f32 %v3992, %v4104
      %v4217 = vmax.f32 %v3993, %v4106
      %v4218 = vmax.f32 %v3994, %v4105
      %v4219 = vmax.f32 %v3995, %v4109
      %v4220 = vmax.f32 %v3996, %v4111
      %v4221 = vmax.f32 %v3997, %v4110
      %v4222 = vmax.f32 %v3998, %v4114
      %v4223 = vmax.f32 %v3999, %v4116
      %v4224 = vmax.f32 %v4000, %v4115
      %v4225 = vmax.f32 %v4001, %v4119
      %v4226 = vmax.f32 %v4002, %v4121
      %v4227 = vmax.f32 %v4003, %v4120
      %v4228 = vmax.f32 %v4004, %v4124
      %v4229 = vmax.f32 %v4005, %v4126
      %v4230 = vmax.f32 %v4006, %v4125
      %v4231 = vmax.f32 %v4007, %v4129
      %v4232 = vmax.f32 %v4008, %v4131
      %v4233 = vmax.f32 %v4009, %v4130
      %v4234 = vmax.f32 %v4010, %v4134
      %v4235 = vmax.f32 %v4011, %v4136
      %v4236 = vmax.f32 %v4012, %v4135
      %v4237 = vmax.f32 %v4013, %v4139
      %v4238 = vmax.f32 %v4014, %v4141
      %v4239 = vmax.f32 %v4015, %v4140
      %v4240 = vmax.f32 %v4016, %v4144
      %v4241 = vmax.f32 %v4017, %v4146
      %v4242 = vmax.f32 %v4018, %v4145
      %v4243 = vrot.slane %v3971, 2
      %v4244 = vrot.slane %v3972, 2
      %v4245 = vsel %vm1304, %v4243, %v4244
      %v4246 = vrot.slane %v3973, 2
      %v4247 = vsel %vm1304, %v4244, %v4246
      %v4248 = vrot.slane %v3974, 2
      %v4249 = vrot.slane %v3975, 2
      %v4250 = vsel %vm1304, %v4248, %v4249
      %v4251 = vrot.slane %v3976, 2
      %v4252 = vsel %vm1304, %v4249, %v4251
      %v4253 = vrot.slane %v3977, 2
      %v4254 = vrot.slane %v3978, 2
      %v4255 = vsel %vm1304, %v4253, %v4254
      %v4256 = vrot.slane %v3979, 2
      %v4257 = vsel %vm1304, %v4254, %v4256
      %v4258 = vrot.slane %v3980, 2
      %v4259 = vrot.slane %v3981, 2
      %v4260 = vsel %vm1304, %v4258, %v4259
      %v4261 = vrot.slane %v3982, 2
      %v4262 = vsel %vm1304, %v4259, %v4261
      %v4263 = vrot.slane %v3983, 2
      %v4264 = vrot.slane %v3984, 2
      %v4265 = vsel %vm1304, %v4263, %v4264
      %v4266 = vrot.slane %v3985, 2
      %v4267 = vsel %vm1304, %v4264, %v4266
      %v4268 = vrot.slane %v3986, 2
      %v4269 = vrot.slane %v3987, 2
      %v4270 = vsel %vm1304, %v4268, %v4269
      %v4271 = vrot.slane %v3988, 2
      %v4272 = vsel %vm1304, %v4269, %v4271
      %v4273 = vrot.slane %v3989, 2
      %v4274 = vrot.slane %v3990, 2
      %v4275 = vsel %vm1304, %v4273, %v4274
      %v4276 = vrot.slane %v3991, 2
      %v4277 = vsel %vm1304, %v4274, %v4276
      %v4278 = vrot.slane %v3992, 2
      %v4279 = vrot.slane %v3993, 2
      %v4280 = vsel %vm1304, %v4278, %v4279
      %v4281 = vrot.slane %v3994, 2
      %v4282 = vsel %vm1304, %v4279, %v4281
      %v4283 = vrot.slane %v3995, 2
      %v4284 = vrot.slane %v3996, 2
      %v4285 = vsel %vm1304, %v4283, %v4284
      %v4286 = vrot.slane %v3997, 2
      %v4287 = vsel %vm1304, %v4284, %v4286
      %v4288 = vrot.slane %v3998, 2
      %v4289 = vrot.slane %v3999, 2
      %v4290 = vsel %vm1304, %v4288, %v4289
      %v4291 = vrot.slane %v4000, 2
      %v4292 = vsel %vm1304, %v4289, %v4291
      %v4293 = vrot.slane %v4001, 2
      %v4294 = vrot.slane %v4002, 2
      %v4295 = vsel %vm1304, %v4293, %v4294
      %v4296 = vrot.slane %v4003, 2
      %v4297 = vsel %vm1304, %v4294, %v4296
      %v4298 = vrot.slane %v4004, 2
      %v4299 = vrot.slane %v4005, 2
      %v4300 = vsel %vm1304, %v4298, %v4299
      %v4301 = vrot.slane %v4006, 2
      %v4302 = vsel %vm1304, %v4299, %v4301
      %v4303 = vrot.slane %v4007, 2
      %v4304 = vrot.slane %v4008, 2
      %v4305 = vsel %vm1304, %v4303, %v4304
      %v4306 = vrot.slane %v4009, 2
      %v4307 = vsel %vm1304, %v4304, %v4306
      %v4308 = vrot.slane %v4010, 2
      %v4309 = vrot.slane %v4011, 2
      %v4310 = vsel %vm1304, %v4308, %v4309
      %v4311 = vrot.slane %v4012, 2
      %v4312 = vsel %vm1304, %v4309, %v4311
      %v4313 = vrot.slane %v4013, 2
      %v4314 = vrot.slane %v4014, 2
      %v4315 = vsel %vm1304, %v4313, %v4314
      %v4316 = vrot.slane %v4015, 2
      %v4317 = vsel %vm1304, %v4314, %v4316
      %v4318 = vrot.slane %v4016, 2
      %v4319 = vrot.slane %v4017, 2
      %v4320 = vsel %vm1304, %v4318, %v4319
      %v4321 = vrot.slane %v4018, 2
      %v4322 = vsel %vm1304, %v4319, %v4321
      %v4371 = vmax.f32 %v4195, %v4245
      %v4372 = vmax.f32 %v4196, %v4247
      %v4373 = vmax.f32 %v4197, %v4246
      %v4374 = vmax.f32 %v4198, %v4250
      %v4375 = vmax.f32 %v4199, %v4252
      %v4376 = vmax.f32 %v4200, %v4251
      %v4377 = vmax.f32 %v4201, %v4255
      %v4378 = vmax.f32 %v4202, %v4257
      %v4379 = vmax.f32 %v4203, %v4256
      %v4380 = vmax.f32 %v4204, %v4260
      %v4381 = vmax.f32 %v4205, %v4262
      %v4382 = vmax.f32 %v4206, %v4261
      %v4383 = vmax.f32 %v4207, %v4265
      %v4384 = vmax.f32 %v4208, %v4267
      %v4385 = vmax.f32 %v4209, %v4266
      %v4386 = vmax.f32 %v4210, %v4270
      %v4387 = vmax.f32 %v4211, %v4272
      %v4388 = vmax.f32 %v4212, %v4271
      %v4389 = vmax.f32 %v4213, %v4275
      %v4390 = vmax.f32 %v4214, %v4277
      %v4391 = vmax.f32 %v4215, %v4276
      %v4392 = vmax.f32 %v4216, %v4280
      %v4393 = vmax.f32 %v4217, %v4282
      %v4394 = vmax.f32 %v4218, %v4281
      %v4395 = vmax.f32 %v4219, %v4285
      %v4396 = vmax.f32 %v4220, %v4287
      %v4397 = vmax.f32 %v4221, %v4286
      %v4398 = vmax.f32 %v4222, %v4290
      %v4399 = vmax.f32 %v4223, %v4292
      %v4400 = vmax.f32 %v4224, %v4291
      %v4401 = vmax.f32 %v4225, %v4295
      %v4402 = vmax.f32 %v4226, %v4297
      %v4403 = vmax.f32 %v4227, %v4296
      %v4404 = vmax.f32 %v4228, %v4300
      %v4405 = vmax.f32 %v4229, %v4302
      %v4406 = vmax.f32 %v4230, %v4301
      %v4407 = vmax.f32 %v4231, %v4305
      %v4408 = vmax.f32 %v4232, %v4307
      %v4409 = vmax.f32 %v4233, %v4306
      %v4410 = vmax.f32 %v4234, %v4310
      %v4411 = vmax.f32 %v4235, %v4312
      %v4412 = vmax.f32 %v4236, %v4311
      %v4413 = vmax.f32 %v4237, %v4315
      %v4414 = vmax.f32 %v4238, %v4317
      %v4415 = vmax.f32 %v4239, %v4316
      %v4416 = vmax.f32 %v4240, %v4320
      %v4417 = vmax.f32 %v4241, %v4322
      %v4418 = vmax.f32 %v4242, %v4321
      %v4419 = vrot.slane %v3971, 3
      %v4420 = vrot.slane %v3972, 3
      %v4421 = vsel %vm1665, %v4419, %v4420
      %v4422 = vrot.slane %v3973, 3
      %v4423 = vsel %vm1665, %v4420, %v4422
      %v4424 = vrot.slane %v3974, 3
      %v4425 = vrot.slane %v3975, 3
      %v4426 = vsel %vm1665, %v4424, %v4425
      %v4427 = vrot.slane %v3976, 3
      %v4428 = vsel %vm1665, %v4425, %v4427
      %v4429 = vrot.slane %v3977, 3
      %v4430 = vrot.slane %v3978, 3
      %v4431 = vsel %vm1665, %v4429, %v4430
      %v4432 = vrot.slane %v3979, 3
      %v4433 = vsel %vm1665, %v4430, %v4432
      %v4434 = vrot.slane %v3980, 3
      %v4435 = vrot.slane %v3981, 3
      %v4436 = vsel %vm1665, %v4434, %v4435
      %v4437 = vrot.slane %v3982, 3
      %v4438 = vsel %vm1665, %v4435, %v4437
      %v4439 = vrot.slane %v3983, 3
      %v4440 = vrot.slane %v3984, 3
      %v4441 = vsel %vm1665, %v4439, %v4440
      %v4442 = vrot.slane %v3985, 3
      %v4443 = vsel %vm1665, %v4440, %v4442
      %v4444 = vrot.slane %v3986, 3
      %v4445 = vrot.slane %v3987, 3
      %v4446 = vsel %vm1665, %v4444, %v4445
      %v4447 = vrot.slane %v3988, 3
      %v4448 = vsel %vm1665, %v4445, %v4447
      %v4449 = vrot.slane %v3989, 3
      %v4450 = vrot.slane %v3990, 3
      %v4451 = vsel %vm1665, %v4449, %v4450
      %v4452 = vrot.slane %v3991, 3
      %v4453 = vsel %vm1665, %v4450, %v4452
      %v4454 = vrot.slane %v3992, 3
      %v4455 = vrot.slane %v3993, 3
      %v4456 = vsel %vm1665, %v4454, %v4455
      %v4457 = vrot.slane %v3994, 3
      %v4458 = vsel %vm1665, %v4455, %v4457
      %v4459 = vrot.slane %v3995, 3
      %v4460 = vrot.slane %v3996, 3
      %v4461 = vsel %vm1665, %v4459, %v4460
      %v4462 = vrot.slane %v3997, 3
      %v4463 = vsel %vm1665, %v4460, %v4462
      %v4464 = vrot.slane %v3998, 3
      %v4465 = vrot.slane %v3999, 3
      %v4466 = vsel %vm1665, %v4464, %v4465
      %v4467 = vrot.slane %v4000, 3
      %v4468 = vsel %vm1665, %v4465, %v4467
      %v4469 = vrot.slane %v4001, 3
      %v4470 = vrot.slane %v4002, 3
      %v4471 = vsel %vm1665, %v4469, %v4470
      %v4472 = vrot.slane %v4003, 3
      %v4473 = vsel %vm1665, %v4470, %v4472
      %v4474 = vrot.slane %v4004, 3
      %v4475 = vrot.slane %v4005, 3
      %v4476 = vsel %vm1665, %v4474, %v4475
      %v4477 = vrot.slane %v4006, 3
      %v4478 = vsel %vm1665, %v4475, %v4477
      %v4479 = vrot.slane %v4007, 3
      %v4480 = vrot.slane %v4008, 3
      %v4481 = vsel %vm1665, %v4479, %v4480
      %v4482 = vrot.slane %v4009, 3
      %v4483 = vsel %vm1665, %v4480, %v4482
      %v4484 = vrot.slane %v4010, 3
      %v4485 = vrot.slane %v4011, 3
      %v4486 = vsel %vm1665, %v4484, %v4485
      %v4487 = vrot.slane %v4012, 3
      %v4488 = vsel %vm1665, %v4485, %v4487
      %v4489 = vrot.slane %v4013, 3
      %v4490 = vrot.slane %v4014, 3
      %v4491 = vsel %vm1665, %v4489, %v4490
      %v4492 = vrot.slane %v4015, 3
      %v4493 = vsel %vm1665, %v4490, %v4492
      %v4494 = vrot.slane %v4016, 3
      %v4495 = vrot.slane %v4017, 3
      %v4496 = vsel %vm1665, %v4494, %v4495
      %v4497 = vrot.slane %v4018, 3
      %v4498 = vsel %vm1665, %v4495, %v4497
      %v4547 = vmax.f32 %v4371, %v4421
      %v4548 = vmax.f32 %v4372, %v4423
      %v4549 = vmax.f32 %v4373, %v4422
      %v4550 = vmax.f32 %v4374, %v4426
      %v4551 = vmax.f32 %v4375, %v4428
      %v4552 = vmax.f32 %v4376, %v4427
      %v4553 = vmax.f32 %v4377, %v4431
      %v4554 = vmax.f32 %v4378, %v4433
      %v4555 = vmax.f32 %v4379, %v4432
      %v4556 = vmax.f32 %v4380, %v4436
      %v4557 = vmax.f32 %v4381, %v4438
      %v4558 = vmax.f32 %v4382, %v4437
      %v4559 = vmax.f32 %v4383, %v4441
      %v4560 = vmax.f32 %v4384, %v4443
      %v4561 = vmax.f32 %v4385, %v4442
      %v4562 = vmax.f32 %v4386, %v4446
      %v4563 = vmax.f32 %v4387, %v4448
      %v4564 = vmax.f32 %v4388, %v4447
      %v4565 = vmax.f32 %v4389, %v4451
      %v4566 = vmax.f32 %v4390, %v4453
      %v4567 = vmax.f32 %v4391, %v4452
      %v4568 = vmax.f32 %v4392, %v4456
      %v4569 = vmax.f32 %v4393, %v4458
      %v4570 = vmax.f32 %v4394, %v4457
      %v4571 = vmax.f32 %v4395, %v4461
      %v4572 = vmax.f32 %v4396, %v4463
      %v4573 = vmax.f32 %v4397, %v4462
      %v4574 = vmax.f32 %v4398, %v4466
      %v4575 = vmax.f32 %v4399, %v4468
      %v4576 = vmax.f32 %v4400, %v4467
      %v4577 = vmax.f32 %v4401, %v4471
      %v4578 = vmax.f32 %v4402, %v4473
      %v4579 = vmax.f32 %v4403, %v4472
      %v4580 = vmax.f32 %v4404, %v4476
      %v4581 = vmax.f32 %v4405, %v4478
      %v4582 = vmax.f32 %v4406, %v4477
      %v4583 = vmax.f32 %v4407, %v4481
      %v4584 = vmax.f32 %v4408, %v4483
      %v4585 = vmax.f32 %v4409, %v4482
      %v4586 = vmax.f32 %v4410, %v4486
      %v4587 = vmax.f32 %v4411, %v4488
      %v4588 = vmax.f32 %v4412, %v4487
      %v4589 = vmax.f32 %v4413, %v4491
      %v4590 = vmax.f32 %v4414, %v4493
      %v4591 = vmax.f32 %v4415, %v4492
      %v4592 = vmax.f32 %v4416, %v4496
      %v4593 = vmax.f32 %v4417, %v4498
      %v4594 = vmax.f32 %v4418, %v4497
      %v4595 = vrot.slane %v3971, 4
      %v4596 = vrot.slane %v3972, 4
      %v4597 = vsel %vm2026, %v4595, %v4596
      %v4598 = vrot.slane %v3973, 4
      %v4599 = vsel %vm2026, %v4596, %v4598
      %v4600 = vrot.slane %v3974, 4
      %v4601 = vrot.slane %v3975, 4
      %v4602 = vsel %vm2026, %v4600, %v4601
      %v4603 = vrot.slane %v3976, 4
      %v4604 = vsel %vm2026, %v4601, %v4603
      %v4605 = vrot.slane %v3977, 4
      %v4606 = vrot.slane %v3978, 4
      %v4607 = vsel %vm2026, %v4605, %v4606
      %v4608 = vrot.slane %v3979, 4
      %v4609 = vsel %vm2026, %v4606, %v4608
      %v4610 = vrot.slane %v3980, 4
      %v4611 = vrot.slane %v3981, 4
      %v4612 = vsel %vm2026, %v4610, %v4611
      %v4613 = vrot.slane %v3982, 4
      %v4614 = vsel %vm2026, %v4611, %v4613
      %v4615 = vrot.slane %v3983, 4
      %v4616 = vrot.slane %v3984, 4
      %v4617 = vsel %vm2026, %v4615, %v4616
      %v4618 = vrot.slane %v3985, 4
      %v4619 = vsel %vm2026, %v4616, %v4618
      %v4620 = vrot.slane %v3986, 4
      %v4621 = vrot.slane %v3987, 4
      %v4622 = vsel %vm2026, %v4620, %v4621
      %v4623 = vrot.slane %v3988, 4
      %v4624 = vsel %vm2026, %v4621, %v4623
      %v4625 = vrot.slane %v3989, 4
      %v4626 = vrot.slane %v3990, 4
      %v4627 = vsel %vm2026, %v4625, %v4626
      %v4628 = vrot.slane %v3991, 4
      %v4629 = vsel %vm2026, %v4626, %v4628
      %v4630 = vrot.slane %v3992, 4
      %v4631 = vrot.slane %v3993, 4
      %v4632 = vsel %vm2026, %v4630, %v4631
      %v4633 = vrot.slane %v3994, 4
      %v4634 = vsel %vm2026, %v4631, %v4633
      %v4635 = vrot.slane %v3995, 4
      %v4636 = vrot.slane %v3996, 4
      %v4637 = vsel %vm2026, %v4635, %v4636
      %v4638 = vrot.slane %v3997, 4
      %v4639 = vsel %vm2026, %v4636, %v4638
      %v4640 = vrot.slane %v3998, 4
      %v4641 = vrot.slane %v3999, 4
      %v4642 = vsel %vm2026, %v4640, %v4641
      %v4643 = vrot.slane %v4000, 4
      %v4644 = vsel %vm2026, %v4641, %v4643
      %v4645 = vrot.slane %v4001, 4
      %v4646 = vrot.slane %v4002, 4
      %v4647 = vsel %vm2026, %v4645, %v4646
      %v4648 = vrot.slane %v4003, 4
      %v4649 = vsel %vm2026, %v4646, %v4648
      %v4650 = vrot.slane %v4004, 4
      %v4651 = vrot.slane %v4005, 4
      %v4652 = vsel %vm2026, %v4650, %v4651
      %v4653 = vrot.slane %v4006, 4
      %v4654 = vsel %vm2026, %v4651, %v4653
      %v4655 = vrot.slane %v4007, 4
      %v4656 = vrot.slane %v4008, 4
      %v4657 = vsel %vm2026, %v4655, %v4656
      %v4658 = vrot.slane %v4009, 4
      %v4659 = vsel %vm2026, %v4656, %v4658
      %v4660 = vrot.slane %v4010, 4
      %v4661 = vrot.slane %v4011, 4
      %v4662 = vsel %vm2026, %v4660, %v4661
      %v4663 = vrot.slane %v4012, 4
      %v4664 = vsel %vm2026, %v4661, %v4663
      %v4665 = vrot.slane %v4013, 4
      %v4666 = vrot.slane %v4014, 4
      %v4667 = vsel %vm2026, %v4665, %v4666
      %v4668 = vrot.slane %v4015, 4
      %v4669 = vsel %vm2026, %v4666, %v4668
      %v4670 = vrot.slane %v4016, 4
      %v4671 = vrot.slane %v4017, 4
      %v4672 = vsel %vm2026, %v4670, %v4671
      %v4673 = vrot.slane %v4018, 4
      %v4674 = vsel %vm2026, %v4671, %v4673
      %v4723 = vmax.f32 %v4547, %v4597
      %v4724 = vmax.f32 %v4548, %v4599
      %v4725 = vmax.f32 %v4549, %v4598
      %v4726 = vmax.f32 %v4550, %v4602
      %v4727 = vmax.f32 %v4551, %v4604
      %v4728 = vmax.f32 %v4552, %v4603
      %v4729 = vmax.f32 %v4553, %v4607
      %v4730 = vmax.f32 %v4554, %v4609
      %v4731 = vmax.f32 %v4555, %v4608
      %v4732 = vmax.f32 %v4556, %v4612
      %v4733 = vmax.f32 %v4557, %v4614
      %v4734 = vmax.f32 %v4558, %v4613
      %v4735 = vmax.f32 %v4559, %v4617
      %v4736 = vmax.f32 %v4560, %v4619
      %v4737 = vmax.f32 %v4561, %v4618
      %v4738 = vmax.f32 %v4562, %v4622
      %v4739 = vmax.f32 %v4563, %v4624
      %v4740 = vmax.f32 %v4564, %v4623
      %v4741 = vmax.f32 %v4565, %v4627
      %v4742 = vmax.f32 %v4566, %v4629
      %v4743 = vmax.f32 %v4567, %v4628
      %v4744 = vmax.f32 %v4568, %v4632
      %v4745 = vmax.f32 %v4569, %v4634
      %v4746 = vmax.f32 %v4570, %v4633
      %v4747 = vmax.f32 %v4571, %v4637
      %v4748 = vmax.f32 %v4572, %v4639
      %v4749 = vmax.f32 %v4573, %v4638
      %v4750 = vmax.f32 %v4574, %v4642
      %v4751 = vmax.f32 %v4575, %v4644
      %v4752 = vmax.f32 %v4576, %v4643
      %v4753 = vmax.f32 %v4577, %v4647
      %v4754 = vmax.f32 %v4578, %v4649
      %v4755 = vmax.f32 %v4579, %v4648
      %v4756 = vmax.f32 %v4580, %v4652
      %v4757 = vmax.f32 %v4581, %v4654
      %v4758 = vmax.f32 %v4582, %v4653
      %v4759 = vmax.f32 %v4583, %v4657
      %v4760 = vmax.f32 %v4584, %v4659
      %v4761 = vmax.f32 %v4585, %v4658
      %v4762 = vmax.f32 %v4586, %v4662
      %v4763 = vmax.f32 %v4587, %v4664
      %v4764 = vmax.f32 %v4588, %v4663
      %v4765 = vmax.f32 %v4589, %v4667
      %v4766 = vmax.f32 %v4590, %v4669
      %v4767 = vmax.f32 %v4591, %v4668
      %v4768 = vmax.f32 %v4592, %v4672
      %v4769 = vmax.f32 %v4593, %v4674
      %v4770 = vmax.f32 %v4594, %v4673
      %v4771 = vld [vmem:[%s1] sm:$0x1]
      %v4772 = vpack.c.bf16 %v2308, %v2307
      %v4773 = vpack.c.bf16 %v2309, %v2309
      %v4774 = vpack.c.bf16 %v2312, %v2311
      %v4775 = vpack.c.bf16 %v2313, %v2313
      %v4776 = vpack.c.bf16 %v2316, %v2315
      %v4777 = vpack.c.bf16 %v2317, %v2317
      %v4778 = vpack.c.bf16 %v2320, %v2319
      %v4779 = vpack.c.bf16 %v2321, %v2321
      %v4780 = vpack.c.bf16 %v2324, %v2323
      %v4781 = vpack.c.bf16 %v2325, %v2325
      %v4782 = vpack.c.bf16 %v2328, %v2327
      %v4783 = vpack.c.bf16 %v2329, %v2329
      %v4784 = vpack.c.bf16 %v2332, %v2331
      %v4785 = vpack.c.bf16 %v2333, %v2333
      %v4786 = vpack.c.bf16 %v2336, %v2335
      %v4787 = vpack.c.bf16 %v2337, %v2337
      %v4788 = vpack.c.bf16 %v2340, %v2339
      %v4789 = vpack.c.bf16 %v2341, %v2341
      %v4790 = vpack.c.bf16 %v2344, %v2343
      %v4791 = vpack.c.bf16 %v2345, %v2345
      %v4792 = vpack.c.bf16 %v2348, %v2347
      %v4793 = vpack.c.bf16 %v2349, %v2349
      %v4794 = vpack.c.bf16 %v2352, %v2351
      %v4795 = vpack.c.bf16 %v2353, %v2353
      %v4796 = vpack.c.bf16 %v2356, %v2355
      %v4797 = vpack.c.bf16 %v2357, %v2357
      %v4798 = vpack.c.bf16 %v2360, %v2359
      %v4799 = vpack.c.bf16 %v2361, %v2361
      %v4800 = vpack.c.bf16 %v2364, %v2363
      %v4801 = vpack.c.bf16 %v2365, %v2365
      %v4802 = vpack.c.bf16 %v2368, %v2367
      %v4803 = vpack.c.bf16 %v2369, %v2369
      %vm4836 = vcmask 1044480
      %v4837 = vrot.slane %v4772, 3
      %v4838 = vrot.slane %v4773, 3
      %v4839 = vsel %vm4836, %v4837, %v4838
      %v4840 = vrot.slane %v4774, 3
      %v4841 = vrot.slane %v4775, 3
      %v4842 = vsel %vm4836, %v4840, %v4841
      %v4843 = vrot.slane %v4776, 3
      %v4844 = vrot.slane %v4777, 3
      %v4845 = vsel %vm4836, %v4843, %v4844
      %v4846 = vrot.slane %v4778, 3
      %v4847 = vrot.slane %v4779, 3
      %v4848 = vsel %vm4836, %v4846, %v4847
      %v4849 = vrot.slane %v4780, 3
      %v4850 = vrot.slane %v4781, 3
      %v4851 = vsel %vm4836, %v4849, %v4850
      %v4852 = vrot.slane %v4782, 3
      %v4853 = vrot.slane %v4783, 3
      %v4854 = vsel %vm4836, %v4852, %v4853
      %v4855 = vrot.slane %v4784, 3
      %v4856 = vrot.slane %v4785, 3
      %v4857 = vsel %vm4836, %v4855, %v4856
      %v4858 = vrot.slane %v4786, 3
      %v4859 = vrot.slane %v4787, 3
      %v4860 = vsel %vm4836, %v4858, %v4859
      %v4861 = vrot.slane %v4788, 3
      %v4862 = vrot.slane %v4789, 3
      %v4863 = vsel %vm4836, %v4861, %v4862
      %v4864 = vrot.slane %v4790, 3
      %v4865 = vrot.slane %v4791, 3
      %v4866 = vsel %vm4836, %v4864, %v4865
      %v4867 = vrot.slane %v4792, 3
      %v4868 = vrot.slane %v4793, 3
      %v4869 = vsel %vm4836, %v4867, %v4868
      %v4870 = vrot.slane %v4794, 3
      %v4871 = vrot.slane %v4795, 3
      %v4872 = vsel %vm4836, %v4870, %v4871
      %v4873 = vrot.slane %v4796, 3
      %v4874 = vrot.slane %v4797, 3
      %v4875 = vsel %vm4836, %v4873, %v4874
      %v4876 = vrot.slane %v4798, 3
      %v4877 = vrot.slane %v4799, 3
      %v4878 = vsel %vm4836, %v4876, %v4877
      %v4879 = vrot.slane %v4800, 3
      %v4880 = vrot.slane %v4801, 3
      %v4881 = vsel %vm4836, %v4879, %v4880
      %v4882 = vrot.slane %v4802, 3
      %v4883 = vrot.slane %v4803, 3
      %v4884 = vsel %vm4836, %v4882, %v4883
      %v4885 = vld [vmem:[%s1] sm:$0x2]
      %v4887 = vunpack.c.l.b16 %v4885
      %v4888 = vpack.c.b16 %v4887, %v4887
      %v4889 = vrot.slane %v4888, 1
      %v4891 = vsel %vm236, %v4839, 0
      %v4894 = vsel %vm236, %v4842, 0
      %v4897 = vsel %vm236, %v4845, 0
      %v4900 = vsel %vm236, %v4848, 0
      %v4903 = vsel %vm236, %v4851, 0
      %v4906 = vsel %vm236, %v4854, 0
      %v4909 = vsel %vm236, %v4857, 0
      %v4912 = vsel %vm236, %v4860, 0
      %v4915 = vsel %vm236, %v4863, 0
      %v4918 = vsel %vm236, %v4866, 0
      %v4921 = vsel %vm236, %v4869, 0
      %v4924 = vsel %vm236, %v4872, 0
      %v4927 = vsel %vm236, %v4875, 0
      %v4930 = vsel %vm236, %v4878, 0
      %v4933 = vsel %vm236, %v4881, 0
      %v4936 = vsel %vm236, %v4884, 0
      %vm4938 = vcmask 1040384
      %v4940 = vsel %vm4938, %v4889, 0
      %4942 = vmatprep.subr.bf16.mxu0 0
      %4943 = vmatpush1.bf16.msra.mxu0 %v4940
      %4944 = vmatprep.subr.bf16.mxu0 0
      %4945 = vmatpush1.bf16.msra.mxu0 0
      %4946 = vmatprep.subr.bf16.mxu0 0
      %4947 = vmatpush1.bf16.msra.mxu0 0
      %4948 = vmatprep.subr.bf16.mxu0 0
      %4949 = vmatpush1.bf16.msra.mxu0 0
      %4950 = vmatprep.subr.bf16.mxu0 0
      %4951 = vmatpush1.bf16.msra.mxu0 0
      %4952 = vmatprep.subr.bf16.mxu0 0
      %4953 = vmatpush1.bf16.msra.mxu0 0
      %4954 = vmatprep.subr.bf16.mxu0 0
      %4955 = vmatpush1.bf16.msra.mxu0 0
      %4956 = vmatprep.subr.bf16.mxu0 0
      %4957 = vmatpush1.bf16.msra.mxu0 0
      %4958 = vmatprep.subr.bf16.mxu0 0
      %4959 = vmatpush1.bf16.msra.mxu0 0
      %4960 = vmatprep.subr.bf16.mxu0 0
      %4961 = vmatpush1.bf16.msra.mxu0 0
      %4962 = vmatprep.subr.bf16.mxu0 0
      %4963 = vmatpush1.bf16.msra.mxu0 0
      %4964 = vmatprep.subr.bf16.mxu0 0
      %4965 = vmatpush1.bf16.msra.mxu0 0
      %4966 = vmatprep.subr.bf16.mxu0 0
      %4967 = vmatpush1.bf16.msra.mxu0 0
      %4968 = vmatprep.subr.bf16.mxu0 0
      %4969 = vmatpush1.bf16.msra.mxu0 0
      %4970 = vmatprep.subr.bf16.mxu0 0
      %4971 = vmatpush1.bf16.msra.mxu0 0
      %4972 = vmatprep.subr.bf16.mxu0 0
      %4973 = vmatpush1.bf16.msra.mxu0 0
      %4974 = vmatprep.mubr.bf16.mxu0 0
      %4975 = vmatmul.mubr.bf16.gmra.mrb[0].mxu0 %v4891
      %v4976 = vpop.f32.mrb[0].mxu0
      %v4977 = vadd.f32 0.0, %v4976
      %v4978 = vpop.f32.mrb[0].mxu0
      %v4979 = vpop.f32.mrb[0].mxu0
      %v4980 = vadd.f32 0.0, %v4979
      %v4981 = vpop.f32.mrb[0].mxu0
      %4982 = vmatprep.mubr.bf16.mxu0 0
      %4983 = vmatmul.mubr.bf16.gmra.mrb[0].mxu0 %v4894
      %v4984 = vpop.f32.mrb[0].mxu0
      %v4985 = vadd.f32 0.0, %v4984
      %v4986 = vpop.f32.mrb[0].mxu0
      %v4987 = vpop.f32.mrb[0].mxu0
      %v4988 = vadd.f32 0.0, %v4987
      %v4989 = vpop.f32.mrb[0].mxu0
      %4990 = vmatprep.mubr.bf16.mxu0 0
      %4991 = vmatmul.mubr.bf16.gmra.mrb[0].mxu0 %v4897
      %v4992 = vpop.f32.mrb[0].mxu0
      %v4993 = vadd.f32 0.0, %v4992
      %v4994 = vpop.f32.mrb[0].mxu0
      %v4995 = vpop.f32.mrb[0].mxu0
      %v4996 = vadd.f32 0.0, %v4995
      %v4997 = vpop.f32.mrb[0].mxu0
      %4998 = vmatprep.mubr.bf16.mxu0 0
      %4999 = vmatmul.mubr.bf16.gmra.mrb[0].mxu0 %v4900
      %v5000 = vpop.f32.mrb[0].mxu0
      %v5001 = vadd.f32 0.0, %v5000
      %v5002 = vpop.f32.mrb[0].mxu0
      %v5003 = vpop.f32.mrb[0].mxu0
      %v5004 = vadd.f32 0.0, %v5003
      %v5005 = vpop.f32.mrb[0].mxu0
      %5006 = vmatprep.mubr.bf16.mxu0 0
      %5007 = vmatmul.mubr.bf16.gmra.mrb[0].mxu0 %v4903
      %v5008 = vpop.f32.mrb[0].mxu0
      %v5009 = vadd.f32 0.0, %v5008
      %v5010 = vpop.f32.mrb[0].mxu0
      %v5011 = vpop.f32.mrb[0].mxu0
      %v5012 = vadd.f32 0.0, %v5011
      %v5013 = vpop.f32.mrb[0].mxu0
      %5014 = vmatprep.mubr.bf16.mxu0 0
      %5015 = vmatmul.mubr.bf16.gmra.mrb[0].mxu0 %v4906
      %v5016 = vpop.f32.mrb[0].mxu0
      %v5017 = vadd.f32 0.0, %v5016
      %v5018 = vpop.f32.mrb[0].mxu0
      %v5019 = vpop.f32.mrb[0].mxu0
      %v5020 = vadd.f32 0.0, %v5019
      %v5021 = vpop.f32.mrb[0].mxu0
      %5022 = vmatprep.mubr.bf16.mxu0 0
      %5023 = vmatmul.mubr.bf16.gmra.mrb[0].mxu0 %v4909
      %v5024 = vpop.f32.mrb[0].mxu0
      %v5025 = vadd.f32 0.0, %v5024
      %v5026 = vpop.f32.mrb[0].mxu0
      %v5027 = vpop.f32.mrb[0].mxu0
      %v5028 = vadd.f32 0.0, %v5027
      %v5029 = vpop.f32.mrb[0].mxu0
      %5030 = vmatprep.mubr.bf16.mxu0 0
      %5031 = vmatmul.mubr.bf16.gmra.mrb[0].mxu0 %v4912
      %v5032 = vpop.f32.mrb[0].mxu0
      %v5033 = vadd.f32 0.0, %v5032
      %v5034 = vpop.f32.mrb[0].mxu0
      %v5035 = vpop.f32.mrb[0].mxu0
      %v5036 = vadd.f32 0.0, %v5035
      %v5037 = vpop.f32.mrb[0].mxu0
      %5038 = vmatprep.mubr.bf16.mxu0 0
      %5039 = vmatmul.mubr.bf16.gmra.mrb[0].mxu0 %v4915
      %v5040 = vpop.f32.mrb[0].mxu0
      %v5041 = vadd.f32 0.0, %v5040
      %v5042 = vpop.f32.mrb[0].mxu0
      %v5043 = vpop.f32.mrb[0].mxu0
      %v5044 = vadd.f32 0.0, %v5043
      %v5045 = vpop.f32.mrb[0].mxu0
      %5046 = vmatprep.mubr.bf16.mxu0 0
      %5047 = vmatmul.mubr.bf16.gmra.mrb[0].mxu0 %v4918
      %v5048 = vpop.f32.mrb[0].mxu0
      %v5049 = vadd.f32 0.0, %v5048
      %v5050 = vpop.f32.mrb[0].mxu0
      %v5051 = vpop.f32.mrb[0].mxu0
      %v5052 = vadd.f32 0.0, %v5051
      %v5053 = vpop.f32.mrb[0].mxu0
      %5054 = vmatprep.mubr.bf16.mxu0 0
      %5055 = vmatmul.mubr.bf16.gmra.mrb[0].mxu0 %v4921
      %v5056 = vpop.f32.mrb[0].mxu0
      %v5057 = vadd.f32 0.0, %v5056
      %v5058 = vpop.f32.mrb[0].mxu0
      %v5059 = vpop.f32.mrb[0].mxu0
      %v5060 = vadd.f32 0.0, %v5059
      %v5061 = vpop.f32.mrb[0].mxu0
      %5062 = vmatprep.mubr.bf16.mxu0 0
      %5063 = vmatmul.mubr.bf16.gmra.mrb[0].mxu0 %v4924
      %v5064 = vpop.f32.mrb[0].mxu0
      %v5065 = vadd.f32 0.0, %v5064
      %v5066 = vpop.f32.mrb[0].mxu0
      %v5067 = vpop.f32.mrb[0].mxu0
      %v5068 = vadd.f32 0.0, %v5067
      %v5069 = vpop.f32.mrb[0].mxu0
      %5070 = vmatprep.mubr.bf16.mxu0 0
      %5071 = vmatmul.mubr.bf16.gmra.mrb[0].mxu0 %v4927
      %v5072 = vpop.f32.mrb[0].mxu0
      %v5073 = vadd.f32 0.0, %v5072
      %v5074 = vpop.f32.mrb[0].mxu0
      %v5075 = vpop.f32.mrb[0].mxu0
      %v5076 = vadd.f32 0.0, %v5075
      %v5077 = vpop.f32.mrb[0].mxu0
      %5078 = vmatprep.mubr.bf16.mxu0 0
      %5079 = vmatmul.mubr.bf16.gmra.mrb[0].mxu0 %v4930
      %v5080 = vpop.f32.mrb[0].mxu0
      %v5081 = vadd.f32 0.0, %v5080
      %v5082 = vpop.f32.mrb[0].mxu0
      %v5083 = vpop.f32.mrb[0].mxu0
      %v5084 = vadd.f32 0.0, %v5083
      %v5085 = vpop.f32.mrb[0].mxu0
      %5086 = vmatprep.mubr.bf16.mxu0 0
      %5087 = vmatmul.mubr.bf16.gmra.mrb[0].mxu0 %v4933
      %v5088 = vpop.f32.mrb[0].mxu0
      %v5089 = vadd.f32 0.0, %v5088
      %v5090 = vpop.f32.mrb[0].mxu0
      %v5091 = vpop.f32.mrb[0].mxu0
      %v5092 = vadd.f32 0.0, %v5091
      %v5093 = vpop.f32.mrb[0].mxu0
      %5094 = vmatprep.mubr.bf16.mxu0 0
      %5095 = vmatmul.mubr.bf16.gmra.mrb[0].mxu0 %v4936
      %v5096 = vpop.f32.mrb[0].mxu0
      %v5097 = vadd.f32 0.0, %v5096
      %v5098 = vpop.f32.mrb[0].mxu0
      %v5099 = vpop.f32.mrb[0].mxu0
      %v5100 = vadd.f32 0.0, %v5099
      %v5101 = vpop.f32.mrb[0].mxu0
      %5102 = vdwg.mxu0
      %v5135 = vunpack.c.l.b16 %v172
      %v5136 = vunpack.c.l.b16 %v173
      %v5137 = vunpack.c.l.b16 %v174
      %v5138 = vunpack.c.l.b16 %v175
      %v5139 = vunpack.c.l.b16 %v176
      %v5140 = vunpack.c.l.b16 %v177
      %v5141 = vunpack.c.l.b16 %v178
      %v5142 = vunpack.c.l.b16 %v179
      %v5143 = vunpack.c.l.b16 %v180
      %v5144 = vunpack.c.l.b16 %v181
      %v5145 = vunpack.c.l.b16 %v182
      %v5146 = vunpack.c.l.b16 %v183
      %v5147 = vunpack.c.l.b16 %v184
      %v5148 = vunpack.c.l.b16 %v185
      %v5149 = vunpack.c.l.b16 %v186
      %v5150 = vunpack.c.l.b16 %v187
      %v5151 = vunpack.c.l.b16 %v188
      %v5152 = vunpack.c.l.b16 %v189
      %v5153 = vunpack.c.l.b16 %v190
      %v5154 = vunpack.c.l.b16 %v191
      %v5155 = vunpack.c.l.b16 %v192
      %v5156 = vunpack.c.l.b16 %v193
      %v5157 = vunpack.c.l.b16 %v194
      %v5158 = vunpack.c.l.b16 %v195
      %v5159 = vunpack.c.l.b16 %v196
      %v5160 = vunpack.c.l.b16 %v197
      %v5161 = vunpack.c.l.b16 %v198
      %v5162 = vunpack.c.l.b16 %v199
      %v5163 = vunpack.c.l.b16 %v200
      %v5164 = vunpack.c.l.b16 %v201
      %v5165 = vunpack.c.l.b16 %v202
      %v5166 = vunpack.c.l.b16 %v203
      %v5167 = vpack.c.b16 %v5136, %v5135
      %v5168 = vpack.c.b16 %v5138, %v5137
      %v5169 = vpack.c.b16 %v5140, %v5139
      %v5170 = vpack.c.b16 %v5142, %v5141
      %v5171 = vpack.c.b16 %v5144, %v5143
      %v5172 = vpack.c.b16 %v5146, %v5145
      %v5173 = vpack.c.b16 %v5148, %v5147
      %v5174 = vpack.c.b16 %v5150, %v5149
      %v5175 = vpack.c.b16 %v5152, %v5151
      %v5176 = vpack.c.b16 %v5154, %v5153
      %v5177 = vpack.c.b16 %v5156, %v5155
      %v5178 = vpack.c.b16 %v5158, %v5157
      %v5179 = vpack.c.b16 %v5160, %v5159
      %v5180 = vpack.c.b16 %v5162, %v5161
      %v5181 = vpack.c.b16 %v5164, %v5163
      %v5182 = vpack.c.b16 %v5166, %v5165
      %v5184 = vsel %vm236, %v5167, 0
      %v5187 = vsel %vm236, %v5168, 0
      %v5190 = vsel %vm236, %v5169, 0
      %v5193 = vsel %vm236, %v5170, 0
      %v5196 = vsel %vm236, %v5171, 0
      %v5199 = vsel %vm236, %v5172, 0
      %v5202 = vsel %vm236, %v5173, 0
      %v5205 = vsel %vm236, %v5174, 0
      %v5208 = vsel %vm236, %v5175, 0
      %v5211 = vsel %vm236, %v5176, 0
      %v5214 = vsel %vm236, %v5177, 0
      %v5217 = vsel %vm236, %v5178, 0
      %v5220 = vsel %vm236, %v5179, 0
      %v5223 = vsel %vm236, %v5180, 0
      %v5226 = vsel %vm236, %v5181, 0
      %v5229 = vsel %vm236, %v5182, 0
      %v5232 = vsel %vm4938, %v4771, 0
      %5234 = vmatprep.subr.bf16.mxu0 0
      %5235 = vmatpush1.bf16.msra.mxu0 %v5232
      %5236 = vmatprep.subr.bf16.mxu0 0
      %5237 = vmatpush1.bf16.msra.mxu0 0
      %5238 = vmatprep.subr.bf16.mxu0 0
      %5239 = vmatpush1.bf16.msra.mxu0 0
      %5240 = vmatprep.subr.bf16.mxu0 0
      %5241 = vmatpush1.bf16.msra.mxu0 0
      %5242 = vmatprep.subr.bf16.mxu0 0
      %5243 = vmatpush1.bf16.msra.mxu0 0
      %5244 = vmatprep.subr.bf16.mxu0 0
      %5245 = vmatpush1.bf16.msra.mxu0 0
      %5246 = vmatprep.subr.bf16.mxu0 0
      %5247 = vmatpush1.bf16.msra.mxu0 0
      %5248 = vmatprep.subr.bf16.mxu0 0
      %5249 = vmatpush1.bf16.msra.mxu0 0
      %5250 = vmatprep.subr.bf16.mxu0 0
      %5251 = vmatpush1.bf16.msra.mxu0 0
      %5252 = vmatprep.subr.bf16.mxu0 0
      %5253 = vmatpush1.bf16.msra.mxu0 0
      %5254 = vmatprep.subr.bf16.mxu0 0
      %5255 = vmatpush1.bf16.msra.mxu0 0
      %5256 = vmatprep.subr.bf16.mxu0 0
      %5257 = vmatpush1.bf16.msra.mxu0 0
      %5258 = vmatprep.subr.bf16.mxu0 0
      %5259 = vmatpush1.bf16.msra.mxu0 0
      %5260 = vmatprep.subr.bf16.mxu0 0
      %5261 = vmatpush1.bf16.msra.mxu0 0
      %5262 = vmatprep.subr.bf16.mxu0 0
      %5263 = vmatpush1.bf16.msra.mxu0 0
      %5264 = vmatprep.subr.bf16.mxu0 0
      %5265 = vmatpush1.bf16.msra.mxu0 0
      %5266 = vmatprep.mubr.bf16.mxu0 0
      %5267 = vmatmul.mubr.bf16.gmra.mrb[0].mxu0 %v5184
      %v5268 = vpop.f32.mrb[0].mxu0
      %v5269 = vadd.f32 %v4977, %v5268
      %v5270 = vpop.f32.mrb[0].mxu0
      %v5271 = vpop.f32.mrb[0].mxu0
      %v5272 = vadd.f32 %v4980, %v5271
      %v5273 = vpop.f32.mrb[0].mxu0
      %5274 = vmatprep.mubr.bf16.mxu0 0
      %5275 = vmatmul.mubr.bf16.gmra.mrb[0].mxu0 %v5187
      %v5276 = vpop.f32.mrb[0].mxu0
      %v5277 = vadd.f32 %v4985, %v5276
      %v5278 = vpop.f32.mrb[0].mxu0
      %v5279 = vpop.f32.mrb[0].mxu0
      %v5280 = vadd.f32 %v4988, %v5279
      %v5281 = vpop.f32.mrb[0].mxu0
      %5282 = vmatprep.mubr.bf16.mxu0 0
      %5283 = vmatmul.mubr.bf16.gmra.mrb[0].mxu0 %v5190
      %v5284 = vpop.f32.mrb[0].mxu0
      %v5285 = vadd.f32 %v4993, %v5284
      %v5286 = vpop.f32.mrb[0].mxu0
      %v5287 = vpop.f32.mrb[0].mxu0
      %v5288 = vadd.f32 %v4996, %v5287
      %v5289 = vpop.f32.mrb[0].mxu0
      %5290 = vmatprep.mubr.bf16.mxu0 0
      %5291 = vmatmul.mubr.bf16.gmra.mrb[0].mxu0 %v5193
      %v5292 = vpop.f32.mrb[0].mxu0
      %v5293 = vadd.f32 %v5001, %v5292
      %v5294 = vpop.f32.mrb[0].mxu0
      %v5295 = vpop.f32.mrb[0].mxu0
      %v5296 = vadd.f32 %v5004, %v5295
      %v5297 = vpop.f32.mrb[0].mxu0
      %5298 = vmatprep.mubr.bf16.mxu0 0
      %5299 = vmatmul.mubr.bf16.gmra.mrb[0].mxu0 %v5196
      %v5300 = vpop.f32.mrb[0].mxu0
      %v5301 = vadd.f32 %v5009, %v5300
      %v5302 = vpop.f32.mrb[0].mxu0
      %v5303 = vpop.f32.mrb[0].mxu0
      %v5304 = vadd.f32 %v5012, %v5303
      %v5305 = vpop.f32.mrb[0].mxu0
      %5306 = vmatprep.mubr.bf16.mxu0 0
      %5307 = vmatmul.mubr.bf16.gmra.mrb[0].mxu0 %v5199
      %v5308 = vpop.f32.mrb[0].mxu0
      %v5309 = vadd.f32 %v5017, %v5308
      %v5310 = vpop.f32.mrb[0].mxu0
      %v5311 = vpop.f32.mrb[0].mxu0
      %v5312 = vadd.f32 %v5020, %v5311
      %v5313 = vpop.f32.mrb[0].mxu0
      %5314 = vmatprep.mubr.bf16.mxu0 0
      %5315 = vmatmul.mubr.bf16.gmra.mrb[0].mxu0 %v5202
      %v5316 = vpop.f32.mrb[0].mxu0
      %v5317 = vadd.f32 %v5025, %v5316
      %v5318 = vpop.f32.mrb[0].mxu0
      %v5319 = vpop.f32.mrb[0].mxu0
      %v5320 = vadd.f32 %v5028, %v5319
      %v5321 = vpop.f32.mrb[0].mxu0
      %5322 = vmatprep.mubr.bf16.mxu0 0
      %5323 = vmatmul.mubr.bf16.gmra.mrb[0].mxu0 %v5205
      %v5324 = vpop.f32.mrb[0].mxu0
      %v5325 = vadd.f32 %v5033, %v5324
      %v5326 = vpop.f32.mrb[0].mxu0
      %v5327 = vpop.f32.mrb[0].mxu0
      %v5328 = vadd.f32 %v5036, %v5327
      %v5329 = vpop.f32.mrb[0].mxu0
      %5330 = vmatprep.mubr.bf16.mxu0 0
      %5331 = vmatmul.mubr.bf16.gmra.mrb[0].mxu0 %v5208
      %v5332 = vpop.f32.mrb[0].mxu0
      %v5333 = vadd.f32 %v5041, %v5332
      %v5334 = vpop.f32.mrb[0].mxu0
      %v5335 = vpop.f32.mrb[0].mxu0
      %v5336 = vadd.f32 %v5044, %v5335
      %v5337 = vpop.f32.mrb[0].mxu0
      %5338 = vmatprep.mubr.bf16.mxu0 0
      %5339 = vmatmul.mubr.bf16.gmra.mrb[0].mxu0 %v5211
      %v5340 = vpop.f32.mrb[0].mxu0
      %v5341 = vadd.f32 %v5049, %v5340
      %v5342 = vpop.f32.mrb[0].mxu0
      %v5343 = vpop.f32.mrb[0].mxu0
      %v5344 = vadd.f32 %v5052, %v5343
      %v5345 = vpop.f32.mrb[0].mxu0
      %5346 = vmatprep.mubr.bf16.mxu0 0
      %5347 = vmatmul.mubr.bf16.gmra.mrb[0].mxu0 %v5214
      %v5348 = vpop.f32.mrb[0].mxu0
      %v5349 = vadd.f32 %v5057, %v5348
      %v5350 = vpop.f32.mrb[0].mxu0
      %v5351 = vpop.f32.mrb[0].mxu0
      %v5352 = vadd.f32 %v5060, %v5351
      %v5353 = vpop.f32.mrb[0].mxu0
      %5354 = vmatprep.mubr.bf16.mxu0 0
      %5355 = vmatmul.mubr.bf16.gmra.mrb[0].mxu0 %v5217
      %v5356 = vpop.f32.mrb[0].mxu0
      %v5357 = vadd.f32 %v5065, %v5356
      %v5358 = vpop.f32.mrb[0].mxu0
      %v5359 = vpop.f32.mrb[0].mxu0
      %v5360 = vadd.f32 %v5068, %v5359
      %v5361 = vpop.f32.mrb[0].mxu0
      %5362 = vmatprep.mubr.bf16.mxu0 0
      %5363 = vmatmul.mubr.bf16.gmra.mrb[0].mxu0 %v5220
      %v5364 = vpop.f32.mrb[0].mxu0
      %v5365 = vadd.f32 %v5073, %v5364
      %v5366 = vpop.f32.mrb[0].mxu0
      %v5367 = vpop.f32.mrb[0].mxu0
      %v5368 = vadd.f32 %v5076, %v5367
      %v5369 = vpop.f32.mrb[0].mxu0
      %5370 = vmatprep.mubr.bf16.mxu0 0
      %5371 = vmatmul.mubr.bf16.gmra.mrb[0].mxu0 %v5223
      %v5372 = vpop.f32.mrb[0].mxu0
      %v5373 = vadd.f32 %v5081, %v5372
      %v5374 = vpop.f32.mrb[0].mxu0
      %v5375 = vpop.f32.mrb[0].mxu0
      %v5376 = vadd.f32 %v5084, %v5375
      %v5377 = vpop.f32.mrb[0].mxu0
      %5378 = vmatprep.mubr.bf16.mxu0 0
      %5379 = vmatmul.mubr.bf16.gmra.mrb[0].mxu0 %v5226
      %v5380 = vpop.f32.mrb[0].mxu0
      %v5381 = vadd.f32 %v5089, %v5380
      %v5382 = vpop.f32.mrb[0].mxu0
      %v5383 = vpop.f32.mrb[0].mxu0
      %v5384 = vadd.f32 %v5092, %v5383
      %v5385 = vpop.f32.mrb[0].mxu0
      %5386 = vmatprep.mubr.bf16.mxu0 0
      %5387 = vmatmul.mubr.bf16.gmra.mrb[0].mxu0 %v5229
      %v5388 = vpop.f32.mrb[0].mxu0
      %v5389 = vadd.f32 %v5097, %v5388
      %v5390 = vpop.f32.mrb[0].mxu0
      %v5391 = vpop.f32.mrb[0].mxu0
      %v5392 = vadd.f32 %v5100, %v5391
      %v5393 = vpop.f32.mrb[0].mxu0
      %5394 = vdwg.mxu0
      %v5395 = vpack.c.bf16 %v3774, %v3773
      %v5396 = vpack.c.bf16 %v3775, %v3775
      %v5397 = vpack.c.bf16 %v3777, %v3776
      %v5398 = vpack.c.bf16 %v3778, %v3778
      %v5399 = vpack.c.bf16 %v3780, %v3779
      %v5400 = vpack.c.bf16 %v3781, %v3781
      %v5401 = vpack.c.bf16 %v3783, %v3782
      %v5402 = vpack.c.bf16 %v3784, %v3784
      %v5403 = vpack.c.bf16 %v3786, %v3785
      %v5404 = vpack.c.bf16 %v3787, %v3787
      %v5405 = vpack.c.bf16 %v3789, %v3788
      %v5406 = vpack.c.bf16 %v3790, %v3790
      %v5407 = vpack.c.bf16 %v3792, %v3791
      %v5408 = vpack.c.bf16 %v3793, %v3793
      %v5409 = vpack.c.bf16 %v3795, %v3794
      %v5410 = vpack.c.bf16 %v3796, %v3796
      %v5411 = vpack.c.bf16 %v3798, %v3797
      %v5412 = vpack.c.bf16 %v3799, %v3799
      %v5413 = vpack.c.bf16 %v3801, %v3800
      %v5414 = vpack.c.bf16 %v3802, %v3802
      %v5415 = vpack.c.bf16 %v3804, %v3803
      %v5416 = vpack.c.bf16 %v3805, %v3805
      %v5417 = vpack.c.bf16 %v3807, %v3806
      %v5418 = vpack.c.bf16 %v3808, %v3808
      %v5419 = vpack.c.bf16 %v3810, %v3809
      %v5420 = vpack.c.bf16 %v3811, %v3811
      %v5421 = vpack.c.bf16 %v3813, %v3812
      %v5422 = vpack.c.bf16 %v3814, %v3814
      %v5423 = vpack.c.bf16 %v3816, %v3815
      %v5424 = vpack.c.bf16 %v3817, %v3817
      %v5425 = vpack.c.bf16 %v3819, %v3818
      %v5426 = vpack.c.bf16 %v3820, %v3820
      %vm5459 = vcmask 1045504
      %v5460 = vrot.slane %v5395, 2
      %v5461 = vrot.slane %v5396, 2
      %v5462 = vsel %vm5459, %v5460, %v5461
      %v5463 = vrot.slane %v5397, 2
      %v5464 = vrot.slane %v5398, 2
      %v5465 = vsel %vm5459, %v5463, %v5464
      %v5466 = vrot.slane %v5399, 2
      %v5467 = vrot.slane %v5400, 2
      %v5468 = vsel %vm5459, %v5466, %v5467
      %v5469 = vrot.slane %v5401, 2
      %v5470 = vrot.slane %v5402, 2
      %v5471 = vsel %vm5459, %v5469, %v5470
      %v5472 = vrot.slane %v5403, 2
      %v5473 = vrot.slane %v5404, 2
      %v5474 = vsel %vm5459, %v5472, %v5473
      %v5475 = vrot.slane %v5405, 2
      %v5476 = vrot.slane %v5406, 2
      %v5477 = vsel %vm5459, %v5475, %v5476
      %v5478 = vrot.slane %v5407, 2
      %v5479 = vrot.slane %v5408, 2
      %v5480 = vsel %vm5459, %v5478, %v5479
      %v5481 = vrot.slane %v5409, 2
      %v5482 = vrot.slane %v5410, 2
      %v5483 = vsel %vm5459, %v5481, %v5482
      %v5484 = vrot.slane %v5411, 2
      %v5485 = vrot.slane %v5412, 2
      %v5486 = vsel %vm5459, %v5484, %v5485
      %v5487 = vrot.slane %v5413, 2
      %v5488 = vrot.slane %v5414, 2
      %v5489 = vsel %vm5459, %v5487, %v5488
      %v5490 = vrot.slane %v5415, 2
      %v5491 = vrot.slane %v5416, 2
      %v5492 = vsel %vm5459, %v5490, %v5491
      %v5493 = vrot.slane %v5417, 2
      %v5494 = vrot.slane %v5418, 2
      %v5495 = vsel %vm5459, %v5493, %v5494
      %v5496 = vrot.slane %v5419, 2
      %v5497 = vrot.slane %v5420, 2
      %v5498 = vsel %vm5459, %v5496, %v5497
      %v5499 = vrot.slane %v5421, 2
      %v5500 = vrot.slane %v5422, 2
      %v5501 = vsel %vm5459, %v5499, %v5500
      %v5502 = vrot.slane %v5423, 2
      %v5503 = vrot.slane %v5424, 2
      %v5504 = vsel %vm5459, %v5502, %v5503
      %v5505 = vrot.slane %v5425, 2
      %v5506 = vrot.slane %v5426, 2
      %v5507 = vsel %vm5459, %v5505, %v5506
      %v5508 = vld [vmem:[%s1] sm:$0x4]
      %v5510 = vunpack.c.l.b16 %v5508
      %v5511 = vpack.c.b16 %v5510, %v5510
      %v5512 = vrot.slane %v5511, 2
      %v5514 = vsel %vm236, %v5462, 0
      %v5517 = vsel %vm236, %v5465, 0
      %v5520 = vsel %vm236, %v5468, 0
      %v5523 = vsel %vm236, %v5471, 0
      %v5526 = vsel %vm236, %v5474, 0
      %v5529 = vsel %vm236, %v5477, 0
      %v5532 = vsel %vm236, %v5480, 0
      %v5535 = vsel %vm236, %v5483, 0
      %v5538 = vsel %vm236, %v5486, 0
      %v5541 = vsel %vm236, %v5489, 0
      %v5544 = vsel %vm236, %v5492, 0
      %v5547 = vsel %vm236, %v5495, 0
      %v5550 = vsel %vm236, %v5498, 0
      %v5553 = vsel %vm236, %v5501, 0
      %v5556 = vsel %vm236, %v5504, 0
      %v5559 = vsel %vm236, %v5507, 0
      %v5562 = vsel %vm4938, %v5512, 0
      %5564 = vmatprep.subr.bf16.mxu0 0
      %5565 = vmatpush1.bf16.msra.mxu0 %v5562
      %5566 = vmatprep.subr.bf16.mxu0 0
      %5567 = vmatpush1.bf16.msra.mxu0 0
      %5568 = vmatprep.subr.bf16.mxu0 0
      %5569 = vmatpush1.bf16.msra.mxu0 0
      %5570 = vmatprep.subr.bf16.mxu0 0
      %5571 = vmatpush1.bf16.msra.mxu0 0
      %5572 = vmatprep.subr.bf16.mxu0 0
      %5573 = vmatpush1.bf16.msra.mxu0 0
      %5574 = vmatprep.subr.bf16.mxu0 0
      %5575 = vmatpush1.bf16.msra.mxu0 0
      %5576 = vmatprep.subr.bf16.mxu0 0
      %5577 = vmatpush1.bf16.msra.mxu0 0
      %5578 = vmatprep.subr.bf16.mxu0 0
      %5579 = vmatpush1.bf16.msra.mxu0 0
      %5580 = vmatprep.subr.bf16.mxu0 0
      %5581 = vmatpush1.bf16.msra.mxu0 0
      %5582 = vmatprep.subr.bf16.mxu0 0
      %5583 = vmatpush1.bf16.msra.mxu0 0
      %5584 = vmatprep.subr.bf16.mxu0 0
      %5585 = vmatpush1.bf16.msra.mxu0 0
      %5586 = vmatprep.subr.bf16.mxu0 0
      %5587 = vmatpush1.bf16.msra.mxu0 0
      %5588 = vmatprep.subr.bf16.mxu0 0
      %5589 = vmatpush1.bf16.msra.mxu0 0
      %5590 = vmatprep.subr.bf16.mxu0 0
      %5591 = vmatpush1.bf16.msra.mxu0 0
      %5592 = vmatprep.subr.bf16.mxu0 0
      %5593 = vmatpush1.bf16.msra.mxu0 0
      %5594 = vmatprep.subr.bf16.mxu0 0
      %5595 = vmatpush1.bf16.msra.mxu0 0
      %5596 = vmatprep.mubr.bf16.mxu0 0
      %5597 = vmatmul.mubr.bf16.gmra.mrb[0].mxu0 %v5514
      %v5598 = vpop.f32.mrb[0].mxu0
      %v5599 = vadd.f32 0.0, %v5598
      %v5600 = vpop.f32.mrb[0].mxu0
      %v5601 = vpop.f32.mrb[0].mxu0
      %v5602 = vadd.f32 0.0, %v5601
      %v5603 = vpop.f32.mrb[0].mxu0
      %5604 = vmatprep.mubr.bf16.mxu0 0
      %5605 = vmatmul.mubr.bf16.gmra.mrb[0].mxu0 %v5517
      %v5606 = vpop.f32.mrb[0].mxu0
      %v5607 = vadd.f32 0.0, %v5606
      %v5608 = vpop.f32.mrb[0].mxu0
      %v5609 = vpop.f32.mrb[0].mxu0
      %v5610 = vadd.f32 0.0, %v5609
      %v5611 = vpop.f32.mrb[0].mxu0
      %5612 = vmatprep.mubr.bf16.mxu0 0
      %5613 = vmatmul.mubr.bf16.gmra.mrb[0].mxu0 %v5520
      %v5614 = vpop.f32.mrb[0].mxu0
      %v5615 = vadd.f32 0.0, %v5614
      %v5616 = vpop.f32.mrb[0].mxu0
      %v5617 = vpop.f32.mrb[0].mxu0
      %v5618 = vadd.f32 0.0, %v5617
      %v5619 = vpop.f32.mrb[0].mxu0
      %5620 = vmatprep.mubr.bf16.mxu0 0
      %5621 = vmatmul.mubr.bf16.gmra.mrb[0].mxu0 %v5523
      %v5622 = vpop.f32.mrb[0].mxu0
      %v5623 = vadd.f32 0.0, %v5622
      %v5624 = vpop.f32.mrb[0].mxu0
      %v5625 = vpop.f32.mrb[0].mxu0
      %v5626 = vadd.f32 0.0, %v5625
      %v5627 = vpop.f32.mrb[0].mxu0
      %5628 = vmatprep.mubr.bf16.mxu0 0
      %5629 = vmatmul.mubr.bf16.gmra.mrb[0].mxu0 %v5526
      %v5630 = vpop.f32.mrb[0].mxu0
      %v5631 = vadd.f32 0.0, %v5630
      %v5632 = vpop.f32.mrb[0].mxu0
      %v5633 = vpop.f32.mrb[0].mxu0
      %v5634 = vadd.f32 0.0, %v5633
      %v5635 = vpop.f32.mrb[0].mxu0
      %5636 = vmatprep.mubr.bf16.mxu0 0
      %5637 = vmatmul.mubr.bf16.gmra.mrb[0].mxu0 %v5529
      %v5638 = vpop.f32.mrb[0].mxu0
      %v5639 = vadd.f32 0.0, %v5638
      %v5640 = vpop.f32.mrb[0].mxu0
      %v5641 = vpop.f32.mrb[0].mxu0
      %v5642 = vadd.f32 0.0, %v5641
      %v5643 = vpop.f32.mrb[0].mxu0
      %5644 = vmatprep.mubr.bf16.mxu0 0
      %5645 = vmatmul.mubr.bf16.gmra.mrb[0].mxu0 %v5532
      %v5646 = vpop.f32.mrb[0].mxu0
      %v5647 = vadd.f32 0.0, %v5646
      %v5648 = vpop.f32.mrb[0].mxu0
      %v5649 = vpop.f32.mrb[0].mxu0
      %v5650 = vadd.f32 0.0, %v5649
      %v5651 = vpop.f32.mrb[0].mxu0
      %5652 = vmatprep.mubr.bf16.mxu0 0
      %5653 = vmatmul.mubr.bf16.gmra.mrb[0].mxu0 %v5535
      %v5654 = vpop.f32.mrb[0].mxu0
      %v5655 = vadd.f32 0.0, %v5654
      %v5656 = vpop.f32.mrb[0].mxu0
      %v5657 = vpop.f32.mrb[0].mxu0
      %v5658 = vadd.f32 0.0, %v5657
      %v5659 = vpop.f32.mrb[0].mxu0
      %5660 = vmatprep.mubr.bf16.mxu0 0
      %5661 = vmatmul.mubr.bf16.gmra.mrb[0].mxu0 %v5538
      %v5662 = vpop.f32.mrb[0].mxu0
      %v5663 = vadd.f32 0.0, %v5662
      %v5664 = vpop.f32.mrb[0].mxu0
      %v5665 = vpop.f32.mrb[0].mxu0
      %v5666 = vadd.f32 0.0, %v5665
      %v5667 = vpop.f32.mrb[0].mxu0
      %5668 = vmatprep.mubr.bf16.mxu0 0
      %5669 = vmatmul.mubr.bf16.gmra.mrb[0].mxu0 %v5541
      %v5670 = vpop.f32.mrb[0].mxu0
      %v5671 = vadd.f32 0.0, %v5670
      %v5672 = vpop.f32.mrb[0].mxu0
      %v5673 = vpop.f32.mrb[0].mxu0
      %v5674 = vadd.f32 0.0, %v5673
      %v5675 = vpop.f32.mrb[0].mxu0
      %5676 = vmatprep.mubr.bf16.mxu0 0
      %5677 = vmatmul.mubr.bf16.gmra.mrb[0].mxu0 %v5544
      %v5678 = vpop.f32.mrb[0].mxu0
      %v5679 = vadd.f32 0.0, %v5678
      %v5680 = vpop.f32.mrb[0].mxu0
      %v5681 = vpop.f32.mrb[0].mxu0
      %v5682 = vadd.f32 0.0, %v5681
      %v5683 = vpop.f32.mrb[0].mxu0
      %5684 = vmatprep.mubr.bf16.mxu0 0
      %5685 = vmatmul.mubr.bf16.gmra.mrb[0].mxu0 %v5547
      %v5686 = vpop.f32.mrb[0].mxu0
      %v5687 = vadd.f32 0.0, %v5686
      %v5688 = vpop.f32.mrb[0].mxu0
      %v5689 = vpop.f32.mrb[0].mxu0
      %v5690 = vadd.f32 0.0, %v5689
      %v5691 = vpop.f32.mrb[0].mxu0
      %5692 = vmatprep.mubr.bf16.mxu0 0
      %5693 = vmatmul.mubr.bf16.gmra.mrb[0].mxu0 %v5550
      %v5694 = vpop.f32.mrb[0].mxu0
      %v5695 = vadd.f32 0.0, %v5694
      %v5696 = vpop.f32.mrb[0].mxu0
      %v5697 = vpop.f32.mrb[0].mxu0
      %v5698 = vadd.f32 0.0, %v5697
      %v5699 = vpop.f32.mrb[0].mxu0
      %5700 = vmatprep.mubr.bf16.mxu0 0
      %5701 = vmatmul.mubr.bf16.gmra.mrb[0].mxu0 %v5553
      %v5702 = vpop.f32.mrb[0].mxu0
      %v5703 = vadd.f32 0.0, %v5702
      %v5704 = vpop.f32.mrb[0].mxu0
      %v5705 = vpop.f32.mrb[0].mxu0
      %v5706 = vadd.f32 0.0, %v5705
      %v5707 = vpop.f32.mrb[0].mxu0
      %5708 = vmatprep.mubr.bf16.mxu0 0
      %5709 = vmatmul.mubr.bf16.gmra.mrb[0].mxu0 %v5556
      %v5710 = vpop.f32.mrb[0].mxu0
      %v5711 = vadd.f32 0.0, %v5710
      %v5712 = vpop.f32.mrb[0].mxu0
      %v5713 = vpop.f32.mrb[0].mxu0
      %v5714 = vadd.f32 0.0, %v5713
      %v5715 = vpop.f32.mrb[0].mxu0
      %5716 = vmatprep.mubr.bf16.mxu0 0
      %5717 = vmatmul.mubr.bf16.gmra.mrb[0].mxu0 %v5559
      %v5718 = vpop.f32.mrb[0].mxu0
      %v5719 = vadd.f32 0.0, %v5718
      %v5720 = vpop.f32.mrb[0].mxu0
      %v5721 = vpop.f32.mrb[0].mxu0
      %v5722 = vadd.f32 0.0, %v5721
      %v5723 = vpop.f32.mrb[0].mxu0
      %5724 = vdwg.mxu0
      %v5725 = vadd.f32 %v5269, %v5599
      %v5726 = vadd.f32 %v5272, %v5602
      %v5727 = vadd.f32 %v5277, %v5607
      %v5728 = vadd.f32 %v5280, %v5610
      %v5729 = vadd.f32 %v5285, %v5615
      %v5730 = vadd.f32 %v5288, %v5618
      %v5731 = vadd.f32 %v5293, %v5623
      %v5732 = vadd.f32 %v5296, %v5626
      %v5733 = vadd.f32 %v5301, %v5631
      %v5734 = vadd.f32 %v5304, %v5634
      %v5735 = vadd.f32 %v5309, %v5639
      %v5736 = vadd.f32 %v5312, %v5642
      %v5737 = vadd.f32 %v5317, %v5647
      %v5738 = vadd.f32 %v5320, %v5650
      %v5739 = vadd.f32 %v5325, %v5655
      %v5740 = vadd.f32 %v5328, %v5658
      %v5741 = vadd.f32 %v5333, %v5663
      %v5742 = vadd.f32 %v5336, %v5666
      %v5743 = vadd.f32 %v5341, %v5671
      %v5744 = vadd.f32 %v5344, %v5674
      %v5745 = vadd.f32 %v5349, %v5679
      %v5746 = vadd.f32 %v5352, %v5682
      %v5747 = vadd.f32 %v5357, %v5687
      %v5748 = vadd.f32 %v5360, %v5690
      %v5749 = vadd.f32 %v5365, %v5695
      %v5750 = vadd.f32 %v5368, %v5698
      %v5751 = vadd.f32 %v5373, %v5703
      %v5752 = vadd.f32 %v5376, %v5706
      %v5753 = vadd.f32 %v5381, %v5711
      %v5754 = vadd.f32 %v5384, %v5714
      %v5755 = vadd.f32 %v5389, %v5719
      %v5756 = vadd.f32 %v5392, %v5722
      %v5757 = vpack.c.bf16 %v4724, %v4723
      %v5758 = vpack.c.bf16 %v4725, %v4725
      %v5759 = vpack.c.bf16 %v4727, %v4726
      %v5760 = vpack.c.bf16 %v4728, %v4728
      %v5761 = vpack.c.bf16 %v4730, %v4729
      %v5762 = vpack.c.bf16 %v4731, %v4731
      %v5763 = vpack.c.bf16 %v4733, %v4732
      %v5764 = vpack.c.bf16 %v4734, %v4734
      %v5765 = vpack.c.bf16 %v4736, %v4735
      %v5766 = vpack.c.bf16 %v4737, %v4737
      %v5767 = vpack.c.bf16 %v4739, %v4738
      %v5768 = vpack.c.bf16 %v4740, %v4740
      %v5769 = vpack.c.bf16 %v4742, %v4741
      %v5770 = vpack.c.bf16 %v4743, %v4743
      %v5771 = vpack.c.bf16 %v4745, %v4744
      %v5772 = vpack.c.bf16 %v4746, %v4746
      %v5773 = vpack.c.bf16 %v4748, %v4747
      %v5774 = vpack.c.bf16 %v4749, %v4749
      %v5775 = vpack.c.bf16 %v4751, %v4750
      %v5776 = vpack.c.bf16 %v4752, %v4752
      %v5777 = vpack.c.bf16 %v4754, %v4753
      %v5778 = vpack.c.bf16 %v4755, %v4755
      %v5779 = vpack.c.bf16 %v4757, %v4756
      %v5780 = vpack.c.bf16 %v4758, %v4758
      %v5781 = vpack.c.bf16 %v4760, %v4759
      %v5782 = vpack.c.bf16 %v4761, %v4761
      %v5783 = vpack.c.bf16 %v4763, %v4762
      %v5784 = vpack.c.bf16 %v4764, %v4764
      %v5785 = vpack.c.bf16 %v4766, %v4765
      %v5786 = vpack.c.bf16 %v4767, %v4767
      %v5787 = vpack.c.bf16 %v4769, %v4768
      %v5788 = vpack.c.bf16 %v4770, %v4770
      %vm5821 = vcmask 1046528
      %v5822 = vrot.slane %v5757, 1
      %v5823 = vrot.slane %v5758, 1
      %v5824 = vsel %vm5821, %v5822, %v5823
      %v5825 = vrot.slane %v5759, 1
      %v5826 = vrot.slane %v5760, 1
      %v5827 = vsel %vm5821, %v5825, %v5826
      %v5828 = vrot.slane %v5761, 1
      %v5829 = vrot.slane %v5762, 1
      %v5830 = vsel %vm5821, %v5828, %v5829
      %v5831 = vrot.slane %v5763, 1
      %v5832 = vrot.slane %v5764, 1
      %v5833 = vsel %vm5821, %v5831, %v5832
      %v5834 = vrot.slane %v5765, 1
      %v5835 = vrot.slane %v5766, 1
      %v5836 = vsel %vm5821, %v5834, %v5835
      %v5837 = vrot.slane %v5767, 1
      %v5838 = vrot.slane %v5768, 1
      %v5839 = vsel %vm5821, %v5837, %v5838
      %v5840 = vrot.slane %v5769, 1
      %v5841 = vrot.slane %v5770, 1
      %v5842 = vsel %vm5821, %v5840, %v5841
      %v5843 = vrot.slane %v5771, 1
      %v5844 = vrot.slane %v5772, 1
      %v5845 = vsel %vm5821, %v5843, %v5844
      %v5846 = vrot.slane %v5773, 1
      %v5847 = vrot.slane %v5774, 1
      %v5848 = vsel %vm5821, %v5846, %v5847
      %v5849 = vrot.slane %v5775, 1
      %v5850 = vrot.slane %v5776, 1
      %v5851 = vsel %vm5821, %v5849, %v5850
      %v5852 = vrot.slane %v5777, 1
      %v5853 = vrot.slane %v5778, 1
      %v5854 = vsel %vm5821, %v5852, %v5853
      %v5855 = vrot.slane %v5779, 1
      %v5856 = vrot.slane %v5780, 1
      %v5857 = vsel %vm5821, %v5855, %v5856
      %v5858 = vrot.slane %v5781, 1
      %v5859 = vrot.slane %v5782, 1
      %v5860 = vsel %vm5821, %v5858, %v5859
      %v5861 = vrot.slane %v5783, 1
      %v5862 = vrot.slane %v5784, 1
      %v5863 = vsel %vm5821, %v5861, %v5862
      %v5864 = vrot.slane %v5785, 1
      %v5865 = vrot.slane %v5786, 1
      %v5866 = vsel %vm5821, %v5864, %v5865
      %v5867 = vrot.slane %v5787, 1
      %v5868 = vrot.slane %v5788, 1
      %v5869 = vsel %vm5821, %v5867, %v5868
      %v5870 = vld [vmem:[%s1] sm:$0x8]
      %v5872 = vunpack.c.l.b16 %v5870
      %v5873 = vpack.c.b16 %v5872, %v5872
      %v5874 = vrot.slane %v5873, 3
      %v5876 = vsel %vm236, %v5824, 0
      %v5879 = vsel %vm236, %v5827, 0
      %v5882 = vsel %vm236, %v5830, 0
      %v5885 = vsel %vm236, %v5833, 0
      %v5888 = vsel %vm236, %v5836, 0
      %v5891 = vsel %vm236, %v5839, 0
      %v5894 = vsel %vm236, %v5842, 0
      %v5897 = vsel %vm236, %v5845, 0
      %v5900 = vsel %vm236, %v5848, 0
      %v5903 = vsel %vm236, %v5851, 0
      %v5906 = vsel %vm236, %v5854, 0
      %v5909 = vsel %vm236, %v5857, 0
      %v5912 = vsel %vm236, %v5860, 0
      %v5915 = vsel %vm236, %v5863, 0
      %v5918 = vsel %vm236, %v5866, 0
      %v5921 = vsel %vm236, %v5869, 0
      %v5924 = vsel %vm4938, %v5874, 0
      %5926 = vmatprep.subr.bf16.mxu0 0
      %5927 = vmatpush1.bf16.msra.mxu0 %v5924
      %5928 = vmatprep.subr.bf16.mxu0 0
      %5929 = vmatpush1.bf16.msra.mxu0 0
      %5930 = vmatprep.subr.bf16.mxu0 0
      %5931 = vmatpush1.bf16.msra.mxu0 0
      %5932 = vmatprep.subr.bf16.mxu0 0
      %5933 = vmatpush1.bf16.msra.mxu0 0
      %5934 = vmatprep.subr.bf16.mxu0 0
      %5935 = vmatpush1.bf16.msra.mxu0 0
      %5936 = vmatprep.subr.bf16.mxu0 0
      %5937 = vmatpush1.bf16.msra.mxu0 0
      %5938 = vmatprep.subr.bf16.mxu0 0
      %5939 = vmatpush1.bf16.msra.mxu0 0
      %5940 = vmatprep.subr.bf16.mxu0 0
      %5941 = vmatpush1.bf16.msra.mxu0 0
      %5942 = vmatprep.subr.bf16.mxu0 0
      %5943 = vmatpush1.bf16.msra.mxu0 0
      %5944 = vmatprep.subr.bf16.mxu0 0
      %5945 = vmatpush1.bf16.msra.mxu0 0
      %5946 = vmatprep.subr.bf16.mxu0 0
      %5947 = vmatpush1.bf16.msra.mxu0 0
      %5948 = vmatprep.subr.bf16.mxu0 0
      %5949 = vmatpush1.bf16.msra.mxu0 0
      %5950 = vmatprep.subr.bf16.mxu0 0
      %5951 = vmatpush1.bf16.msra.mxu0 0
      %5952 = vmatprep.subr.bf16.mxu0 0
      %5953 = vmatpush1.bf16.msra.mxu0 0
      %5954 = vmatprep.subr.bf16.mxu0 0
      %5955 = vmatpush1.bf16.msra.mxu0 0
      %5956 = vmatprep.subr.bf16.mxu0 0
      %5957 = vmatpush1.bf16.msra.mxu0 0
      %5958 = vmatprep.mubr.bf16.mxu0 0
      %5959 = vmatmul.mubr.bf16.gmra.mrb[0].mxu0 %v5876
      %v5960 = vpop.f32.mrb[0].mxu0
      %v5961 = vadd.f32 0.0, %v5960
      %v5962 = vpop.f32.mrb[0].mxu0
      %v5963 = vpop.f32.mrb[0].mxu0
      %v5964 = vadd.f32 0.0, %v5963
      %v5965 = vpop.f32.mrb[0].mxu0
      %5966 = vmatprep.mubr.bf16.mxu0 0
      %5967 = vmatmul.mubr.bf16.gmra.mrb[0].mxu0 %v5879
      %v5968 = vpop.f32.mrb[0].mxu0
      %v5969 = vadd.f32 0.0, %v5968
      %v5970 = vpop.f32.mrb[0].mxu0
      %v5971 = vpop.f32.mrb[0].mxu0
      %v5972 = vadd.f32 0.0, %v5971
      %v5973 = vpop.f32.mrb[0].mxu0
      %5974 = vmatprep.mubr.bf16.mxu0 0
      %5975 = vmatmul.mubr.bf16.gmra.mrb[0].mxu0 %v5882
      %v5976 = vpop.f32.mrb[0].mxu0
      %v5977 = vadd.f32 0.0, %v5976
      %v5978 = vpop.f32.mrb[0].mxu0
      %v5979 = vpop.f32.mrb[0].mxu0
      %v5980 = vadd.f32 0.0, %v5979
      %v5981 = vpop.f32.mrb[0].mxu0
      %5982 = vmatprep.mubr.bf16.mxu0 0
      %5983 = vmatmul.mubr.bf16.gmra.mrb[0].mxu0 %v5885
      %v5984 = vpop.f32.mrb[0].mxu0
      %v5985 = vadd.f32 0.0, %v5984
      %v5986 = vpop.f32.mrb[0].mxu0
      %v5987 = vpop.f32.mrb[0].mxu0
      %v5988 = vadd.f32 0.0, %v5987
      %v5989 = vpop.f32.mrb[0].mxu0
      %5990 = vmatprep.mubr.bf16.mxu0 0
      %5991 = vmatmul.mubr.bf16.gmra.mrb[0].mxu0 %v5888
      %v5992 = vpop.f32.mrb[0].mxu0
      %v5993 = vadd.f32 0.0, %v5992
      %v5994 = vpop.f32.mrb[0].mxu0
      %v5995 = vpop.f32.mrb[0].mxu0
      %v5996 = vadd.f32 0.0, %v5995
      %v5997 = vpop.f32.mrb[0].mxu0
      %5998 = vmatprep.mubr.bf16.mxu0 0
      %5999 = vmatmul.mubr.bf16.gmra.mrb[0].mxu0 %v5891
      %v6000 = vpop.f32.mrb[0].mxu0
      %v6001 = vadd.f32 0.0, %v6000
      %v6002 = vpop.f32.mrb[0].mxu0
      %v6003 = vpop.f32.mrb[0].mxu0
      %v6004 = vadd.f32 0.0, %v6003
      %v6005 = vpop.f32.mrb[0].mxu0
      %6006 = vmatprep.mubr.bf16.mxu0 0
      %6007 = vmatmul.mubr.bf16.gmra.mrb[0].mxu0 %v5894
      %v6008 = vpop.f32.mrb[0].mxu0
      %v6009 = vadd.f32 0.0, %v6008
      %v6010 = vpop.f32.mrb[0].mxu0
      %v6011 = vpop.f32.mrb[0].mxu0
      %v6012 = vadd.f32 0.0, %v6011
      %v6013 = vpop.f32.mrb[0].mxu0
      %6014 = vmatprep.mubr.bf16.mxu0 0
      %6015 = vmatmul.mubr.bf16.gmra.mrb[0].mxu0 %v5897
      %v6016 = vpop.f32.mrb[0].mxu0
      %v6017 = vadd.f32 0.0, %v6016
      %v6018 = vpop.f32.mrb[0].mxu0
      %v6019 = vpop.f32.mrb[0].mxu0
      %v6020 = vadd.f32 0.0, %v6019
      %v6021 = vpop.f32.mrb[0].mxu0
      %6022 = vmatprep.mubr.bf16.mxu0 0
      %6023 = vmatmul.mubr.bf16.gmra.mrb[0].mxu0 %v5900
      %v6024 = vpop.f32.mrb[0].mxu0
      %v6025 = vadd.f32 0.0, %v6024
      %v6026 = vpop.f32.mrb[0].mxu0
      %v6027 = vpop.f32.mrb[0].mxu0
      %v6028 = vadd.f32 0.0, %v6027
      %v6029 = vpop.f32.mrb[0].mxu0
      %6030 = vmatprep.mubr.bf16.mxu0 0
      %6031 = vmatmul.mubr.bf16.gmra.mrb[0].mxu0 %v5903
      %v6032 = vpop.f32.mrb[0].mxu0
      %v6033 = vadd.f32 0.0, %v6032
      %v6034 = vpop.f32.mrb[0].mxu0
      %v6035 = vpop.f32.mrb[0].mxu0
      %v6036 = vadd.f32 0.0, %v6035
      %v6037 = vpop.f32.mrb[0].mxu0
      %6038 = vmatprep.mubr.bf16.mxu0 0
      %6039 = vmatmul.mubr.bf16.gmra.mrb[0].mxu0 %v5906
      %v6040 = vpop.f32.mrb[0].mxu0
      %v6041 = vadd.f32 0.0, %v6040
      %v6042 = vpop.f32.mrb[0].mxu0
      %v6043 = vpop.f32.mrb[0].mxu0
      %v6044 = vadd.f32 0.0, %v6043
      %v6045 = vpop.f32.mrb[0].mxu0
      %6046 = vmatprep.mubr.bf16.mxu0 0
      %6047 = vmatmul.mubr.bf16.gmra.mrb[0].mxu0 %v5909
      %v6048 = vpop.f32.mrb[0].mxu0
      %v6049 = vadd.f32 0.0, %v6048
      %v6050 = vpop.f32.mrb[0].mxu0
      %v6051 = vpop.f32.mrb[0].mxu0
      %v6052 = vadd.f32 0.0, %v6051
      %v6053 = vpop.f32.mrb[0].mxu0
      %6054 = vmatprep.mubr.bf16.mxu0 0
      %6055 = vmatmul.mubr.bf16.gmra.mrb[0].mxu0 %v5912
      %v6056 = vpop.f32.mrb[0].mxu0
      %v6057 = vadd.f32 0.0, %v6056
      %v6058 = vpop.f32.mrb[0].mxu0
      %v6059 = vpop.f32.mrb[0].mxu0
      %v6060 = vadd.f32 0.0, %v6059
      %v6061 = vpop.f32.mrb[0].mxu0
      %6062 = vmatprep.mubr.bf16.mxu0 0
      %6063 = vmatmul.mubr.bf16.gmra.mrb[0].mxu0 %v5915
      %v6064 = vpop.f32.mrb[0].mxu0
      %v6065 = vadd.f32 0.0, %v6064
      %v6066 = vpop.f32.mrb[0].mxu0
      %v6067 = vpop.f32.mrb[0].mxu0
      %v6068 = vadd.f32 0.0, %v6067
      %v6069 = vpop.f32.mrb[0].mxu0
      %6070 = vmatprep.mubr.bf16.mxu0 0
      %6071 = vmatmul.mubr.bf16.gmra.mrb[0].mxu0 %v5918
      %v6072 = vpop.f32.mrb[0].mxu0
      %v6073 = vadd.f32 0.0, %v6072
      %v6074 = vpop.f32.mrb[0].mxu0
      %v6075 = vpop.f32.mrb[0].mxu0
      %v6076 = vadd.f32 0.0, %v6075
      %v6077 = vpop.f32.mrb[0].mxu0
      %6078 = vmatprep.mubr.bf16.mxu0 0
      %6079 = vmatmul.mubr.bf16.gmra.mrb[0].mxu0 %v5921
      %v6080 = vpop.f32.mrb[0].mxu0
      %v6081 = vadd.f32 0.0, %v6080
      %v6082 = vpop.f32.mrb[0].mxu0
      %v6083 = vpop.f32.mrb[0].mxu0
      %v6084 = vadd.f32 0.0, %v6083
      %v6085 = vpop.f32.mrb[0].mxu0
      %6086 = vdwg.mxu0
      %v6087 = vadd.f32 %v5725, %v5961
      %v6088 = vadd.f32 %v5726, %v5964
      %v6089 = vadd.f32 %v5727, %v5969
      %v6090 = vadd.f32 %v5728, %v5972
      %v6091 = vadd.f32 %v5729, %v5977
      %v6092 = vadd.f32 %v5730, %v5980
      %v6093 = vadd.f32 %v5731, %v5985
      %v6094 = vadd.f32 %v5732, %v5988
      %v6095 = vadd.f32 %v5733, %v5993
      %v6096 = vadd.f32 %v5734, %v5996
      %v6097 = vadd.f32 %v5735, %v6001
      %v6098 = vadd.f32 %v5736, %v6004
      %v6099 = vadd.f32 %v5737, %v6009
      %v6100 = vadd.f32 %v5738, %v6012
      %v6101 = vadd.f32 %v5739, %v6017
      %v6102 = vadd.f32 %v5740, %v6020
      %v6103 = vadd.f32 %v5741, %v6025
      %v6104 = vadd.f32 %v5742, %v6028
      %v6105 = vadd.f32 %v5743, %v6033
      %v6106 = vadd.f32 %v5744, %v6036
      %v6107 = vadd.f32 %v5745, %v6041
      %v6108 = vadd.f32 %v5746, %v6044
      %v6109 = vadd.f32 %v5747, %v6049
      %v6110 = vadd.f32 %v5748, %v6052
      %v6111 = vadd.f32 %v5749, %v6057
      %v6112 = vadd.f32 %v5750, %v6060
      %v6113 = vadd.f32 %v5751, %v6065
      %v6114 = vadd.f32 %v5752, %v6068
      %v6115 = vadd.f32 %v5753, %v6073
      %v6116 = vadd.f32 %v5754, %v6076
      %v6117 = vadd.f32 %v5755, %v6081
      %v6118 = vadd.f32 %v5756, %v6084
      %v6119 = vld [vmem:[%s2] sm:$0x1]
      %v6121 = vlaneseq
      %v6122 = vshrl.u32 %v6121, 7
      %v6123 = vsub.s32 0, %v6122
      %v6124 = vrot.slane %v6119, %v6123
      %v6126 = vadd.f32 %v6087, %v6124
      %v6127 = vadd.f32 %v6088, %v6124
      %v6128 = vadd.f32 %v6089, %v6124
      %v6129 = vadd.f32 %v6090, %v6124
      %v6130 = vadd.f32 %v6091, %v6124
      %v6131 = vadd.f32 %v6092, %v6124
      %v6132 = vadd.f32 %v6093, %v6124
      %v6133 = vadd.f32 %v6094, %v6124
      %v6134 = vadd.f32 %v6095, %v6124
      %v6135 = vadd.f32 %v6096, %v6124
      %v6136 = vadd.f32 %v6097, %v6124
      %v6137 = vadd.f32 %v6098, %v6124
      %v6138 = vadd.f32 %v6099, %v6124
      %v6139 = vadd.f32 %v6100, %v6124
      %v6140 = vadd.f32 %v6101, %v6124
      %v6141 = vadd.f32 %v6102, %v6124
      %v6142 = vadd.f32 %v6103, %v6124
      %v6143 = vadd.f32 %v6104, %v6124
      %v6144 = vadd.f32 %v6105, %v6124
      %v6145 = vadd.f32 %v6106, %v6124
      %v6146 = vadd.f32 %v6107, %v6124
      %v6147 = vadd.f32 %v6108, %v6124
      %v6148 = vadd.f32 %v6109, %v6124
      %v6149 = vadd.f32 %v6110, %v6124
      %v6150 = vadd.f32 %v6111, %v6124
      %v6151 = vadd.f32 %v6112, %v6124
      %v6152 = vadd.f32 %v6113, %v6124
      %v6153 = vadd.f32 %v6114, %v6124
      %v6154 = vadd.f32 %v6115, %v6124
      %v6155 = vadd.f32 %v6116, %v6124
      %v6156 = vadd.f32 %v6117, %v6124
      %v6157 = vadd.f32 %v6118, %v6124
      %v6158 = vxor.u32 %v6126, 2147483648
      %v6159 = vxor.u32 %v6127, 2147483648
      %v6160 = vxor.u32 %v6128, 2147483648
      %v6161 = vxor.u32 %v6129, 2147483648
      %v6162 = vxor.u32 %v6130, 2147483648
      %v6163 = vxor.u32 %v6131, 2147483648
      %v6164 = vxor.u32 %v6132, 2147483648
      %v6165 = vxor.u32 %v6133, 2147483648
      %v6166 = vxor.u32 %v6134, 2147483648
      %v6167 = vxor.u32 %v6135, 2147483648
      %v6168 = vxor.u32 %v6136, 2147483648
      %v6169 = vxor.u32 %v6137, 2147483648
      %v6170 = vxor.u32 %v6138, 2147483648
      %v6171 = vxor.u32 %v6139, 2147483648
      %v6172 = vxor.u32 %v6140, 2147483648
      %v6173 = vxor.u32 %v6141, 2147483648
      %v6174 = vxor.u32 %v6142, 2147483648
      %v6175 = vxor.u32 %v6143, 2147483648
      %v6176 = vxor.u32 %v6144, 2147483648
      %v6177 = vxor.u32 %v6145, 2147483648
      %v6178 = vxor.u32 %v6146, 2147483648
      %v6179 = vxor.u32 %v6147, 2147483648
      %v6180 = vxor.u32 %v6148, 2147483648
      %v6181 = vxor.u32 %v6149, 2147483648
      %v6182 = vxor.u32 %v6150, 2147483648
      %v6183 = vxor.u32 %v6151, 2147483648
      %v6184 = vxor.u32 %v6152, 2147483648
      %v6185 = vxor.u32 %v6153, 2147483648
      %v6186 = vxor.u32 %v6154, 2147483648
      %v6187 = vxor.u32 %v6155, 2147483648
      %v6188 = vxor.u32 %v6156, 2147483648
      %v6189 = vxor.u32 %v6157, 2147483648
      %v6190 = vmul.f32 %v6158, 1.442695
      %v6191 = vpow.pop %v6190
      %v6192 = vmul.f32 %v6159, 1.442695
      %v6193 = vpow.pop %v6192
      %v6194 = vmul.f32 %v6160, 1.442695
      %v6195 = vpow.pop %v6194
      %v6196 = vmul.f32 %v6161, 1.442695
      %v6197 = vpow.pop %v6196
      %v6198 = vmul.f32 %v6162, 1.442695
      %v6199 = vpow.pop %v6198
      %v6200 = vmul.f32 %v6163, 1.442695
      %v6201 = vpow.pop %v6200
      %v6202 = vmul.f32 %v6164, 1.442695
      %v6203 = vpow.pop %v6202
      %v6204 = vmul.f32 %v6165, 1.442695
      %v6205 = vpow.pop %v6204
      %v6206 = vmul.f32 %v6166, 1.442695
      %v6207 = vpow.pop %v6206
      %v6208 = vmul.f32 %v6167, 1.442695
      %v6209 = vpow.pop %v6208
      %v6210 = vmul.f32 %v6168, 1.442695
      %v6211 = vpow.pop %v6210
      %v6212 = vmul.f32 %v6169, 1.442695
      %v6213 = vpow.pop %v6212
      %v6214 = vmul.f32 %v6170, 1.442695
      %v6215 = vpow.pop %v6214
      %v6216 = vmul.f32 %v6171, 1.442695
      %v6217 = vpow.pop %v6216
      %v6218 = vmul.f32 %v6172, 1.442695
      %v6219 = vpow.pop %v6218
      %v6220 = vmul.f32 %v6173, 1.442695
      %v6221 = vpow.pop %v6220
      %v6222 = vmul.f32 %v6174, 1.442695
      %v6223 = vpow.pop %v6222
      %v6224 = vmul.f32 %v6175, 1.442695
      %v6225 = vpow.pop %v6224
      %v6226 = vmul.f32 %v6176, 1.442695
      %v6227 = vpow.pop %v6226
      %v6228 = vmul.f32 %v6177, 1.442695
      %v6229 = vpow.pop %v6228
      %v6230 = vmul.f32 %v6178, 1.442695
      %v6231 = vpow.pop %v6230
      %v6232 = vmul.f32 %v6179, 1.442695
      %v6233 = vpow.pop %v6232
      %v6234 = vmul.f32 %v6180, 1.442695
      %v6235 = vpow.pop %v6234
      %v6236 = vmul.f32 %v6181, 1.442695
      %v6237 = vpow.pop %v6236
      %v6238 = vmul.f32 %v6182, 1.442695
      %v6239 = vpow.pop %v6238
      %v6240 = vmul.f32 %v6183, 1.442695
      %v6241 = vpow.pop %v6240
      %v6242 = vmul.f32 %v6184, 1.442695
      %v6243 = vpow.pop %v6242
      %v6244 = vmul.f32 %v6185, 1.442695
      %v6245 = vpow.pop %v6244
      %v6246 = vmul.f32 %v6186, 1.442695
      %v6247 = vpow.pop %v6246
      %v6248 = vmul.f32 %v6187, 1.442695
      %v6249 = vpow.pop %v6248
      %v6250 = vmul.f32 %v6188, 1.442695
      %v6251 = vpow.pop %v6250
      %v6252 = vmul.f32 %v6189, 1.442695
      %v6253 = vpow.pop %v6252
      %v6254 = vadd.f32 %v6191, 1.0
      %v6255 = vadd.f32 %v6193, 1.0
      %v6256 = vadd.f32 %v6195, 1.0
      %v6257 = vadd.f32 %v6197, 1.0
      %v6258 = vadd.f32 %v6199, 1.0
      %v6259 = vadd.f32 %v6201, 1.0
      %v6260 = vadd.f32 %v6203, 1.0
      %v6261 = vadd.f32 %v6205, 1.0
      %v6262 = vadd.f32 %v6207, 1.0
      %v6263 = vadd.f32 %v6209, 1.0
      %v6264 = vadd.f32 %v6211, 1.0
      %v6265 = vadd.f32 %v6213, 1.0
      %v6266 = vadd.f32 %v6215, 1.0
      %v6267 = vadd.f32 %v6217, 1.0
      %v6268 = vadd.f32 %v6219, 1.0
      %v6269 = vadd.f32 %v6221, 1.0
      %v6270 = vadd.f32 %v6223, 1.0
      %v6271 = vadd.f32 %v6225, 1.0
      %v6272 = vadd.f32 %v6227, 1.0
      %v6273 = vadd.f32 %v6229, 1.0
      %v6274 = vadd.f32 %v6231, 1.0
      %v6275 = vadd.f32 %v6233, 1.0
      %v6276 = vadd.f32 %v6235, 1.0
      %v6277 = vadd.f32 %v6237, 1.0
      %v6278 = vadd.f32 %v6239, 1.0
      %v6279 = vadd.f32 %v6241, 1.0
      %v6280 = vadd.f32 %v6243, 1.0
      %v6281 = vadd.f32 %v6245, 1.0
      %v6282 = vadd.f32 %v6247, 1.0
      %v6283 = vadd.f32 %v6249, 1.0
      %v6284 = vadd.f32 %v6251, 1.0
      %v6285 = vadd.f32 %v6253, 1.0
      %v6286 = vrcp.pop %v6254
      %v6287 = vmul.f32 1.0, %v6286
      %v6288 = vrcp.pop %v6255
      %v6289 = vmul.f32 1.0, %v6288
      %v6290 = vrcp.pop %v6256
      %v6291 = vmul.f32 1.0, %v6290
      %v6292 = vrcp.pop %v6257
      %v6293 = vmul.f32 1.0, %v6292
      %v6294 = vrcp.pop %v6258
      %v6295 = vmul.f32 1.0, %v6294
      %v6296 = vrcp.pop %v6259
      %v6297 = vmul.f32 1.0, %v6296
      %v6298 = vrcp.pop %v6260
      %v6299 = vmul.f32 1.0, %v6298
      %v6300 = vrcp.pop %v6261
      %v6301 = vmul.f32 1.0, %v6300
      %v6302 = vrcp.pop %v6262
      %v6303 = vmul.f32 1.0, %v6302
      %v6304 = vrcp.pop %v6263
      %v6305 = vmul.f32 1.0, %v6304
      %v6306 = vrcp.pop %v6264
      %v6307 = vmul.f32 1.0, %v6306
      %v6308 = vrcp.pop %v6265
      %v6309 = vmul.f32 1.0, %v6308
      %v6310 = vrcp.pop %v6266
      %v6311 = vmul.f32 1.0, %v6310
      %v6312 = vrcp.pop %v6267
      %v6313 = vmul.f32 1.0, %v6312
      %v6314 = vrcp.pop %v6268
      %v6315 = vmul.f32 1.0, %v6314
      %v6316 = vrcp.pop %v6269
      %v6317 = vmul.f32 1.0, %v6316
      %v6318 = vrcp.pop %v6270
      %v6319 = vmul.f32 1.0, %v6318
      %v6320 = vrcp.pop %v6271
      %v6321 = vmul.f32 1.0, %v6320
      %v6322 = vrcp.pop %v6272
      %v6323 = vmul.f32 1.0, %v6322
      %v6324 = vrcp.pop %v6273
      %v6325 = vmul.f32 1.0, %v6324
      %v6326 = vrcp.pop %v6274
      %v6327 = vmul.f32 1.0, %v6326
      %v6328 = vrcp.pop %v6275
      %v6329 = vmul.f32 1.0, %v6328
      %v6330 = vrcp.pop %v6276
      %v6331 = vmul.f32 1.0, %v6330
      %v6332 = vrcp.pop %v6277
      %v6333 = vmul.f32 1.0, %v6332
      %v6334 = vrcp.pop %v6278
      %v6335 = vmul.f32 1.0, %v6334
      %v6336 = vrcp.pop %v6279
      %v6337 = vmul.f32 1.0, %v6336
      %v6338 = vrcp.pop %v6280
      %v6339 = vmul.f32 1.0, %v6338
      %v6340 = vrcp.pop %v6281
      %v6341 = vmul.f32 1.0, %v6340
      %v6342 = vrcp.pop %v6282
      %v6343 = vmul.f32 1.0, %v6342
      %v6344 = vrcp.pop %v6283
      %v6345 = vmul.f32 1.0, %v6344
      %v6346 = vrcp.pop %v6284
      %v6347 = vmul.f32 1.0, %v6346
      %v6348 = vrcp.pop %v6285
      %v6349 = vmul.f32 1.0, %v6348
      %v6350 = vmul.f32 %v6126, %v6287
      %v6351 = vmul.f32 %v6127, %v6289
      %v6352 = vmul.f32 %v6128, %v6291
      %v6353 = vmul.f32 %v6129, %v6293
      %v6354 = vmul.f32 %v6130, %v6295
      %v6355 = vmul.f32 %v6131, %v6297
      %v6356 = vmul.f32 %v6132, %v6299
      %v6357 = vmul.f32 %v6133, %v6301
      %v6358 = vmul.f32 %v6134, %v6303
      %v6359 = vmul.f32 %v6135, %v6305
      %v6360 = vmul.f32 %v6136, %v6307
      %v6361 = vmul.f32 %v6137, %v6309
      %v6362 = vmul.f32 %v6138, %v6311
      %v6363 = vmul.f32 %v6139, %v6313
      %v6364 = vmul.f32 %v6140, %v6315
      %v6365 = vmul.f32 %v6141, %v6317
      %v6366 = vmul.f32 %v6142, %v6319
      %v6367 = vmul.f32 %v6143, %v6321
      %v6368 = vmul.f32 %v6144, %v6323
      %v6369 = vmul.f32 %v6145, %v6325
      %v6370 = vmul.f32 %v6146, %v6327
      %v6371 = vmul.f32 %v6147, %v6329
      %v6372 = vmul.f32 %v6148, %v6331
      %v6373 = vmul.f32 %v6149, %v6333
      %v6374 = vmul.f32 %v6150, %v6335
      %v6375 = vmul.f32 %v6151, %v6337
      %v6376 = vmul.f32 %v6152, %v6339
      %v6377 = vmul.f32 %v6153, %v6341
      %v6378 = vmul.f32 %v6154, %v6343
      %v6379 = vmul.f32 %v6155, %v6345
      %v6380 = vmul.f32 %v6156, %v6347
      %v6381 = vmul.f32 %v6157, %v6349
      %vm6382 = vcmask 64512
      %6383 = vst.msk [vmem:[%s170] sm:$0xff] %vm6382, %v6350
      %6384 = vst.msk [vmem:[%s170 + $0x8] sm:$0xff] %vm6382, %v6351
      %6385 = vst.msk [vmem:[%s170 + $0x10] sm:$0xff] %vm6382, %v6352
      %6386 = vst.msk [vmem:[%s170 + $0x18] sm:$0xff] %vm6382, %v6353
      %6387 = vst.msk [vmem:[%s170 + $0x20] sm:$0xff] %vm6382, %v6354
      %6388 = vst.msk [vmem:[%s170 + $0x28] sm:$0xff] %vm6382, %v6355
      %6389 = vst.msk [vmem:[%s170 + $0x30] sm:$0xff] %vm6382, %v6356
      %6390 = vst.msk [vmem:[%s170 + $0x38] sm:$0xff] %vm6382, %v6357
      %6391 = vst.msk [vmem:[%s170 + $0x40] sm:$0xff] %vm6382, %v6358
      %6392 = vst.msk [vmem:[%s170 + $0x48] sm:$0xff] %vm6382, %v6359
      %6393 = vst.msk [vmem:[%s170 + $0x50] sm:$0xff] %vm6382, %v6360
      %6394 = vst.msk [vmem:[%s170 + $0x58] sm:$0xff] %vm6382, %v6361
      %6395 = vst.msk [vmem:[%s170 + $0x60] sm:$0xff] %vm6382, %v6362
      %6396 = vst.msk [vmem:[%s170 + $0x68] sm:$0xff] %vm6382, %v6363
      %6397 = vst.msk [vmem:[%s170 + $0x70] sm:$0xff] %vm6382, %v6364
      %6398 = vst.msk [vmem:[%s170 + $0x78] sm:$0xff] %vm6382, %v6365
      %6399 = vst.msk [vmem:[%s170 + $0x80] sm:$0xff] %vm6382, %v6366
      %6400 = vst.msk [vmem:[%s170 + $0x88] sm:$0xff] %vm6382, %v6367
      %6401 = vst.msk [vmem:[%s170 + $0x90] sm:$0xff] %vm6382, %v6368
      %6402 = vst.msk [vmem:[%s170 + $0x98] sm:$0xff] %vm6382, %v6369
      %6403 = vst.msk [vmem:[%s170 + $0xa0] sm:$0xff] %vm6382, %v6370
      %6404 = vst.msk [vmem:[%s170 + $0xa8] sm:$0xff] %vm6382, %v6371
      %6405 = vst.msk [vmem:[%s170 + $0xb0] sm:$0xff] %vm6382, %v6372
      %6406 = vst.msk [vmem:[%s170 + $0xb8] sm:$0xff] %vm6382, %v6373
      %6407 = vst.msk [vmem:[%s170 + $0xc0] sm:$0xff] %vm6382, %v6374
      %6408 = vst.msk [vmem:[%s170 + $0xc8] sm:$0xff] %vm6382, %v6375
      %6409 = vst.msk [vmem:[%s170 + $0xd0] sm:$0xff] %vm6382, %v6376
      %6410 = vst.msk [vmem:[%s170 + $0xd8] sm:$0xff] %vm6382, %v6377
      %6411 = vst.msk [vmem:[%s170 + $0xe0] sm:$0xff] %vm6382, %v6378
      %6412 = vst.msk [vmem:[%s170 + $0xe8] sm:$0xff] %vm6382, %v6379
      %6413 = vst.msk [vmem:[%s170 + $0xf0] sm:$0xff] %vm6382, %v6380
      %6414 = vst.msk [vmem:[%s170 + $0xf8] sm:$0xff] %vm6382, %v6381
      %p6415 = scmp.lt.s32.totalorder %s14, 1
      %s6416 = scalar_select %p6415, %s14, 1
      %s6417 = smul.addr %s6416, 32
      %s6418 = smul.addr %s6417, 8
      %s6419 = scalar_lea.vmem %s3, %s6418
      // Predicated region
      $region33: #{sppf_forward.3} parent=31 // pred_check
        %p6420 = pneg %p100
      $region34: #{sppf_forward.3} parent=31 // pred_check_branch
        %6422 = sbr.rel (%p6420) target = $region36
      $region35: #{sppf_forward.3} parent=31 // pred_region
        _
      $region36: #{sppf_forward.3} parent=31 // pred_fallthru
        _
    $region32: #{sppf_forward.3} parent=5 // pred_fallthru
      _
    %p6423 = scmp.le.s32.totalorder 2, %s9
    // Predicated region
    $region37: #{sppf_forward.3} parent=5 // pred_check
      %p6424 = pneg %p6423
    $region38: #{sppf_forward.3} parent=5 // pred_check_branch
      %6426 = sbr.rel (%p6424) target = $region40
    $region39: #{sppf_forward.3} parent=5 // pred_region
      %s6427 = ssub.s32 %s9, 2
      // Predicated region
      $region41: #{sppf_forward.3} parent=39 // pred_check
        %p6428 = pneg %p106
      $region42: #{sppf_forward.3} parent=39 // pred_check_branch
        %6430 = sbr.rel (%p6428) target = $region44
      $region43: #{sppf_forward.3} parent=39 // pred_region
        %p6431 = scmp.lt.s32.totalorder %s15, 1
        %s6432 = scalar_select %p6431, %s15, 1
        %s6433 = smul.addr %s6432, 32
        %s6434 = smul.addr %s6433, 8
        %s6435 = scalar_lea.vmem %s3, %s6434
      $region44: #{sppf_forward.3} parent=39 // pred_fallthru
        _
    $region40: #{sppf_forward.3} parent=5 // pred_fallthru
      _
  $region6: #{sppf_forward.3} parent=0 // loop_footer
    %s13 = sadd.s32 1, %s9
  $region7: #{sppf_forward.3} parent=0 // loop_footer_branch
    %8 = sbr.rel target = $region3
  $region8: #{sppf_forward.3} parent=0 // loop_exit
    _

</llo_original>
